<compile_context>
chip_gen: v7x
topology: tpu7x:2x2x1
jax: 0.10.0
libtpu: 0.0.40
codegen_flags: <defaults>
</compile_context>

<pallas_src>
import functools

import jax
import jax.numpy as jnp
from jax.experimental import pallas as pl
from jax.experimental.pallas import tpu as pltpu

_LANE = 128
_NEG = jnp.float32(-1e30)   # masks padded logit lanes out of the log-softmax


def _round_up(x: int, m: int) -> int:
    return (x + m - 1) // m * m


# ---------------------------------------------------------------------------
# Kernel: one grid step == `time_chunk` RNN timesteps for one batch chunk.
# Hidden state is carried in the VMEM-resident output block `h_ref`
# (index_map constant along the time axis).
# ---------------------------------------------------------------------------
def _rnn_chunk_kernel(idx_ref,                      # SMEM scalar prefetch (Tp*Bp,)
                      h0_ref, tab_ref, wh_ref,      # inputs (all VMEM resident)
                      logp_ref, h_ref,              # outputs
                      xg_ref,                       # VMEM scratch (Bc, Np)
                      *, hidden_size, time_chunk, batch_chunk,
                      total_batch, seq_len):
    bc = pl.program_id(0)      # batch chunk ("parallel")
    tc = pl.program_id(1)      # time chunk  ("arbitrary": sequential carry)

    @pl.when(tc == 0)
    def _():
        h_ref[...] = h0_ref[...]

    # Loop-invariant hoists: done once per chunk, not once per timestep.
    wh = wh_ref[...]                                 # (H, H+128) mxu dtype
    b_off = bc * batch_chunk

    def one_step(t, t_glob):
        # One-hot x  =>  x @ [Wx_i2h | Wx_i2o] + bias  ==  one row of the fused
        # table per batch element (bias & -1e30 pad lanes are pre-folded).
        base = t_glob * total_batch + b_off
        for b in range(batch_chunk):                 # small static unroll
            row = tab_ref[idx_ref[base + b]]         # (1, Np) f32, dynamic row
            xg_ref[pl.ds(b, 1), :] = row

        h = h_ref[...]                               # (Bc, H) f32 carry (old h)
        out = (jnp.dot(h.astype(wh.dtype), wh,
                       preferred_element_type=jnp.float32)
               + xg_ref[...])                        # (Bc, H+128) f32

        new_h = out[:, :hidden_size]                 # lane-aligned slice
        logits = out[:, hidden_size:]                # pad lanes already == -1e30

        # log_softmax along features, numerically stable, all f32 (VPU/EUP).
        m = jnp.max(logits, axis=1, keepdims=True)
        shifted = logits - m
        lse = jnp.log(jnp.sum(jnp.exp(shifted), axis=1, keepdims=True))
        logp_ref[t] = shifted - lse                  # lane-dense (Bc, 128) store
        h_ref[...] = new_h                           # carry to next step/chunk

    needs_guard = (seq_len % time_chunk) != 0        # only if T was padded up
    for t in range(time_chunk):                      # static unroll of step loop
        t_glob = tc * time_chunk + t
        if needs_guard:
            pl.when(t_glob < seq_len)(functools.partial(one_step, t, t_glob))
        else:
            one_step(t, t_glob)


# ---------------------------------------------------------------------------
# One-time parameter preparation (hoisted out of the forward pass).
#   w_i2h: (H, I+H), b_i2h: (H,), w_i2o: (O, I+H), b_i2o: (O,)  [PyTorch layout]
# Returns:
#   table: (Ip, 1, H+128) f32 — row i = [i2h col i + b_i2h | i2o col i + b_i2o |
#          -1e30 pads];  x @ W + b for a one-hot x is exactly one table row.
#   wh:    (H, H+128) mxu_dtype — recurrent part of the fused [i2h | i2o].
# ---------------------------------------------------------------------------
def prepare_rnn_params(w_i2h, b_i2h, w_i2o, b_i2o, *, mxu_dtype=jnp.bfloat16):
    H, K = w_i2h.shape
    O = w_i2o.shape[0]
    I = K - H
    assert H % _LANE == 0, "hidden_size must be a multiple of 128"
    assert O <= _LANE, "output_size > 128 would need multi-tile softmax"
    Ip = _round_up(I, 8)
    Np = H + _LANE

    w_i2h = w_i2h.astype(jnp.float32)
    w_i2o = w_i2o.astype(jnp.float32)

    tab = jnp.zeros((Ip, Np), jnp.float32)
    tab = tab.at[:I, :H].set(w_i2h[:, :I].T + b_i2h[None, :].astype(jnp.float32))
    tab = tab.at[:I, H:H + O].set(w_i2o[:, :I].T + b_i2o[None, :].astype(jnp.float32))
    tab = tab.at[:, H + O:].set(_NEG)

    wh = jnp.zeros((H, Np), jnp.float32)
    wh = wh.at[:, :H].set(w_i2h[:, I:].T)
    wh = wh.at[:, H:H + O].set(w_i2o[:, I:].T)

    return tab.reshape(Ip, 1, Np), wh.astype(mxu_dtype)


# ---------------------------------------------------------------------------
# Fused-sequence forward: T RNN steps in one pallas_call.
#   char_idx: (T, B) int32 character indices (lineToTensor minus the one-hot)
#   h0:       (B, H) initial hidden
# Returns (log_probs (T, B, output_size) f32, final hidden (B, H) f32).
# ---------------------------------------------------------------------------
def rnn_forward_sequence(char_idx, h0, table, wh, *, output_size,
                         time_chunk=8, batch_chunk=None):
    T, B = char_idx.shape
    H = wh.shape[0]
    Ip, _, Np = table.shape
    Op = Np - H

    if batch_chunk is None:
        batch_chunk = min(_round_up(max(B, 8), 8), 128)
    Bc = _round_up(batch_chunk, 8)
    Bp = _round_up(max(B, Bc), Bc)
    nB = Bp // Bc

    Tc = max(1, min(time_chunk, T))
    Tp = _round_up(T, Tc)
    nT = Tp // Tc

    # Character indices go through scalar prefetch (SMEM); flattened 1-D to
    # keep SMEM padding cheap.
    idx_p = jnp.zeros((Tp, Bp), jnp.int32).at[:T, :B].set(char_idx.astype(jnp.int32))
    idx_flat = idx_p.reshape(-1)
    h0_p = jnp.zeros((Bp, H), jnp.float32).at[:B].set(h0.astype(jnp.float32))

    kernel = functools.partial(
        _rnn_chunk_kernel, hidden_size=H, time_chunk=Tc, batch_chunk=Bc,
        total_batch=Bp, seq_len=T)

    logp, h_fin = pl.pallas_call(
        kernel,
        grid_spec=pltpu.PrefetchScalarGridSpec(
            num_scalar_prefetch=1,
            grid=(nB, nT),
            in_specs=[
                pl.BlockSpec((Bc, H), lambda bc, tc, idx: (bc, 0)),        # h0
                pl.BlockSpec((Ip, 1, Np), lambda bc, tc, idx: (0, 0, 0)),  # table
                pl.BlockSpec((H, Np), lambda bc, tc, idx: (0, 0)),         # Wh
            ],
            out_specs=(
                pl.BlockSpec((Tc, Bc, Op), lambda bc, tc, idx: (tc, bc, 0)),
                pl.BlockSpec((Bc, H), lambda bc, tc, idx: (bc, 0)),        # carry
            ),
            scratch_shapes=[pltpu.VMEM((Bc, Np), jnp.float32)],
        ),
        out_shape=(
            jax.ShapeDtypeStruct((Tp, Bp, Op), jnp.float32),
            jax.ShapeDtypeStruct((Bp, H), jnp.float32),
        ),
        compiler_params=pltpu.CompilerParams(
            # batch chunks are independent (feeds both v7x TensorCores);
            # the time axis carries the hidden state -> sequential.
            dimension_semantics=("parallel", "arbitrary"),
        ),
    )(idx_flat, h0_p, table, wh)

    return logp[:T, :B, :output_size], h_fin[:B]


# Single-step cell with the exact semantics of RNN.forward(input, hidden).
# NOTE: one pallas_call per character; prefer rnn_forward_sequence for loops.
def rnn_cell(char_idx_b, h, table, wh, *, output_size):
    logp, h_new = rnn_forward_sequence(char_idx_b[None, :], h, table, wh,
                                       output_size=output_size, time_chunk=1)
    return logp[0], h_new


if __name__ == "__main__":
    # n_letters = len(ascii_letters + " .,;'") = 57, n_hidden = 128, 18 name
    # categories (tutorial).  Small demo: 16 sequences of length 10.
    input_size, hidden_size, output_size = 57, 128, 18
    T, B = 10, 16

    key = jax.random.PRNGKey(0)
    kx, kw1, kb1, kw2, kb2 = jax.random.split(key, 5)

    # Character indices (lineToTensor semantics, minus the one-hot expansion).
    idx = jax.random.randint(kx, (T, B), 0, input_size, dtype=jnp.int32)
    h0 = jnp.zeros((B, hidden_size), jnp.float32)

    # PyTorch-style Linear init: uniform(-1/sqrt(fan_in), 1/sqrt(fan_in)).
    fan_in = input_size + hidden_size
    bound = 1.0 / (fan_in ** 0.5)
    w_i2h = jax.random.uniform(kw1, (hidden_size, fan_in), jnp.float32, -bound, bound)
    b_i2h = jax.random.uniform(kb1, (hidden_size,), jnp.float32, -bound, bound)
    w_i2o = jax.random.uniform(kw2, (output_size, fan_in), jnp.float32, -bound, bound)
    b_i2o = jax.random.uniform(kb2, (output_size,), jnp.float32, -bound, bound)

    # One-time param prep (transpose + fuse + fold bias + pad + bf16 cast).
    table, wh = prepare_rnn_params(w_i2h, b_i2h, w_i2o, b_i2o,
                                   mxu_dtype=jnp.bfloat16)

    fwd = jax.jit(functools.partial(rnn_forward_sequence, output_size=output_size,
                                    time_chunk=8, batch_chunk=8))
    log_probs, h_final = fwd(idx, h0, table, wh)
    jax.block_until_ready((log_probs, h_final))

    # Pure-JAX f32 reference: the original per-step cell looped over the sequence.
    h_ref = h0
    ref_logps = []
    for t in range(T):
        x_t = jax.nn.one_hot(idx[t], input_size, dtype=jnp.float32)
        combined = jnp.concatenate([x_t, h_ref], axis=1)
        ref_logps.append(jax.nn.log_softmax(combined @ w_i2o.T + b_i2o, axis=1))
        h_ref = combined @ w_i2h.T + b_i2h
    ref_logp = jnp.stack(ref_logps)

    assert log_probs.shape == (T, B, output_size)
    assert h_final.shape == (B, hidden_size)
    # Recurrent matmul uses bf16 operands (f32 accumulation) -> small tolerance.
    assert jnp.allclose(log_probs, ref_logp, atol=3e-2), "log_probs mismatch"
    assert jnp.allclose(h_final, h_ref, atol=3e-2), "hidden mismatch"

    # Single-step path (matches RNN.forward / initHidden usage with batch 1).
    h1 = jnp.zeros((1, hidden_size), jnp.float32)
    lp1, hn1 = rnn_cell(idx[0, :1], h1, table, wh, output_size=output_size)
    jax.block_until_ready((lp1, hn1))
    x1 = jax.nn.one_hot(idx[0, :1], input_size, dtype=jnp.float32)
    comb1 = jnp.concatenate([x1, h1], axis=1)
    assert jnp.allclose(lp1, jax.nn.log_softmax(comb1 @ w_i2o.T + b_i2o, axis=1),
                        atol=3e-2)
    assert jnp.allclose(hn1, comb1 @ w_i2h.T + b_i2h, atol=3e-2)

    print("KERNEL_OK")
</pallas_src>

<mosaic_0001>
module attributes {stable_mosaic.version = 11 : i64} {
  func.func @_rnn_chunk_kernel(%arg0: i32, %arg1: i32, %arg2: memref<256xi32, #tpu.memory_space<smem>>, %arg3: memref<8x128xf32, #tpu.memory_space<vmem>>, %arg4: memref<64x1x256xf32, #tpu.memory_space<vmem>>, %arg5: memref<128x256xbf16, #tpu.memory_space<vmem>>, %arg6: memref<8x8x128xf32, #tpu.memory_space<vmem>>, %arg7: memref<8x128xf32, #tpu.memory_space<vmem>>, %arg8: memref<8x256xf32, #tpu.memory_space<vmem>>) attributes {dimension_semantics = [#tpu.dimension_semantics<parallel>, #tpu.dimension_semantics<arbitrary>], iteration_bounds = array<i64: 2, 2>, scalar_prefetch = 1 : i64, scratch_operands = 1 : i64, tpu.core_type = #tpu.core_type<tc>, window_params = [{transform_indices = @transform_0, window_bounds = array<i64: 8, 128>}, {pipeline_mode = #tpu.pipeline_mode<synchronous>, transform_indices = @transform_1, window_bounds = array<i64: 64, 1, 256>}, {pipeline_mode = #tpu.pipeline_mode<synchronous>, transform_indices = @transform_2, window_bounds = array<i64: 128, 256>}, {transform_indices = @transform_3, window_bounds = array<i64: 8, 8, 128>}, {transform_indices = @transform_4, window_bounds = array<i64: 8, 128>}]} {
    %c0_i32 = arith.constant 0 : i32
    %0 = arith.cmpi eq, %arg1, %c0_i32 : i32
    %1 = arith.extui %0 : i1 to i32
    %c0_i32_0 = arith.constant 0 : i32
    %2 = arith.cmpi ne, %1, %c0_i32_0 : i32
    scf.if %2 {
      %c0_26 = arith.constant 0 : index
      %c0_27 = arith.constant 0 : index
      %45 = vector.load %arg3[%c0_26, %c0_27] : memref<8x128xf32, #tpu.memory_space<vmem>>, vector<8x128xf32>
      %c0_28 = arith.constant 0 : index
      %c0_29 = arith.constant 0 : index
      %46 = vector.load %arg7[%c0_28, %c0_29] : memref<8x128xf32, #tpu.memory_space<vmem>>, vector<8x128xf32>
      tpu.vector_store %arg7[%c0_28, %c0_29], %45 {strides = array<i32>} : memref<8x128xf32, #tpu.memory_space<vmem>>, vector<8x128xf32>,
    } else {
    }
    %c0 = arith.constant 0 : index
    %c0_1 = arith.constant 0 : index
    %3 = vector.load %arg5[%c0, %c0_1] : memref<128x256xbf16, #tpu.memory_space<vmem>>, vector<128x256xbf16>
    %c8_i32 = arith.constant 8 : i32
    %4 = arith.muli %arg0, %c8_i32 : i32
    %c8_i32_2 = arith.constant 8 : i32
    %5 = arith.muli %arg1, %c8_i32_2 : i32
    %c0_i32_3 = arith.constant 0 : i32
    %6 = arith.addi %5, %c0_i32_3 : i32
    %c10_i32 = arith.constant 10 : i32
    %7 = arith.cmpi slt, %6, %c10_i32 : i32
    %8 = arith.extui %7 : i1 to i32
    %c0_i32_4 = arith.constant 0 : i32
    %9 = arith.cmpi ne, %8, %c0_i32_4 : i32
    scf.if %9 {
      %c16_i32 = arith.constant 16 : i32
      %45 = arith.muli %6, %c16_i32 : i32
      %46 = arith.addi %45, %4 : i32
      %c0_i32_26 = arith.constant 0 : i32
      %47 = arith.addi %46, %c0_i32_26 : i32
      %48 = arith.index_cast %47 : i32 to index
      %49 = memref.load %arg2[%48] : memref<256xi32, #tpu.memory_space<smem>>
      %50 = arith.index_cast %49 : i32 to index
      %c0_27 = arith.constant 0 : index
      %c0_28 = arith.constant 0 : index
      %51 = vector.load %arg4[%50, %c0_27, %c0_28] : memref<64x1x256xf32, #tpu.memory_space<vmem>>, vector<1x1x256xf32>
      %52 = vector.shape_cast %51 : vector<1x1x256xf32> to vector<1x256xf32>
      %c0_29 = arith.constant 0 : index
      %c0_30 = arith.constant 0 : index
      %53 = vector.load %arg8[%c0_29, %c0_30] : memref<8x256xf32, #tpu.memory_space<vmem>>, vector<1x256xf32>
      tpu.vector_store %arg8[%c0_29, %c0_30], %52 {strides = array<i32>} : memref<8x256xf32, #tpu.memory_space<vmem>>, vector<1x256xf32>,
      %c1_i32_31 = arith.constant 1 : i32
      %54 = arith.addi %46, %c1_i32_31 : i32
      %55 = arith.index_cast %54 : i32 to index
      %56 = memref.load %arg2[%55] : memref<256xi32, #tpu.memory_space<smem>>
      %57 = arith.index_cast %56 : i32 to index
      %c0_32 = arith.constant 0 : index
      %c0_33 = arith.constant 0 : index
      %58 = vector.load %arg4[%57, %c0_32, %c0_33] : memref<64x1x256xf32, #tpu.memory_space<vmem>>, vector<1x1x256xf32>
      %59 = vector.shape_cast %58 : vector<1x1x256xf32> to vector<1x256xf32>
      %c1 = arith.constant 1 : index
      %c0_34 = arith.constant 0 : index
      %60 = vector.load %arg8[%c1, %c0_34] : memref<8x256xf32, #tpu.memory_space<vmem>>, vector<1x256xf32>
      tpu.vector_store %arg8[%c1, %c0_34], %59 {strides = array<i32>} : memref<8x256xf32, #tpu.memory_space<vmem>>, vector<1x256xf32>,
      %c2_i32_35 = arith.constant 2 : i32
      %61 = arith.addi %46, %c2_i32_35 : i32
      %62 = arith.index_cast %61 : i32 to index
      %63 = memref.load %arg2[%62] : memref<256xi32, #tpu.memory_space<smem>>
      %64 = arith.index_cast %63 : i32 to index
      %c0_36 = arith.constant 0 : index
      %c0_37 = arith.constant 0 : index
      %65 = vector.load %arg4[%64, %c0_36, %c0_37] : memref<64x1x256xf32, #tpu.memory_space<vmem>>, vector<1x1x256xf32>
      %66 = vector.shape_cast %65 : vector<1x1x256xf32> to vector<1x256xf32>
      %c2 = arith.constant 2 : index
      %c0_38 = arith.constant 0 : index
      %67 = vector.load %arg8[%c2, %c0_38] : memref<8x256xf32, #tpu.memory_space<vmem>>, vector<1x256xf32>
      tpu.vector_store %arg8[%c2, %c0_38], %66 {strides = array<i32>} : memref<8x256xf32, #tpu.memory_space<vmem>>, vector<1x256xf32>,
      %c3_i32_39 = arith.constant 3 : i32
      %68 = arith.addi %46, %c3_i32_39 : i32
      %69 = arith.index_cast %68 : i32 to index
      %70 = memref.load %arg2[%69] : memref<256xi32, #tpu.memory_space<smem>>
      %71 = arith.index_cast %70 : i32 to index
      %c0_40 = arith.constant 0 : index
      %c0_41 = arith.constant 0 : index
      %72 = vector.load %arg4[%71, %c0_40, %c0_41] : memref<64x1x256xf32, #tpu.memory_space<vmem>>, vector<1x1x256xf32>
      %73 = vector.shape_cast %72 : vector<1x1x256xf32> to vector<1x256xf32>
      %c3 = arith.constant 3 : index
      %c0_42 = arith.constant 0 : index
      %74 = vector.load %arg8[%c3, %c0_42] : memref<8x256xf32, #tpu.memory_space<vmem>>, vector<1x256xf32>
      tpu.vector_store %arg8[%c3, %c0_42], %73 {strides = array<i32>} : memref<8x256xf32, #tpu.memory_space<vmem>>, vector<1x256xf32>,
      %c4_i32_43 = arith.constant 4 : i32
      %75 = arith.addi %46, %c4_i32_43 : i32
      %76 = arith.index_cast %75 : i32 to index
      %77 = memref.load %arg2[%76] : memref<256xi32, #tpu.memory_space<smem>>
      %78 = arith.index_cast %77 : i32 to index
      %c0_44 = arith.constant 0 : index
      %c0_45 = arith.constant 0 : index
      %79 = vector.load %arg4[%78, %c0_44, %c0_45] : memref<64x1x256xf32, #tpu.memory_space<vmem>>, vector<1x1x256xf32>
      %80 = vector.shape_cast %79 : vector<1x1x256xf32> to vector<1x256xf32>
      %c4 = arith.constant 4 : index
      %c0_46 = arith.constant 0 : index
      %81 = vector.load %arg8[%c4, %c0_46] : memref<8x256xf32, #tpu.memory_space<vmem>>, vector<1x256xf32>
      tpu.vector_store %arg8[%c4, %c0_46], %80 {strides = array<i32>} : memref<8x256xf32, #tpu.memory_space<vmem>>, vector<1x256xf32>,
      %c5_i32_47 = arith.constant 5 : i32
      %82 = arith.addi %46, %c5_i32_47 : i32
      %83 = arith.index_cast %82 : i32 to index
      %84 = memref.load %arg2[%83] : memref<256xi32, #tpu.memory_space<smem>>
      %85 = arith.index_cast %84 : i32 to index
      %c0_48 = arith.constant 0 : index
      %c0_49 = arith.constant 0 : index
      %86 = vector.load %arg4[%85, %c0_48, %c0_49] : memref<64x1x256xf32, #tpu.memory_space<vmem>>, vector<1x1x256xf32>
      %87 = vector.shape_cast %86 : vector<1x1x256xf32> to vector<1x256xf32>
      %c5 = arith.constant 5 : index
      %c0_50 = arith.constant 0 : index
      %88 = vector.load %arg8[%c5, %c0_50] : memref<8x256xf32, #tpu.memory_space<vmem>>, vector<1x256xf32>
      tpu.vector_store %arg8[%c5, %c0_50], %87 {strides = array<i32>} : memref<8x256xf32, #tpu.memory_space<vmem>>, vector<1x256xf32>,
      %c6_i32_51 = arith.constant 6 : i32
      %89 = arith.addi %46, %c6_i32_51 : i32
      %90 = arith.index_cast %89 : i32 to index
      %91 = memref.load %arg2[%90] : memref<256xi32, #tpu.memory_space<smem>>
      %92 = arith.index_cast %91 : i32 to index
      %c0_52 = arith.constant 0 : index
      %c0_53 = arith.constant 0 : index
      %93 = vector.load %arg4[%92, %c0_52, %c0_53] : memref<64x1x256xf32, #tpu.memory_space<vmem>>, vector<1x1x256xf32>
      %94 = vector.shape_cast %93 : vector<1x1x256xf32> to vector<1x256xf32>
      %c6 = arith.constant 6 : index
      %c0_54 = arith.constant 0 : index
      %95 = vector.load %arg8[%c6, %c0_54] : memref<8x256xf32, #tpu.memory_space<vmem>>, vector<1x256xf32>
      tpu.vector_store %arg8[%c6, %c0_54], %94 {strides = array<i32>} : memref<8x256xf32, #tpu.memory_space<vmem>>, vector<1x256xf32>,
      %c7_i32_55 = arith.constant 7 : i32
      %96 = arith.addi %46, %c7_i32_55 : i32
      %97 = arith.index_cast %96 : i32 to index
      %98 = memref.load %arg2[%97] : memref<256xi32, #tpu.memory_space<smem>>
      %99 = arith.index_cast %98 : i32 to index
      %c0_56 = arith.constant 0 : index
      %c0_57 = arith.constant 0 : index
      %100 = vector.load %arg4[%99, %c0_56, %c0_57] : memref<64x1x256xf32, #tpu.memory_space<vmem>>, vector<1x1x256xf32>
      %101 = vector.shape_cast %100 : vector<1x1x256xf32> to vector<1x256xf32>
      %c7 = arith.constant 7 : index
      %c0_58 = arith.constant 0 : index
      %102 = vector.load %arg8[%c7, %c0_58] : memref<8x256xf32, #tpu.memory_space<vmem>>, vector<1x256xf32>
      tpu.vector_store %arg8[%c7, %c0_58], %101 {strides = array<i32>} : memref<8x256xf32, #tpu.memory_space<vmem>>, vector<1x256xf32>,
      %c0_59 = arith.constant 0 : index
      %c0_60 = arith.constant 0 : index
      %103 = vector.load %arg7[%c0_59, %c0_60] : memref<8x128xf32, #tpu.memory_space<vmem>>, vector<8x128xf32>
      %104 = arith.truncf %103 : vector<8x128xf32> to vector<8x128xbf16>
      %cst = arith.constant dense<0.000000e+00> : vector<8x256xf32>
      %105 = tpu.matmul %104, %3, %cst {dimension_numbers = #tpu.dot_dimension_numbers<[1], [0], [0], [1], [0, 0, 1, 1], [], []>} : vector<8x128xbf16>, vector<128x256xbf16>, vector<8x256xf32> -> vector<8x256xf32>
      %c0_61 = arith.constant 0 : index
      %c0_62 = arith.constant 0 : index
      %106 = vector.load %arg8[%c0_61, %c0_62] : memref<8x256xf32, #tpu.memory_space<vmem>>, vector<8x256xf32>
      %107 = arith.addf %105, %106 : vector<8x256xf32>
      %108 = vector.extract_strided_slice %107 {offsets = [0, 0], sizes = [8, 128], strides = [1, 1]} : vector<8x256xf32> to vector<8x128xf32>
      %109 = vector.extract_strided_slice %107 {offsets = [0, 128], sizes = [8, 128], strides = [1, 1]} : vector<8x256xf32> to vector<8x128xf32>
      %cst_63 = arith.constant dense<0xFF800000> : vector<8xf32>
      %110 = vector.multi_reduction <maximumf>, %109, %cst_63 [1] : vector<8x128xf32> to vector<8xf32>
      %111 = vector.shape_cast %110 : vector<8xf32> to vector<8x1xf32>
      %112 = vector.broadcast %111 : vector<8x1xf32> to vector<8x128xf32>
      %113 = arith.subf %109, %112 : vector<8x128xf32>
      %114 = math.exp %113 : vector<8x128xf32>
      %cst_64 = arith.constant dense<0.000000e+00> : vector<8xf32>
      %115 = vector.multi_reduction <add>, %114, %cst_64 [1] : vector<8x128xf32> to vector<8xf32>
      %116 = vector.shape_cast %115 : vector<8xf32> to vector<8x1xf32>
      %117 = math.log %116 : vector<8x1xf32>
      %118 = vector.broadcast %117 : vector<8x1xf32> to vector<8x128xf32>
      %119 = arith.subf %113, %118 : vector<8x128xf32>
      %c0_65 = arith.constant 0 : index
      %c0_66 = arith.constant 0 : index
      %c0_67 = arith.constant 0 : index
      %120 = vector.load %arg6[%c0_65, %c0_66, %c0_67] : memref<8x8x128xf32, #tpu.memory_space<vmem>>, vector<1x8x128xf32>
      %121 = vector.shape_cast %120 : vector<1x8x128xf32> to vector<8x128xf32>
      %122 = vector.shape_cast %119 : vector<8x128xf32> to vector<1x8x128xf32>
      tpu.vector_store %arg6[%c0_65, %c0_66, %c0_67], %122 {strides = array<i32>} : memref<8x8x128xf32, #tpu.memory_space<vmem>>, vector<1x8x128xf32>,
      %c0_68 = arith.constant 0 : index
      %c0_69 = arith.constant 0 : index
      %123 = vector.load %arg7[%c0_68, %c0_69] : memref<8x128xf32, #tpu.memory_space<vmem>>, vector<8x128xf32>
      tpu.vector_store %arg7[%c0_68, %c0_69], %108 {strides = array<i32>} : memref<8x128xf32, #tpu.memory_space<vmem>>, vector<8x128xf32>,
    } else {
    }
    %c8_i32_5 = arith.constant 8 : i32
    %10 = arith.muli %arg1, %c8_i32_5 : i32
    %c1_i32 = arith.constant 1 : i32
    %11 = arith.addi %10, %c1_i32 : i32
    %c10_i32_6 = arith.constant 10 : i32
    %12 = arith.cmpi slt, %11, %c10_i32_6 : i32
    %13 = arith.extui %12 : i1 to i32
    %c0_i32_7 = arith.constant 0 : i32
    %14 = arith.cmpi ne, %13, %c0_i32_7 : i32
    scf.if %14 {
      %c16_i32 = arith.constant 16 : i32
      %45 = arith.muli %11, %c16_i32 : i32
      %46 = arith.addi %45, %4 : i32
      %c0_i32_26 = arith.constant 0 : i32
      %47 = arith.addi %46, %c0_i32_26 : i32
      %48 = arith.index_cast %47 : i32 to index
      %49 = memref.load %arg2[%48] : memref<256xi32, #tpu.memory_space<smem>>
      %50 = arith.index_cast %49 : i32 to index
      %c0_27 = arith.constant 0 : index
      %c0_28 = arith.constant 0 : index
      %51 = vector.load %arg4[%50, %c0_27, %c0_28] : memref<64x1x256xf32, #tpu.memory_space<vmem>>, vector<1x1x256xf32>
      %52 = vector.shape_cast %51 : vector<1x1x256xf32> to vector<1x256xf32>
      %c0_29 = arith.constant 0 : index
      %c0_30 = arith.constant 0 : index
      %53 = vector.load %arg8[%c0_29, %c0_30] : memref<8x256xf32, #tpu.memory_space<vmem>>, vector<1x256xf32>
      tpu.vector_store %arg8[%c0_29, %c0_30], %52 {strides = array<i32>} : memref<8x256xf32, #tpu.memory_space<vmem>>, vector<1x256xf32>,
      %c1_i32_31 = arith.constant 1 : i32
      %54 = arith.addi %46, %c1_i32_31 : i32
      %55 = arith.index_cast %54 : i32 to index
      %56 = memref.load %arg2[%55] : memref<256xi32, #tpu.memory_space<smem>>
      %57 = arith.index_cast %56 : i32 to index
      %c0_32 = arith.constant 0 : index
      %c0_33 = arith.constant 0 : index
      %58 = vector.load %arg4[%57, %c0_32, %c0_33] : memref<64x1x256xf32, #tpu.memory_space<vmem>>, vector<1x1x256xf32>
      %59 = vector.shape_cast %58 : vector<1x1x256xf32> to vector<1x256xf32>
      %c1 = arith.constant 1 : index
      %c0_34 = arith.constant 0 : index
      %60 = vector.load %arg8[%c1, %c0_34] : memref<8x256xf32, #tpu.memory_space<vmem>>, vector<1x256xf32>
      tpu.vector_store %arg8[%c1, %c0_34], %59 {strides = array<i32>} : memref<8x256xf32, #tpu.memory_space<vmem>>, vector<1x256xf32>,
      %c2_i32_35 = arith.constant 2 : i32
      %61 = arith.addi %46, %c2_i32_35 : i32
      %62 = arith.index_cast %61 : i32 to index
      %63 = memref.load %arg2[%62] : memref<256xi32, #tpu.memory_space<smem>>
      %64 = arith.index_cast %63 : i32 to index
      %c0_36 = arith.constant 0 : index
      %c0_37 = arith.constant 0 : index
      %65 = vector.load %arg4[%64, %c0_36, %c0_37] : memref<64x1x256xf32, #tpu.memory_space<vmem>>, vector<1x1x256xf32>
      %66 = vector.shape_cast %65 : vector<1x1x256xf32> to vector<1x256xf32>
      %c2 = arith.constant 2 : index
      %c0_38 = arith.constant 0 : index
      %67 = vector.load %arg8[%c2, %c0_38] : memref<8x256xf32, #tpu.memory_space<vmem>>, vector<1x256xf32>
      tpu.vector_store %arg8[%c2, %c0_38], %66 {strides = array<i32>} : memref<8x256xf32, #tpu.memory_space<vmem>>, vector<1x256xf32>,
      %c3_i32_39 = arith.constant 3 : i32
      %68 = arith.addi %46, %c3_i32_39 : i32
      %69 = arith.index_cast %68 : i32 to index
      %70 = memref.load %arg2[%69] : memref<256xi32, #tpu.memory_space<smem>>
      %71 = arith.index_cast %70 : i32 to index
      %c0_40 = arith.constant 0 : index
      %c0_41 = arith.constant 0 : index
      %72 = vector.load %arg4[%71, %c0_40, %c0_41] : memref<64x1x256xf32, #tpu.memory_space<vmem>>, vector<1x1x256xf32>
      %73 = vector.shape_cast %72 : vector<1x1x256xf32> to vector<1x256xf32>
      %c3 = arith.constant 3 : index
      %c0_42 = arith.constant 0 : index
      %74 = vector.load %arg8[%c3, %c0_42] : memref<8x256xf32, #tpu.memory_space<vmem>>, vector<1x256xf32>
      tpu.vector_store %arg8[%c3, %c0_42], %73 {strides = array<i32>} : memref<8x256xf32, #tpu.memory_space<vmem>>, vector<1x256xf32>,
      %c4_i32_43 = arith.constant 4 : i32
      %75 = arith.addi %46, %c4_i32_43 : i32
      %76 = arith.index_cast %75 : i32 to index
      %77 = memref.load %arg2[%76] : memref<256xi32, #tpu.memory_space<smem>>
      %78 = arith.index_cast %77 : i32 to index
      %c0_44 = arith.constant 0 : index
      %c0_45 = arith.constant 0 : index
      %79 = vector.load %arg4[%78, %c0_44, %c0_45] : memref<64x1x256xf32, #tpu.memory_space<vmem>>, vector<1x1x256xf32>
      %80 = vector.shape_cast %79 : vector<1x1x256xf32> to vector<1x256xf32>
      %c4 = arith.constant 4 : index
      %c0_46 = arith.constant 0 : index
      %81 = vector.load %arg8[%c4, %c0_46] : memref<8x256xf32, #tpu.memory_space<vmem>>, vector<1x256xf32>
      tpu.vector_store %arg8[%c4, %c0_46], %80 {strides = array<i32>} : memref<8x256xf32, #tpu.memory_space<vmem>>, vector<1x256xf32>,
      %c5_i32_47 = arith.constant 5 : i32
      %82 = arith.addi %46, %c5_i32_47 : i32
      %83 = arith.index_cast %82 : i32 to index
      %84 = memref.load %arg2[%83] : memref<256xi32, #tpu.memory_space<smem>>
      %85 = arith.index_cast %84 : i32 to index
      %c0_48 = arith.constant 0 : index
      %c0_49 = arith.constant 0 : index
      %86 = vector.load %arg4[%85, %c0_48, %c0_49] : memref<64x1x256xf32, #tpu.memory_space<vmem>>, vector<1x1x256xf32>
      %87 = vector.shape_cast %86 : vector<1x1x256xf32> to vector<1x256xf32>
      %c5 = arith.constant 5 : index
      %c0_50 = arith.constant 0 : index
      %88 = vector.load %arg8[%c5, %c0_50] : memref<8x256xf32, #tpu.memory_space<vmem>>, vector<1x256xf32>
      tpu.vector_store %arg8[%c5, %c0_50], %87 {strides = array<i32>} : memref<8x256xf32, #tpu.memory_space<vmem>>, vector<1x256xf32>,
      %c6_i32_51 = arith.constant 6 : i32
      %89 = arith.addi %46, %c6_i32_51 : i32
      %90 = arith.index_cast %89 : i32 to index
      %91 = memref.load %arg2[%90] : memref<256xi32, #tpu.memory_space<smem>>
      %92 = arith.index_cast %91 : i32 to index
      %c0_52 = arith.constant 0 : index
      %c0_53 = arith.constant 0 : index
      %93 = vector.load %arg4[%92, %c0_52, %c0_53] : memref<64x1x256xf32, #tpu.memory_space<vmem>>, vector<1x1x256xf32>
      %94 = vector.shape_cast %93 : vector<1x1x256xf32> to vector<1x256xf32>
      %c6 = arith.constant 6 : index
      %c0_54 = arith.constant 0 : index
      %95 = vector.load %arg8[%c6, %c0_54] : memref<8x256xf32, #tpu.memory_space<vmem>>, vector<1x256xf32>
      tpu.vector_store %arg8[%c6, %c0_54], %94 {strides = array<i32>} : memref<8x256xf32, #tpu.memory_space<vmem>>, vector<1x256xf32>,
      %c7_i32_55 = arith.constant 7 : i32
      %96 = arith.addi %46, %c7_i32_55 : i32
      %97 = arith.index_cast %96 : i32 to index
      %98 = memref.load %arg2[%97] : memref<256xi32, #tpu.memory_space<smem>>
      %99 = arith.index_cast %98 : i32 to index
      %c0_56 = arith.constant 0 : index
      %c0_57 = arith.constant 0 : index
      %100 = vector.load %arg4[%99, %c0_56, %c0_57] : memref<64x1x256xf32, #tpu.memory_space<vmem>>, vector<1x1x256xf32>
      %101 = vector.shape_cast %100 : vector<1x1x256xf32> to vector<1x256xf32>
      %c7 = arith.constant 7 : index
      %c0_58 = arith.constant 0 : index
      %102 = vector.load %arg8[%c7, %c0_58] : memref<8x256xf32, #tpu.memory_space<vmem>>, vector<1x256xf32>
      tpu.vector_store %arg8[%c7, %c0_58], %101 {strides = array<i32>} : memref<8x256xf32, #tpu.memory_space<vmem>>, vector<1x256xf32>,
      %c0_59 = arith.constant 0 : index
      %c0_60 = arith.constant 0 : index
      %103 = vector.load %arg7[%c0_59, %c0_60] : memref<8x128xf32, #tpu.memory_space<vmem>>, vector<8x128xf32>
      %104 = arith.truncf %103 : vector<8x128xf32> to vector<8x128xbf16>
      %cst = arith.constant dense<0.000000e+00> : vector<8x256xf32>
      %105 = tpu.matmul %104, %3, %cst {dimension_numbers = #tpu.dot_dimension_numbers<[1], [0], [0], [1], [0, 0, 1, 1], [], []>} : vector<8x128xbf16>, vector<128x256xbf16>, vector<8x256xf32> -> vector<8x256xf32>
      %c0_61 = arith.constant 0 : index
      %c0_62 = arith.constant 0 : index
      %106 = vector.load %arg8[%c0_61, %c0_62] : memref<8x256xf32, #tpu.memory_space<vmem>>, vector<8x256xf32>
      %107 = arith.addf %105, %106 : vector<8x256xf32>
      %108 = vector.extract_strided_slice %107 {offsets = [0, 0], sizes = [8, 128], strides = [1, 1]} : vector<8x256xf32> to vector<8x128xf32>
      %109 = vector.extract_strided_slice %107 {offsets = [0, 128], sizes = [8, 128], strides = [1, 1]} : vector<8x256xf32> to vector<8x128xf32>
      %cst_63 = arith.constant dense<0xFF800000> : vector<8xf32>
      %110 = vector.multi_reduction <maximumf>, %109, %cst_63 [1] : vector<8x128xf32> to vector<8xf32>
      %111 = vector.shape_cast %110 : vector<8xf32> to vector<8x1xf32>
      %112 = vector.broadcast %111 : vector<8x1xf32> to vector<8x128xf32>
      %113 = arith.subf %109, %112 : vector<8x128xf32>
      %114 = math.exp %113 : vector<8x128xf32>
      %cst_64 = arith.constant dense<0.000000e+00> : vector<8xf32>
      %115 = vector.multi_reduction <add>, %114, %cst_64 [1] : vector<8x128xf32> to vector<8xf32>
      %116 = vector.shape_cast %115 : vector<8xf32> to vector<8x1xf32>
      %117 = math.log %116 : vector<8x1xf32>
      %118 = vector.broadcast %117 : vector<8x1xf32> to vector<8x128xf32>
      %119 = arith.subf %113, %118 : vector<8x128xf32>
      %c1_65 = arith.constant 1 : index
      %c0_66 = arith.constant 0 : index
      %c0_67 = arith.constant 0 : index
      %120 = vector.load %arg6[%c1_65, %c0_66, %c0_67] : memref<8x8x128xf32, #tpu.memory_space<vmem>>, vector<1x8x128xf32>
      %121 = vector.shape_cast %120 : vector<1x8x128xf32> to vector<8x128xf32>
      %122 = vector.shape_cast %119 : vector<8x128xf32> to vector<1x8x128xf32>
      tpu.vector_store %arg6[%c1_65, %c0_66, %c0_67], %122 {strides = array<i32>} : memref<8x8x128xf32, #tpu.memory_space<vmem>>, vector<1x8x128xf32>,
      %c0_68 = arith.constant 0 : index
      %c0_69 = arith.constant 0 : index
      %123 = vector.load %arg7[%c0_68, %c0_69] : memref<8x128xf32, #tpu.memory_space<vmem>>, vector<8x128xf32>
      tpu.vector_store %arg7[%c0_68, %c0_69], %108 {strides = array<i32>} : memref<8x128xf32, #tpu.memory_space<vmem>>, vector<8x128xf32>,
    } else {
    }
    %c8_i32_8 = arith.constant 8 : i32
    %15 = arith.muli %arg1, %c8_i32_8 : i32
    %c2_i32 = arith.constant 2 : i32
    %16 = arith.addi %15, %c2_i32 : i32
    %c10_i32_9 = arith.constant 10 : i32
    %17 = arith.cmpi slt, %16, %c10_i32_9 : i32
    %18 = arith.extui %17 : i1 to i32
    %c0_i32_10 = arith.constant 0 : i32
    %19 = arith.cmpi ne, %18, %c0_i32_10 : i32
    scf.if %19 {
      %c16_i32 = arith.constant 16 : i32
      %45 = arith.muli %16, %c16_i32 : i32
      %46 = arith.addi %45, %4 : i32
      %c0_i32_26 = arith.constant 0 : i32
      %47 = arith.addi %46, %c0_i32_26 : i32
      %48 = arith.index_cast %47 : i32 to index
      %49 = memref.load %arg2[%48] : memref<256xi32, #tpu.memory_space<smem>>
      %50 = arith.index_cast %49 : i32 to index
      %c0_27 = arith.constant 0 : index
      %c0_28 = arith.constant 0 : index
      %51 = vector.load %arg4[%50, %c0_27, %c0_28] : memref<64x1x256xf32, #tpu.memory_space<vmem>>, vector<1x1x256xf32>
      %52 = vector.shape_cast %51 : vector<1x1x256xf32> to vector<1x256xf32>
      %c0_29 = arith.constant 0 : index
      %c0_30 = arith.constant 0 : index
      %53 = vector.load %arg8[%c0_29, %c0_30] : memref<8x256xf32, #tpu.memory_space<vmem>>, vector<1x256xf32>
      tpu.vector_store %arg8[%c0_29, %c0_30], %52 {strides = array<i32>} : memref<8x256xf32, #tpu.memory_space<vmem>>, vector<1x256xf32>,
      %c1_i32_31 = arith.constant 1 : i32
      %54 = arith.addi %46, %c1_i32_31 : i32
      %55 = arith.index_cast %54 : i32 to index
      %56 = memref.load %arg2[%55] : memref<256xi32, #tpu.memory_space<smem>>
      %57 = arith.index_cast %56 : i32 to index
      %c0_32 = arith.constant 0 : index
      %c0_33 = arith.constant 0 : index
      %58 = vector.load %arg4[%57, %c0_32, %c0_33] : memref<64x1x256xf32, #tpu.memory_space<vmem>>, vector<1x1x256xf32>
      %59 = vector.shape_cast %58 : vector<1x1x256xf32> to vector<1x256xf32>
      %c1 = arith.constant 1 : index
      %c0_34 = arith.constant 0 : index
      %60 = vector.load %arg8[%c1, %c0_34] : memref<8x256xf32, #tpu.memory_space<vmem>>, vector<1x256xf32>
      tpu.vector_store %arg8[%c1, %c0_34], %59 {strides = array<i32>} : memref<8x256xf32, #tpu.memory_space<vmem>>, vector<1x256xf32>,
      %c2_i32_35 = arith.constant 2 : i32
      %61 = arith.addi %46, %c2_i32_35 : i32
      %62 = arith.index_cast %61 : i32 to index
      %63 = memref.load %arg2[%62] : memref<256xi32, #tpu.memory_space<smem>>
      %64 = arith.index_cast %63 : i32 to index
      %c0_36 = arith.constant 0 : index
      %c0_37 = arith.constant 0 : index
      %65 = vector.load %arg4[%64, %c0_36, %c0_37] : memref<64x1x256xf32, #tpu.memory_space<vmem>>, vector<1x1x256xf32>
      %66 = vector.shape_cast %65 : vector<1x1x256xf32> to vector<1x256xf32>
      %c2 = arith.constant 2 : index
      %c0_38 = arith.constant 0 : index
      %67 = vector.load %arg8[%c2, %c0_38] : memref<8x256xf32, #tpu.memory_space<vmem>>, vector<1x256xf32>
      tpu.vector_store %arg8[%c2, %c0_38], %66 {strides = array<i32>} : memref<8x256xf32, #tpu.memory_space<vmem>>, vector<1x256xf32>,
      %c3_i32_39 = arith.constant 3 : i32
      %68 = arith.addi %46, %c3_i32_39 : i32
      %69 = arith.index_cast %68 : i32 to index
      %70 = memref.load %arg2[%69] : memref<256xi32, #tpu.memory_space<smem>>
      %71 = arith.index_cast %70 : i32 to index
      %c0_40 = arith.constant 0 : index
      %c0_41 = arith.constant 0 : index
      %72 = vector.load %arg4[%71, %c0_40, %c0_41] : memref<64x1x256xf32, #tpu.memory_space<vmem>>, vector<1x1x256xf32>
      %73 = vector.shape_cast %72 : vector<1x1x256xf32> to vector<1x256xf32>
      %c3 = arith.constant 3 : index
      %c0_42 = arith.constant 0 : index
      %74 = vector.load %arg8[%c3, %c0_42] : memref<8x256xf32, #tpu.memory_space<vmem>>, vector<1x256xf32>
      tpu.vector_store %arg8[%c3, %c0_42], %73 {strides = array<i32>} : memref<8x256xf32, #tpu.memory_space<vmem>>, vector<1x256xf32>,
      %c4_i32_43 = arith.constant 4 : i32
      %75 = arith.addi %46, %c4_i32_43 : i32
      %76 = arith.index_cast %75 : i32 to index
      %77 = memref.load %arg2[%76] : memref<256xi32, #tpu.memory_space<smem>>
      %78 = arith.index_cast %77 : i32 to index
      %c0_44 = arith.constant 0 : index
      %c0_45 = arith.constant 0 : index
      %79 = vector.load %arg4[%78, %c0_44, %c0_45] : memref<64x1x256xf32, #tpu.memory_space<vmem>>, vector<1x1x256xf32>
      %80 = vector.shape_cast %79 : vector<1x1x256xf32> to vector<1x256xf32>
      %c4 = arith.constant 4 : index
      %c0_46 = arith.constant 0 : index
      %81 = vector.load %arg8[%c4, %c0_46] : memref<8x256xf32, #tpu.memory_space<vmem>>, vector<1x256xf32>
      tpu.vector_store %arg8[%c4, %c0_46], %80 {strides = array<i32>} : memref<8x256xf32, #tpu.memory_space<vmem>>, vector<1x256xf32>,
      %c5_i32_47 = arith.constant 5 : i32
      %82 = arith.addi %46, %c5_i32_47 : i32
      %83 = arith.index_cast %82 : i32 to index
      %84 = memref.load %arg2[%83] : memref<256xi32, #tpu.memory_space<smem>>
      %85 = arith.index_cast %84 : i32 to index
      %c0_48 = arith.constant 0 : index
      %c0_49 = arith.constant 0 : index
      %86 = vector.load %arg4[%85, %c0_48, %c0_49] : memref<64x1x256xf32, #tpu.memory_space<vmem>>, vector<1x1x256xf32>
      %87 = vector.shape_cast %86 : vector<1x1x256xf32> to vector<1x256xf32>
      %c5 = arith.constant 5 : index
      %c0_50 = arith.constant 0 : index
      %88 = vector.load %arg8[%c5, %c0_50] : memref<8x256xf32, #tpu.memory_space<vmem>>, vector<1x256xf32>
      tpu.vector_store %arg8[%c5, %c0_50], %87 {strides = array<i32>} : memref<8x256xf32, #tpu.memory_space<vmem>>, vector<1x256xf32>,
      %c6_i32_51 = arith.constant 6 : i32
      %89 = arith.addi %46, %c6_i32_51 : i32
      %90 = arith.index_cast %89 : i32 to index
      %91 = memref.load %arg2[%90] : memref<256xi32, #tpu.memory_space<smem>>
      %92 = arith.index_cast %91 : i32 to index
      %c0_52 = arith.constant 0 : index
      %c0_53 = arith.constant 0 : index
      %93 = vector.load %arg4[%92, %c0_52, %c0_53] : memref<64x1x256xf32, #tpu.memory_space<vmem>>, vector<1x1x256xf32>
      %94 = vector.shape_cast %93 : vector<1x1x256xf32> to vector<1x256xf32>
      %c6 = arith.constant 6 : index
      %c0_54 = arith.constant 0 : index
      %95 = vector.load %arg8[%c6, %c0_54] : memref<8x256xf32, #tpu.memory_space<vmem>>, vector<1x256xf32>
      tpu.vector_store %arg8[%c6, %c0_54], %94 {strides = array<i32>} : memref<8x256xf32, #tpu.memory_space<vmem>>, vector<1x256xf32>,
      %c7_i32_55 = arith.constant 7 : i32
      %96 = arith.addi %46, %c7_i32_55 : i32
      %97 = arith.index_cast %96 : i32 to index
      %98 = memref.load %arg2[%97] : memref<256xi32, #tpu.memory_space<smem>>
      %99 = arith.index_cast %98 : i32 to index
      %c0_56 = arith.constant 0 : index
      %c0_57 = arith.constant 0 : index
      %100 = vector.load %arg4[%99, %c0_56, %c0_57] : memref<64x1x256xf32, #tpu.memory_space<vmem>>, vector<1x1x256xf32>
      %101 = vector.shape_cast %100 : vector<1x1x256xf32> to vector<1x256xf32>
      %c7 = arith.constant 7 : index
      %c0_58 = arith.constant 0 : index
      %102 = vector.load %arg8[%c7, %c0_58] : memref<8x256xf32, #tpu.memory_space<vmem>>, vector<1x256xf32>
      tpu.vector_store %arg8[%c7, %c0_58], %101 {strides = array<i32>} : memref<8x256xf32, #tpu.memory_space<vmem>>, vector<1x256xf32>,
      %c0_59 = arith.constant 0 : index
      %c0_60 = arith.constant 0 : index
      %103 = vector.load %arg7[%c0_59, %c0_60] : memref<8x128xf32, #tpu.memory_space<vmem>>, vector<8x128xf32>
      %104 = arith.truncf %103 : vector<8x128xf32> to vector<8x128xbf16>
      %cst = arith.constant dense<0.000000e+00> : vector<8x256xf32>
      %105 = tpu.matmul %104, %3, %cst {dimension_numbers = #tpu.dot_dimension_numbers<[1], [0], [0], [1], [0, 0, 1, 1], [], []>} : vector<8x128xbf16>, vector<128x256xbf16>, vector<8x256xf32> -> vector<8x256xf32>
      %c0_61 = arith.constant 0 : index
      %c0_62 = arith.constant 0 : index
      %106 = vector.load %arg8[%c0_61, %c0_62] : memref<8x256xf32, #tpu.memory_space<vmem>>, vector<8x256xf32>
      %107 = arith.addf %105, %106 : vector<8x256xf32>
      %108 = vector.extract_strided_slice %107 {offsets = [0, 0], sizes = [8, 128], strides = [1, 1]} : vector<8x256xf32> to vector<8x128xf32>
      %109 = vector.extract_strided_slice %107 {offsets = [0, 128], sizes = [8, 128], strides = [1, 1]} : vector<8x256xf32> to vector<8x128xf32>
      %cst_63 = arith.constant dense<0xFF800000> : vector<8xf32>
      %110 = vector.multi_reduction <maximumf>, %109, %cst_63 [1] : vector<8x128xf32> to vector<8xf32>
      %111 = vector.shape_cast %110 : vector<8xf32> to vector<8x1xf32>
      %112 = vector.broadcast %111 : vector<8x1xf32> to vector<8x128xf32>
      %113 = arith.subf %109, %112 : vector<8x128xf32>
      %114 = math.exp %113 : vector<8x128xf32>
      %cst_64 = arith.constant dense<0.000000e+00> : vector<8xf32>
      %115 = vector.multi_reduction <add>, %114, %cst_64 [1] : vector<8x128xf32> to vector<8xf32>
      %116 = vector.shape_cast %115 : vector<8xf32> to vector<8x1xf32>
      %117 = math.log %116 : vector<8x1xf32>
      %118 = vector.broadcast %117 : vector<8x1xf32> to vector<8x128xf32>
      %119 = arith.subf %113, %118 : vector<8x128xf32>
      %c2_65 = arith.constant 2 : index
      %c0_66 = arith.constant 0 : index
      %c0_67 = arith.constant 0 : index
      %120 = vector.load %arg6[%c2_65, %c0_66, %c0_67] : memref<8x8x128xf32, #tpu.memory_space<vmem>>, vector<1x8x128xf32>
      %121 = vector.shape_cast %120 : vector<1x8x128xf32> to vector<8x128xf32>
      %122 = vector.shape_cast %119 : vector<8x128xf32> to vector<1x8x128xf32>
      tpu.vector_store %arg6[%c2_65, %c0_66, %c0_67], %122 {strides = array<i32>} : memref<8x8x128xf32, #tpu.memory_space<vmem>>, vector<1x8x128xf32>,
      %c0_68 = arith.constant 0 : index
      %c0_69 = arith.constant 0 : index
      %123 = vector.load %arg7[%c0_68, %c0_69] : memref<8x128xf32, #tpu.memory_space<vmem>>, vector<8x128xf32>
      tpu.vector_store %arg7[%c0_68, %c0_69], %108 {strides = array<i32>} : memref<8x128xf32, #tpu.memory_space<vmem>>, vector<8x128xf32>,
    } else {
    }
    %c8_i32_11 = arith.constant 8 : i32
    %20 = arith.muli %arg1, %c8_i32_11 : i32
    %c3_i32 = arith.constant 3 : i32
    %21 = arith.addi %20, %c3_i32 : i32
    %c10_i32_12 = arith.constant 10 : i32
    %22 = arith.cmpi slt, %21, %c10_i32_12 : i32
    %23 = arith.extui %22 : i1 to i32
    %c0_i32_13 = arith.constant 0 : i32
    %24 = arith.cmpi ne, %23, %c0_i32_13 : i32
    scf.if %24 {
      %c16_i32 = arith.constant 16 : i32
      %45 = arith.muli %21, %c16_i32 : i32
      %46 = arith.addi %45, %4 : i32
      %c0_i32_26 = arith.constant 0 : i32
      %47 = arith.addi %46, %c0_i32_26 : i32
      %48 = arith.index_cast %47 : i32 to index
      %49 = memref.load %arg2[%48] : memref<256xi32, #tpu.memory_space<smem>>
      %50 = arith.index_cast %49 : i32 to index
      %c0_27 = arith.constant 0 : index
      %c0_28 = arith.constant 0 : index
      %51 = vector.load %arg4[%50, %c0_27, %c0_28] : memref<64x1x256xf32, #tpu.memory_space<vmem>>, vector<1x1x256xf32>
      %52 = vector.shape_cast %51 : vector<1x1x256xf32> to vector<1x256xf32>
      %c0_29 = arith.constant 0 : index
      %c0_30 = arith.constant 0 : index
      %53 = vector.load %arg8[%c0_29, %c0_30] : memref<8x256xf32, #tpu.memory_space<vmem>>, vector<1x256xf32>
      tpu.vector_store %arg8[%c0_29, %c0_30], %52 {strides = array<i32>} : memref<8x256xf32, #tpu.memory_space<vmem>>, vector<1x256xf32>,
      %c1_i32_31 = arith.constant 1 : i32
      %54 = arith.addi %46, %c1_i32_31 : i32
      %55 = arith.index_cast %54 : i32 to index
      %56 = memref.load %arg2[%55] : memref<256xi32, #tpu.memory_space<smem>>
      %57 = arith.index_cast %56 : i32 to index
      %c0_32 = arith.constant 0 : index
      %c0_33 = arith.constant 0 : index
      %58 = vector.load %arg4[%57, %c0_32, %c0_33] : memref<64x1x256xf32, #tpu.memory_space<vmem>>, vector<1x1x256xf32>
      %59 = vector.shape_cast %58 : vector<1x1x256xf32> to vector<1x256xf32>
      %c1 = arith.constant 1 : index
      %c0_34 = arith.constant 0 : index
      %60 = vector.load %arg8[%c1, %c0_34] : memref<8x256xf32, #tpu.memory_space<vmem>>, vector<1x256xf32>
      tpu.vector_store %arg8[%c1, %c0_34], %59 {strides = array<i32>} : memref<8x256xf32, #tpu.memory_space<vmem>>, vector<1x256xf32>,
      %c2_i32_35 = arith.constant 2 : i32
      %61 = arith.addi %46, %c2_i32_35 : i32
      %62 = arith.index_cast %61 : i32 to index
      %63 = memref.load %arg2[%62] : memref<256xi32, #tpu.memory_space<smem>>
      %64 = arith.index_cast %63 : i32 to index
      %c0_36 = arith.constant 0 : index
      %c0_37 = arith.constant 0 : index
      %65 = vector.load %arg4[%64, %c0_36, %c0_37] : memref<64x1x256xf32, #tpu.memory_space<vmem>>, vector<1x1x256xf32>
      %66 = vector.shape_cast %65 : vector<1x1x256xf32> to vector<1x256xf32>
      %c2 = arith.constant 2 : index
      %c0_38 = arith.constant 0 : index
      %67 = vector.load %arg8[%c2, %c0_38] : memref<8x256xf32, #tpu.memory_space<vmem>>, vector<1x256xf32>
      tpu.vector_store %arg8[%c2, %c0_38], %66 {strides = array<i32>} : memref<8x256xf32, #tpu.memory_space<vmem>>, vector<1x256xf32>,
      %c3_i32_39 = arith.constant 3 : i32
      %68 = arith.addi %46, %c3_i32_39 : i32
      %69 = arith.index_cast %68 : i32 to index
      %70 = memref.load %arg2[%69] : memref<256xi32, #tpu.memory_space<smem>>
      %71 = arith.index_cast %70 : i32 to index
      %c0_40 = arith.constant 0 : index
      %c0_41 = arith.constant 0 : index
      %72 = vector.load %arg4[%71, %c0_40, %c0_41] : memref<64x1x256xf32, #tpu.memory_space<vmem>>, vector<1x1x256xf32>
      %73 = vector.shape_cast %72 : vector<1x1x256xf32> to vector<1x256xf32>
      %c3 = arith.constant 3 : index
      %c0_42 = arith.constant 0 : index
      %74 = vector.load %arg8[%c3, %c0_42] : memref<8x256xf32, #tpu.memory_space<vmem>>, vector<1x256xf32>
      tpu.vector_store %arg8[%c3, %c0_42], %73 {strides = array<i32>} : memref<8x256xf32, #tpu.memory_space<vmem>>, vector<1x256xf32>,
      %c4_i32_43 = arith.constant 4 : i32
      %75 = arith.addi %46, %c4_i32_43 : i32
      %76 = arith.index_cast %75 : i32 to index
      %77 = memref.load %arg2[%76] : memref<256xi32, #tpu.memory_space<smem>>
      %78 = arith.index_cast %77 : i32 to index
      %c0_44 = arith.constant 0 : index
      %c0_45 = arith.constant 0 : index
      %79 = vector.load %arg4[%78, %c0_44, %c0_45] : memref<64x1x256xf32, #tpu.memory_space<vmem>>, vector<1x1x256xf32>
      %80 = vector.shape_cast %79 : vector<1x1x256xf32> to vector<1x256xf32>
      %c4 = arith.constant 4 : index
      %c0_46 = arith.constant 0 : index
      %81 = vector.load %arg8[%c4, %c0_46] : memref<8x256xf32, #tpu.memory_space<vmem>>, vector<1x256xf32>
      tpu.vector_store %arg8[%c4, %c0_46], %80 {strides = array<i32>} : memref<8x256xf32, #tpu.memory_space<vmem>>, vector<1x256xf32>,
      %c5_i32_47 = arith.constant 5 : i32
      %82 = arith.addi %46, %c5_i32_47 : i32
      %83 = arith.index_cast %82 : i32 to index
      %84 = memref.load %arg2[%83] : memref<256xi32, #tpu.memory_space<smem>>
      %85 = arith.index_cast %84 : i32 to index
      %c0_48 = arith.constant 0 : index
      %c0_49 = arith.constant 0 : index
      %86 = vector.load %arg4[%85, %c0_48, %c0_49] : memref<64x1x256xf32, #tpu.memory_space<vmem>>, vector<1x1x256xf32>
      %87 = vector.shape_cast %86 : vector<1x1x256xf32> to vector<1x256xf32>
      %c5 = arith.constant 5 : index
      %c0_50 = arith.constant 0 : index
      %88 = vector.load %arg8[%c5, %c0_50] : memref<8x256xf32, #tpu.memory_space<vmem>>, vector<1x256xf32>
      tpu.vector_store %arg8[%c5, %c0_50], %87 {strides = array<i32>} : memref<8x256xf32, #tpu.memory_space<vmem>>, vector<1x256xf32>,
      %c6_i32_51 = arith.constant 6 : i32
      %89 = arith.addi %46, %c6_i32_51 : i32
      %90 = arith.index_cast %89 : i32 to index
      %91 = memref.load %arg2[%90] : memref<256xi32, #tpu.memory_space<smem>>
      %92 = arith.index_cast %91 : i32 to index
      %c0_52 = arith.constant 0 : index
      %c0_53 = arith.constant 0 : index
      %93 = vector.load %arg4[%92, %c0_52, %c0_53] : memref<64x1x256xf32, #tpu.memory_space<vmem>>, vector<1x1x256xf32>
      %94 = vector.shape_cast %93 : vector<1x1x256xf32> to vector<1x256xf32>
      %c6 = arith.constant 6 : index
      %c0_54 = arith.constant 0 : index
      %95 = vector.load %arg8[%c6, %c0_54] : memref<8x256xf32, #tpu.memory_space<vmem>>, vector<1x256xf32>
      tpu.vector_store %arg8[%c6, %c0_54], %94 {strides = array<i32>} : memref<8x256xf32, #tpu.memory_space<vmem>>, vector<1x256xf32>,
      %c7_i32_55 = arith.constant 7 : i32
      %96 = arith.addi %46, %c7_i32_55 : i32
      %97 = arith.index_cast %96 : i32 to index
      %98 = memref.load %arg2[%97] : memref<256xi32, #tpu.memory_space<smem>>
      %99 = arith.index_cast %98 : i32 to index
      %c0_56 = arith.constant 0 : index
      %c0_57 = arith.constant 0 : index
      %100 = vector.load %arg4[%99, %c0_56, %c0_57] : memref<64x1x256xf32, #tpu.memory_space<vmem>>, vector<1x1x256xf32>
      %101 = vector.shape_cast %100 : vector<1x1x256xf32> to vector<1x256xf32>
      %c7 = arith.constant 7 : index
      %c0_58 = arith.constant 0 : index
      %102 = vector.load %arg8[%c7, %c0_58] : memref<8x256xf32, #tpu.memory_space<vmem>>, vector<1x256xf32>
      tpu.vector_store %arg8[%c7, %c0_58], %101 {strides = array<i32>} : memref<8x256xf32, #tpu.memory_space<vmem>>, vector<1x256xf32>,
      %c0_59 = arith.constant 0 : index
      %c0_60 = arith.constant 0 : index
      %103 = vector.load %arg7[%c0_59, %c0_60] : memref<8x128xf32, #tpu.memory_space<vmem>>, vector<8x128xf32>
      %104 = arith.truncf %103 : vector<8x128xf32> to vector<8x128xbf16>
      %cst = arith.constant dense<0.000000e+00> : vector<8x256xf32>
      %105 = tpu.matmul %104, %3, %cst {dimension_numbers = #tpu.dot_dimension_numbers<[1], [0], [0], [1], [0, 0, 1, 1], [], []>} : vector<8x128xbf16>, vector<128x256xbf16>, vector<8x256xf32> -> vector<8x256xf32>
      %c0_61 = arith.constant 0 : index
      %c0_62 = arith.constant 0 : index
      %106 = vector.load %arg8[%c0_61, %c0_62] : memref<8x256xf32, #tpu.memory_space<vmem>>, vector<8x256xf32>
      %107 = arith.addf %105, %106 : vector<8x256xf32>
      %108 = vector.extract_strided_slice %107 {offsets = [0, 0], sizes = [8, 128], strides = [1, 1]} : vector<8x256xf32> to vector<8x128xf32>
      %109 = vector.extract_strided_slice %107 {offsets = [0, 128], sizes = [8, 128], strides = [1, 1]} : vector<8x256xf32> to vector<8x128xf32>
      %cst_63 = arith.constant dense<0xFF800000> : vector<8xf32>
      %110 = vector.multi_reduction <maximumf>, %109, %cst_63 [1] : vector<8x128xf32> to vector<8xf32>
      %111 = vector.shape_cast %110 : vector<8xf32> to vector<8x1xf32>
      %112 = vector.broadcast %111 : vector<8x1xf32> to vector<8x128xf32>
      %113 = arith.subf %109, %112 : vector<8x128xf32>
      %114 = math.exp %113 : vector<8x128xf32>
      %cst_64 = arith.constant dense<0.000000e+00> : vector<8xf32>
      %115 = vector.multi_reduction <add>, %114, %cst_64 [1] : vector<8x128xf32> to vector<8xf32>
      %116 = vector.shape_cast %115 : vector<8xf32> to vector<8x1xf32>
      %117 = math.log %116 : vector<8x1xf32>
      %118 = vector.broadcast %117 : vector<8x1xf32> to vector<8x128xf32>
      %119 = arith.subf %113, %118 : vector<8x128xf32>
      %c3_65 = arith.constant 3 : index
      %c0_66 = arith.constant 0 : index
      %c0_67 = arith.constant 0 : index
      %120 = vector.load %arg6[%c3_65, %c0_66, %c0_67] : memref<8x8x128xf32, #tpu.memory_space<vmem>>, vector<1x8x128xf32>
      %121 = vector.shape_cast %120 : vector<1x8x128xf32> to vector<8x128xf32>
      %122 = vector.shape_cast %119 : vector<8x128xf32> to vector<1x8x128xf32>
      tpu.vector_store %arg6[%c3_65, %c0_66, %c0_67], %122 {strides = array<i32>} : memref<8x8x128xf32, #tpu.memory_space<vmem>>, vector<1x8x128xf32>,
      %c0_68 = arith.constant 0 : index
      %c0_69 = arith.constant 0 : index
      %123 = vector.load %arg7[%c0_68, %c0_69] : memref<8x128xf32, #tpu.memory_space<vmem>>, vector<8x128xf32>
      tpu.vector_store %arg7[%c0_68, %c0_69], %108 {strides = array<i32>} : memref<8x128xf32, #tpu.memory_space<vmem>>, vector<8x128xf32>,
    } else {
    }
    %c8_i32_14 = arith.constant 8 : i32
    %25 = arith.muli %arg1, %c8_i32_14 : i32
    %c4_i32 = arith.constant 4 : i32
    %26 = arith.addi %25, %c4_i32 : i32
    %c10_i32_15 = arith.constant 10 : i32
    %27 = arith.cmpi slt, %26, %c10_i32_15 : i32
    %28 = arith.extui %27 : i1 to i32
    %c0_i32_16 = arith.constant 0 : i32
    %29 = arith.cmpi ne, %28, %c0_i32_16 : i32
    scf.if %29 {
      %c16_i32 = arith.constant 16 : i32
      %45 = arith.muli %26, %c16_i32 : i32
      %46 = arith.addi %45, %4 : i32
      %c0_i32_26 = arith.constant 0 : i32
      %47 = arith.addi %46, %c0_i32_26 : i32
      %48 = arith.index_cast %47 : i32 to index
      %49 = memref.load %arg2[%48] : memref<256xi32, #tpu.memory_space<smem>>
      %50 = arith.index_cast %49 : i32 to index
      %c0_27 = arith.constant 0 : index
      %c0_28 = arith.constant 0 : index
      %51 = vector.load %arg4[%50, %c0_27, %c0_28] : memref<64x1x256xf32, #tpu.memory_space<vmem>>, vector<1x1x256xf32>
      %52 = vector.shape_cast %51 : vector<1x1x256xf32> to vector<1x256xf32>
      %c0_29 = arith.constant 0 : index
      %c0_30 = arith.constant 0 : index
      %53 = vector.load %arg8[%c0_29, %c0_30] : memref<8x256xf32, #tpu.memory_space<vmem>>, vector<1x256xf32>
      tpu.vector_store %arg8[%c0_29, %c0_30], %52 {strides = array<i32>} : memref<8x256xf32, #tpu.memory_space<vmem>>, vector<1x256xf32>,
      %c1_i32_31 = arith.constant 1 : i32
      %54 = arith.addi %46, %c1_i32_31 : i32
      %55 = arith.index_cast %54 : i32 to index
      %56 = memref.load %arg2[%55] : memref<256xi32, #tpu.memory_space<smem>>
      %57 = arith.index_cast %56 : i32 to index
      %c0_32 = arith.constant 0 : index
      %c0_33 = arith.constant 0 : index
      %58 = vector.load %arg4[%57, %c0_32, %c0_33] : memref<64x1x256xf32, #tpu.memory_space<vmem>>, vector<1x1x256xf32>
      %59 = vector.shape_cast %58 : vector<1x1x256xf32> to vector<1x256xf32>
      %c1 = arith.constant 1 : index
      %c0_34 = arith.constant 0 : index
      %60 = vector.load %arg8[%c1, %c0_34] : memref<8x256xf32, #tpu.memory_space<vmem>>, vector<1x256xf32>
      tpu.vector_store %arg8[%c1, %c0_34], %59 {strides = array<i32>} : memref<8x256xf32, #tpu.memory_space<vmem>>, vector<1x256xf32>,
      %c2_i32_35 = arith.constant 2 : i32
      %61 = arith.addi %46, %c2_i32_35 : i32
      %62 = arith.index_cast %61 : i32 to index
      %63 = memref.load %arg2[%62] : memref<256xi32, #tpu.memory_space<smem>>
      %64 = arith.index_cast %63 : i32 to index
      %c0_36 = arith.constant 0 : index
      %c0_37 = arith.constant 0 : index
      %65 = vector.load %arg4[%64, %c0_36, %c0_37] : memref<64x1x256xf32, #tpu.memory_space<vmem>>, vector<1x1x256xf32>
      %66 = vector.shape_cast %65 : vector<1x1x256xf32> to vector<1x256xf32>
      %c2 = arith.constant 2 : index
      %c0_38 = arith.constant 0 : index
      %67 = vector.load %arg8[%c2, %c0_38] : memref<8x256xf32, #tpu.memory_space<vmem>>, vector<1x256xf32>
      tpu.vector_store %arg8[%c2, %c0_38], %66 {strides = array<i32>} : memref<8x256xf32, #tpu.memory_space<vmem>>, vector<1x256xf32>,
      %c3_i32_39 = arith.constant 3 : i32
      %68 = arith.addi %46, %c3_i32_39 : i32
      %69 = arith.index_cast %68 : i32 to index
      %70 = memref.load %arg2[%69] : memref<256xi32, #tpu.memory_space<smem>>
      %71 = arith.index_cast %70 : i32 to index
      %c0_40 = arith.constant 0 : index
      %c0_41 = arith.constant 0 : index
      %72 = vector.load %arg4[%71, %c0_40, %c0_41] : memref<64x1x256xf32, #tpu.memory_space<vmem>>, vector<1x1x256xf32>
      %73 = vector.shape_cast %72 : vector<1x1x256xf32> to vector<1x256xf32>
      %c3 = arith.constant 3 : index
      %c0_42 = arith.constant 0 : index
      %74 = vector.load %arg8[%c3, %c0_42] : memref<8x256xf32, #tpu.memory_space<vmem>>, vector<1x256xf32>
      tpu.vector_store %arg8[%c3, %c0_42], %73 {strides = array<i32>} : memref<8x256xf32, #tpu.memory_space<vmem>>, vector<1x256xf32>,
      %c4_i32_43 = arith.constant 4 : i32
      %75 = arith.addi %46, %c4_i32_43 : i32
      %76 = arith.index_cast %75 : i32 to index
      %77 = memref.load %arg2[%76] : memref<256xi32, #tpu.memory_space<smem>>
      %78 = arith.index_cast %77 : i32 to index
      %c0_44 = arith.constant 0 : index
      %c0_45 = arith.constant 0 : index
      %79 = vector.load %arg4[%78, %c0_44, %c0_45] : memref<64x1x256xf32, #tpu.memory_space<vmem>>, vector<1x1x256xf32>
      %80 = vector.shape_cast %79 : vector<1x1x256xf32> to vector<1x256xf32>
      %c4 = arith.constant 4 : index
      %c0_46 = arith.constant 0 : index
      %81 = vector.load %arg8[%c4, %c0_46] : memref<8x256xf32, #tpu.memory_space<vmem>>, vector<1x256xf32>
      tpu.vector_store %arg8[%c4, %c0_46], %80 {strides = array<i32>} : memref<8x256xf32, #tpu.memory_space<vmem>>, vector<1x256xf32>,
      %c5_i32_47 = arith.constant 5 : i32
      %82 = arith.addi %46, %c5_i32_47 : i32
      %83 = arith.index_cast %82 : i32 to index
      %84 = memref.load %arg2[%83] : memref<256xi32, #tpu.memory_space<smem>>
      %85 = arith.index_cast %84 : i32 to index
      %c0_48 = arith.constant 0 : index
      %c0_49 = arith.constant 0 : index
      %86 = vector.load %arg4[%85, %c0_48, %c0_49] : memref<64x1x256xf32, #tpu.memory_space<vmem>>, vector<1x1x256xf32>
      %87 = vector.shape_cast %86 : vector<1x1x256xf32> to vector<1x256xf32>
      %c5 = arith.constant 5 : index
      %c0_50 = arith.constant 0 : index
      %88 = vector.load %arg8[%c5, %c0_50] : memref<8x256xf32, #tpu.memory_space<vmem>>, vector<1x256xf32>
      tpu.vector_store %arg8[%c5, %c0_50], %87 {strides = array<i32>} : memref<8x256xf32, #tpu.memory_space<vmem>>, vector<1x256xf32>,
      %c6_i32_51 = arith.constant 6 : i32
      %89 = arith.addi %46, %c6_i32_51 : i32
      %90 = arith.index_cast %89 : i32 to index
      %91 = memref.load %arg2[%90] : memref<256xi32, #tpu.memory_space<smem>>
      %92 = arith.index_cast %91 : i32 to index
      %c0_52 = arith.constant 0 : index
      %c0_53 = arith.constant 0 : index
      %93 = vector.load %arg4[%92, %c0_52, %c0_53] : memref<64x1x256xf32, #tpu.memory_space<vmem>>, vector<1x1x256xf32>
      %94 = vector.shape_cast %93 : vector<1x1x256xf32> to vector<1x256xf32>
      %c6 = arith.constant 6 : index
      %c0_54 = arith.constant 0 : index
      %95 = vector.load %arg8[%c6, %c0_54] : memref<8x256xf32, #tpu.memory_space<vmem>>, vector<1x256xf32>
      tpu.vector_store %arg8[%c6, %c0_54], %94 {strides = array<i32>} : memref<8x256xf32, #tpu.memory_space<vmem>>, vector<1x256xf32>,
      %c7_i32_55 = arith.constant 7 : i32
      %96 = arith.addi %46, %c7_i32_55 : i32
      %97 = arith.index_cast %96 : i32 to index
      %98 = memref.load %arg2[%97] : memref<256xi32, #tpu.memory_space<smem>>
      %99 = arith.index_cast %98 : i32 to index
      %c0_56 = arith.constant 0 : index
      %c0_57 = arith.constant 0 : index
      %100 = vector.load %arg4[%99, %c0_56, %c0_57] : memref<64x1x256xf32, #tpu.memory_space<vmem>>, vector<1x1x256xf32>
      %101 = vector.shape_cast %100 : vector<1x1x256xf32> to vector<1x256xf32>
      %c7 = arith.constant 7 : index
      %c0_58 = arith.constant 0 : index
      %102 = vector.load %arg8[%c7, %c0_58] : memref<8x256xf32, #tpu.memory_space<vmem>>, vector<1x256xf32>
      tpu.vector_store %arg8[%c7, %c0_58], %101 {strides = array<i32>} : memref<8x256xf32, #tpu.memory_space<vmem>>, vector<1x256xf32>,
      %c0_59 = arith.constant 0 : index
      %c0_60 = arith.constant 0 : index
      %103 = vector.load %arg7[%c0_59, %c0_60] : memref<8x128xf32, #tpu.memory_space<vmem>>, vector<8x128xf32>
      %104 = arith.truncf %103 : vector<8x128xf32> to vector<8x128xbf16>
      %cst = arith.constant dense<0.000000e+00> : vector<8x256xf32>
      %105 = tpu.matmul %104, %3, %cst {dimension_numbers = #tpu.dot_dimension_numbers<[1], [0], [0], [1], [0, 0, 1, 1], [], []>} : vector<8x128xbf16>, vector<128x256xbf16>, vector<8x256xf32> -> vector<8x256xf32>
      %c0_61 = arith.constant 0 : index
      %c0_62 = arith.constant 0 : index
      %106 = vector.load %arg8[%c0_61, %c0_62] : memref<8x256xf32, #tpu.memory_space<vmem>>, vector<8x256xf32>
      %107 = arith.addf %105, %106 : vector<8x256xf32>
      %108 = vector.extract_strided_slice %107 {offsets = [0, 0], sizes = [8, 128], strides = [1, 1]} : vector<8x256xf32> to vector<8x128xf32>
      %109 = vector.extract_strided_slice %107 {offsets = [0, 128], sizes = [8, 128], strides = [1, 1]} : vector<8x256xf32> to vector<8x128xf32>
      %cst_63 = arith.constant dense<0xFF800000> : vector<8xf32>
      %110 = vector.multi_reduction <maximumf>, %109, %cst_63 [1] : vector<8x128xf32> to vector<8xf32>
      %111 = vector.shape_cast %110 : vector<8xf32> to vector<8x1xf32>
      %112 = vector.broadcast %111 : vector<8x1xf32> to vector<8x128xf32>
      %113 = arith.subf %109, %112 : vector<8x128xf32>
      %114 = math.exp %113 : vector<8x128xf32>
      %cst_64 = arith.constant dense<0.000000e+00> : vector<8xf32>
      %115 = vector.multi_reduction <add>, %114, %cst_64 [1] : vector<8x128xf32> to vector<8xf32>
      %116 = vector.shape_cast %115 : vector<8xf32> to vector<8x1xf32>
      %117 = math.log %116 : vector<8x1xf32>
      %118 = vector.broadcast %117 : vector<8x1xf32> to vector<8x128xf32>
      %119 = arith.subf %113, %118 : vector<8x128xf32>
      %c4_65 = arith.constant 4 : index
      %c0_66 = arith.constant 0 : index
      %c0_67 = arith.constant 0 : index
      %120 = vector.load %arg6[%c4_65, %c0_66, %c0_67] : memref<8x8x128xf32, #tpu.memory_space<vmem>>, vector<1x8x128xf32>
      %121 = vector.shape_cast %120 : vector<1x8x128xf32> to vector<8x128xf32>
      %122 = vector.shape_cast %119 : vector<8x128xf32> to vector<1x8x128xf32>
      tpu.vector_store %arg6[%c4_65, %c0_66, %c0_67], %122 {strides = array<i32>} : memref<8x8x128xf32, #tpu.memory_space<vmem>>, vector<1x8x128xf32>,
      %c0_68 = arith.constant 0 : index
      %c0_69 = arith.constant 0 : index
      %123 = vector.load %arg7[%c0_68, %c0_69] : memref<8x128xf32, #tpu.memory_space<vmem>>, vector<8x128xf32>
      tpu.vector_store %arg7[%c0_68, %c0_69], %108 {strides = array<i32>} : memref<8x128xf32, #tpu.memory_space<vmem>>, vector<8x128xf32>,
    } else {
    }
    %c8_i32_17 = arith.constant 8 : i32
    %30 = arith.muli %arg1, %c8_i32_17 : i32
    %c5_i32 = arith.constant 5 : i32
    %31 = arith.addi %30, %c5_i32 : i32
    %c10_i32_18 = arith.constant 10 : i32
    %32 = arith.cmpi slt, %31, %c10_i32_18 : i32
    %33 = arith.extui %32 : i1 to i32
    %c0_i32_19 = arith.constant 0 : i32
    %34 = arith.cmpi ne, %33, %c0_i32_19 : i32
    scf.if %34 {
      %c16_i32 = arith.constant 16 : i32
      %45 = arith.muli %31, %c16_i32 : i32
      %46 = arith.addi %45, %4 : i32
      %c0_i32_26 = arith.constant 0 : i32
      %47 = arith.addi %46, %c0_i32_26 : i32
      %48 = arith.index_cast %47 : i32 to index
      %49 = memref.load %arg2[%48] : memref<256xi32, #tpu.memory_space<smem>>
      %50 = arith.index_cast %49 : i32 to index
      %c0_27 = arith.constant 0 : index
      %c0_28 = arith.constant 0 : index
      %51 = vector.load %arg4[%50, %c0_27, %c0_28] : memref<64x1x256xf32, #tpu.memory_space<vmem>>, vector<1x1x256xf32>
      %52 = vector.shape_cast %51 : vector<1x1x256xf32> to vector<1x256xf32>
      %c0_29 = arith.constant 0 : index
      %c0_30 = arith.constant 0 : index
      %53 = vector.load %arg8[%c0_29, %c0_30] : memref<8x256xf32, #tpu.memory_space<vmem>>, vector<1x256xf32>
      tpu.vector_store %arg8[%c0_29, %c0_30], %52 {strides = array<i32>} : memref<8x256xf32, #tpu.memory_space<vmem>>, vector<1x256xf32>,
      %c1_i32_31 = arith.constant 1 : i32
      %54 = arith.addi %46, %c1_i32_31 : i32
      %55 = arith.index_cast %54 : i32 to index
      %56 = memref.load %arg2[%55] : memref<256xi32, #tpu.memory_space<smem>>
      %57 = arith.index_cast %56 : i32 to index
      %c0_32 = arith.constant 0 : index
      %c0_33 = arith.constant 0 : index
      %58 = vector.load %arg4[%57, %c0_32, %c0_33] : memref<64x1x256xf32, #tpu.memory_space<vmem>>, vector<1x1x256xf32>
      %59 = vector.shape_cast %58 : vector<1x1x256xf32> to vector<1x256xf32>
      %c1 = arith.constant 1 : index
      %c0_34 = arith.constant 0 : index
      %60 = vector.load %arg8[%c1, %c0_34] : memref<8x256xf32, #tpu.memory_space<vmem>>, vector<1x256xf32>
      tpu.vector_store %arg8[%c1, %c0_34], %59 {strides = array<i32>} : memref<8x256xf32, #tpu.memory_space<vmem>>, vector<1x256xf32>,
      %c2_i32_35 = arith.constant 2 : i32
      %61 = arith.addi %46, %c2_i32_35 : i32
      %62 = arith.index_cast %61 : i32 to index
      %63 = memref.load %arg2[%62] : memref<256xi32, #tpu.memory_space<smem>>
      %64 = arith.index_cast %63 : i32 to index
      %c0_36 = arith.constant 0 : index
      %c0_37 = arith.constant 0 : index
      %65 = vector.load %arg4[%64, %c0_36, %c0_37] : memref<64x1x256xf32, #tpu.memory_space<vmem>>, vector<1x1x256xf32>
      %66 = vector.shape_cast %65 : vector<1x1x256xf32> to vector<1x256xf32>
      %c2 = arith.constant 2 : index
      %c0_38 = arith.constant 0 : index
      %67 = vector.load %arg8[%c2, %c0_38] : memref<8x256xf32, #tpu.memory_space<vmem>>, vector<1x256xf32>
      tpu.vector_store %arg8[%c2, %c0_38], %66 {strides = array<i32>} : memref<8x256xf32, #tpu.memory_space<vmem>>, vector<1x256xf32>,
      %c3_i32_39 = arith.constant 3 : i32
      %68 = arith.addi %46, %c3_i32_39 : i32
      %69 = arith.index_cast %68 : i32 to index
      %70 = memref.load %arg2[%69] : memref<256xi32, #tpu.memory_space<smem>>
      %71 = arith.index_cast %70 : i32 to index
      %c0_40 = arith.constant 0 : index
      %c0_41 = arith.constant 0 : index
      %72 = vector.load %arg4[%71, %c0_40, %c0_41] : memref<64x1x256xf32, #tpu.memory_space<vmem>>, vector<1x1x256xf32>
      %73 = vector.shape_cast %72 : vector<1x1x256xf32> to vector<1x256xf32>
      %c3 = arith.constant 3 : index
      %c0_42 = arith.constant 0 : index
      %74 = vector.load %arg8[%c3, %c0_42] : memref<8x256xf32, #tpu.memory_space<vmem>>, vector<1x256xf32>
      tpu.vector_store %arg8[%c3, %c0_42], %73 {strides = array<i32>} : memref<8x256xf32, #tpu.memory_space<vmem>>, vector<1x256xf32>,
      %c4_i32_43 = arith.constant 4 : i32
      %75 = arith.addi %46, %c4_i32_43 : i32
      %76 = arith.index_cast %75 : i32 to index
      %77 = memref.load %arg2[%76] : memref<256xi32, #tpu.memory_space<smem>>
      %78 = arith.index_cast %77 : i32 to index
      %c0_44 = arith.constant 0 : index
      %c0_45 = arith.constant 0 : index
      %79 = vector.load %arg4[%78, %c0_44, %c0_45] : memref<64x1x256xf32, #tpu.memory_space<vmem>>, vector<1x1x256xf32>
      %80 = vector.shape_cast %79 : vector<1x1x256xf32> to vector<1x256xf32>
      %c4 = arith.constant 4 : index
      %c0_46 = arith.constant 0 : index
      %81 = vector.load %arg8[%c4, %c0_46] : memref<8x256xf32, #tpu.memory_space<vmem>>, vector<1x256xf32>
      tpu.vector_store %arg8[%c4, %c0_46], %80 {strides = array<i32>} : memref<8x256xf32, #tpu.memory_space<vmem>>, vector<1x256xf32>,
      %c5_i32_47 = arith.constant 5 : i32
      %82 = arith.addi %46, %c5_i32_47 : i32
      %83 = arith.index_cast %82 : i32 to index
      %84 = memref.load %arg2[%83] : memref<256xi32, #tpu.memory_space<smem>>
      %85 = arith.index_cast %84 : i32 to index
      %c0_48 = arith.constant 0 : index
      %c0_49 = arith.constant 0 : index
      %86 = vector.load %arg4[%85, %c0_48, %c0_49] : memref<64x1x256xf32, #tpu.memory_space<vmem>>, vector<1x1x256xf32>
      %87 = vector.shape_cast %86 : vector<1x1x256xf32> to vector<1x256xf32>
      %c5 = arith.constant 5 : index
      %c0_50 = arith.constant 0 : index
      %88 = vector.load %arg8[%c5, %c0_50] : memref<8x256xf32, #tpu.memory_space<vmem>>, vector<1x256xf32>
      tpu.vector_store %arg8[%c5, %c0_50], %87 {strides = array<i32>} : memref<8x256xf32, #tpu.memory_space<vmem>>, vector<1x256xf32>,
      %c6_i32_51 = arith.constant 6 : i32
      %89 = arith.addi %46, %c6_i32_51 : i32
      %90 = arith.index_cast %89 : i32 to index
      %91 = memref.load %arg2[%90] : memref<256xi32, #tpu.memory_space<smem>>
      %92 = arith.index_cast %91 : i32 to index
      %c0_52 = arith.constant 0 : index
      %c0_53 = arith.constant 0 : index
      %93 = vector.load %arg4[%92, %c0_52, %c0_53] : memref<64x1x256xf32, #tpu.memory_space<vmem>>, vector<1x1x256xf32>
      %94 = vector.shape_cast %93 : vector<1x1x256xf32> to vector<1x256xf32>
      %c6 = arith.constant 6 : index
      %c0_54 = arith.constant 0 : index
      %95 = vector.load %arg8[%c6, %c0_54] : memref<8x256xf32, #tpu.memory_space<vmem>>, vector<1x256xf32>
      tpu.vector_store %arg8[%c6, %c0_54], %94 {strides = array<i32>} : memref<8x256xf32, #tpu.memory_space<vmem>>, vector<1x256xf32>,
      %c7_i32_55 = arith.constant 7 : i32
      %96 = arith.addi %46, %c7_i32_55 : i32
      %97 = arith.index_cast %96 : i32 to index
      %98 = memref.load %arg2[%97] : memref<256xi32, #tpu.memory_space<smem>>
      %99 = arith.index_cast %98 : i32 to index
      %c0_56 = arith.constant 0 : index
      %c0_57 = arith.constant 0 : index
      %100 = vector.load %arg4[%99, %c0_56, %c0_57] : memref<64x1x256xf32, #tpu.memory_space<vmem>>, vector<1x1x256xf32>
      %101 = vector.shape_cast %100 : vector<1x1x256xf32> to vector<1x256xf32>
      %c7 = arith.constant 7 : index
      %c0_58 = arith.constant 0 : index
      %102 = vector.load %arg8[%c7, %c0_58] : memref<8x256xf32, #tpu.memory_space<vmem>>, vector<1x256xf32>
      tpu.vector_store %arg8[%c7, %c0_58], %101 {strides = array<i32>} : memref<8x256xf32, #tpu.memory_space<vmem>>, vector<1x256xf32>,
      %c0_59 = arith.constant 0 : index
      %c0_60 = arith.constant 0 : index
      %103 = vector.load %arg7[%c0_59, %c0_60] : memref<8x128xf32, #tpu.memory_space<vmem>>, vector<8x128xf32>
      %104 = arith.truncf %103 : vector<8x128xf32> to vector<8x128xbf16>
      %cst = arith.constant dense<0.000000e+00> : vector<8x256xf32>
      %105 = tpu.matmul %104, %3, %cst {dimension_numbers = #tpu.dot_dimension_numbers<[1], [0], [0], [1], [0, 0, 1, 1], [], []>} : vector<8x128xbf16>, vector<128x256xbf16>, vector<8x256xf32> -> vector<8x256xf32>
      %c0_61 = arith.constant 0 : index
      %c0_62 = arith.constant 0 : index
      %106 = vector.load %arg8[%c0_61, %c0_62] : memref<8x256xf32, #tpu.memory_space<vmem>>, vector<8x256xf32>
      %107 = arith.addf %105, %106 : vector<8x256xf32>
      %108 = vector.extract_strided_slice %107 {offsets = [0, 0], sizes = [8, 128], strides = [1, 1]} : vector<8x256xf32> to vector<8x128xf32>
      %109 = vector.extract_strided_slice %107 {offsets = [0, 128], sizes = [8, 128], strides = [1, 1]} : vector<8x256xf32> to vector<8x128xf32>
      %cst_63 = arith.constant dense<0xFF800000> : vector<8xf32>
      %110 = vector.multi_reduction <maximumf>, %109, %cst_63 [1] : vector<8x128xf32> to vector<8xf32>
      %111 = vector.shape_cast %110 : vector<8xf32> to vector<8x1xf32>
      %112 = vector.broadcast %111 : vector<8x1xf32> to vector<8x128xf32>
      %113 = arith.subf %109, %112 : vector<8x128xf32>
      %114 = math.exp %113 : vector<8x128xf32>
      %cst_64 = arith.constant dense<0.000000e+00> : vector<8xf32>
      %115 = vector.multi_reduction <add>, %114, %cst_64 [1] : vector<8x128xf32> to vector<8xf32>
      %116 = vector.shape_cast %115 : vector<8xf32> to vector<8x1xf32>
      %117 = math.log %116 : vector<8x1xf32>
      %118 = vector.broadcast %117 : vector<8x1xf32> to vector<8x128xf32>
      %119 = arith.subf %113, %118 : vector<8x128xf32>
      %c5_65 = arith.constant 5 : index
      %c0_66 = arith.constant 0 : index
      %c0_67 = arith.constant 0 : index
      %120 = vector.load %arg6[%c5_65, %c0_66, %c0_67] : memref<8x8x128xf32, #tpu.memory_space<vmem>>, vector<1x8x128xf32>
      %121 = vector.shape_cast %120 : vector<1x8x128xf32> to vector<8x128xf32>
      %122 = vector.shape_cast %119 : vector<8x128xf32> to vector<1x8x128xf32>
      tpu.vector_store %arg6[%c5_65, %c0_66, %c0_67], %122 {strides = array<i32>} : memref<8x8x128xf32, #tpu.memory_space<vmem>>, vector<1x8x128xf32>,
      %c0_68 = arith.constant 0 : index
      %c0_69 = arith.constant 0 : index
      %123 = vector.load %arg7[%c0_68, %c0_69] : memref<8x128xf32, #tpu.memory_space<vmem>>, vector<8x128xf32>
      tpu.vector_store %arg7[%c0_68, %c0_69], %108 {strides = array<i32>} : memref<8x128xf32, #tpu.memory_space<vmem>>, vector<8x128xf32>,
    } else {
    }
    %c8_i32_20 = arith.constant 8 : i32
    %35 = arith.muli %arg1, %c8_i32_20 : i32
    %c6_i32 = arith.constant 6 : i32
    %36 = arith.addi %35, %c6_i32 : i32
    %c10_i32_21 = arith.constant 10 : i32
    %37 = arith.cmpi slt, %36, %c10_i32_21 : i32
    %38 = arith.extui %37 : i1 to i32
    %c0_i32_22 = arith.constant 0 : i32
    %39 = arith.cmpi ne, %38, %c0_i32_22 : i32
    scf.if %39 {
      %c16_i32 = arith.constant 16 : i32
      %45 = arith.muli %36, %c16_i32 : i32
      %46 = arith.addi %45, %4 : i32
      %c0_i32_26 = arith.constant 0 : i32
      %47 = arith.addi %46, %c0_i32_26 : i32
      %48 = arith.index_cast %47 : i32 to index
      %49 = memref.load %arg2[%48] : memref<256xi32, #tpu.memory_space<smem>>
      %50 = arith.index_cast %49 : i32 to index
      %c0_27 = arith.constant 0 : index
      %c0_28 = arith.constant 0 : index
      %51 = vector.load %arg4[%50, %c0_27, %c0_28] : memref<64x1x256xf32, #tpu.memory_space<vmem>>, vector<1x1x256xf32>
      %52 = vector.shape_cast %51 : vector<1x1x256xf32> to vector<1x256xf32>
      %c0_29 = arith.constant 0 : index
      %c0_30 = arith.constant 0 : index
      %53 = vector.load %arg8[%c0_29, %c0_30] : memref<8x256xf32, #tpu.memory_space<vmem>>, vector<1x256xf32>
      tpu.vector_store %arg8[%c0_29, %c0_30], %52 {strides = array<i32>} : memref<8x256xf32, #tpu.memory_space<vmem>>, vector<1x256xf32>,
      %c1_i32_31 = arith.constant 1 : i32
      %54 = arith.addi %46, %c1_i32_31 : i32
      %55 = arith.index_cast %54 : i32 to index
      %56 = memref.load %arg2[%55] : memref<256xi32, #tpu.memory_space<smem>>
      %57 = arith.index_cast %56 : i32 to index
      %c0_32 = arith.constant 0 : index
      %c0_33 = arith.constant 0 : index
      %58 = vector.load %arg4[%57, %c0_32, %c0_33] : memref<64x1x256xf32, #tpu.memory_space<vmem>>, vector<1x1x256xf32>
      %59 = vector.shape_cast %58 : vector<1x1x256xf32> to vector<1x256xf32>
      %c1 = arith.constant 1 : index
      %c0_34 = arith.constant 0 : index
      %60 = vector.load %arg8[%c1, %c0_34] : memref<8x256xf32, #tpu.memory_space<vmem>>, vector<1x256xf32>
      tpu.vector_store %arg8[%c1, %c0_34], %59 {strides = array<i32>} : memref<8x256xf32, #tpu.memory_space<vmem>>, vector<1x256xf32>,
      %c2_i32_35 = arith.constant 2 : i32
      %61 = arith.addi %46, %c2_i32_35 : i32
      %62 = arith.index_cast %61 : i32 to index
      %63 = memref.load %arg2[%62] : memref<256xi32, #tpu.memory_space<smem>>
      %64 = arith.index_cast %63 : i32 to index
      %c0_36 = arith.constant 0 : index
      %c0_37 = arith.constant 0 : index
      %65 = vector.load %arg4[%64, %c0_36, %c0_37] : memref<64x1x256xf32, #tpu.memory_space<vmem>>, vector<1x1x256xf32>
      %66 = vector.shape_cast %65 : vector<1x1x256xf32> to vector<1x256xf32>
      %c2 = arith.constant 2 : index
      %c0_38 = arith.constant 0 : index
      %67 = vector.load %arg8[%c2, %c0_38] : memref<8x256xf32, #tpu.memory_space<vmem>>, vector<1x256xf32>
      tpu.vector_store %arg8[%c2, %c0_38], %66 {strides = array<i32>} : memref<8x256xf32, #tpu.memory_space<vmem>>, vector<1x256xf32>,
      %c3_i32_39 = arith.constant 3 : i32
      %68 = arith.addi %46, %c3_i32_39 : i32
      %69 = arith.index_cast %68 : i32 to index
      %70 = memref.load %arg2[%69] : memref<256xi32, #tpu.memory_space<smem>>
      %71 = arith.index_cast %70 : i32 to index
      %c0_40 = arith.constant 0 : index
      %c0_41 = arith.constant 0 : index
      %72 = vector.load %arg4[%71, %c0_40, %c0_41] : memref<64x1x256xf32, #tpu.memory_space<vmem>>, vector<1x1x256xf32>
      %73 = vector.shape_cast %72 : vector<1x1x256xf32> to vector<1x256xf32>
      %c3 = arith.constant 3 : index
      %c0_42 = arith.constant 0 : index
      %74 = vector.load %arg8[%c3, %c0_42] : memref<8x256xf32, #tpu.memory_space<vmem>>, vector<1x256xf32>
      tpu.vector_store %arg8[%c3, %c0_42], %73 {strides = array<i32>} : memref<8x256xf32, #tpu.memory_space<vmem>>, vector<1x256xf32>,
      %c4_i32_43 = arith.constant 4 : i32
      %75 = arith.addi %46, %c4_i32_43 : i32
      %76 = arith.index_cast %75 : i32 to index
      %77 = memref.load %arg2[%76] : memref<256xi32, #tpu.memory_space<smem>>
      %78 = arith.index_cast %77 : i32 to index
      %c0_44 = arith.constant 0 : index
      %c0_45 = arith.constant 0 : index
      %79 = vector.load %arg4[%78, %c0_44, %c0_45] : memref<64x1x256xf32, #tpu.memory_space<vmem>>, vector<1x1x256xf32>
      %80 = vector.shape_cast %79 : vector<1x1x256xf32> to vector<1x256xf32>
      %c4 = arith.constant 4 : index
      %c0_46 = arith.constant 0 : index
      %81 = vector.load %arg8[%c4, %c0_46] : memref<8x256xf32, #tpu.memory_space<vmem>>, vector<1x256xf32>
      tpu.vector_store %arg8[%c4, %c0_46], %80 {strides = array<i32>} : memref<8x256xf32, #tpu.memory_space<vmem>>, vector<1x256xf32>,
      %c5_i32_47 = arith.constant 5 : i32
      %82 = arith.addi %46, %c5_i32_47 : i32
      %83 = arith.index_cast %82 : i32 to index
      %84 = memref.load %arg2[%83] : memref<256xi32, #tpu.memory_space<smem>>
      %85 = arith.index_cast %84 : i32 to index
      %c0_48 = arith.constant 0 : index
      %c0_49 = arith.constant 0 : index
      %86 = vector.load %arg4[%85, %c0_48, %c0_49] : memref<64x1x256xf32, #tpu.memory_space<vmem>>, vector<1x1x256xf32>
      %87 = vector.shape_cast %86 : vector<1x1x256xf32> to vector<1x256xf32>
      %c5 = arith.constant 5 : index
      %c0_50 = arith.constant 0 : index
      %88 = vector.load %arg8[%c5, %c0_50] : memref<8x256xf32, #tpu.memory_space<vmem>>, vector<1x256xf32>
      tpu.vector_store %arg8[%c5, %c0_50], %87 {strides = array<i32>} : memref<8x256xf32, #tpu.memory_space<vmem>>, vector<1x256xf32>,
      %c6_i32_51 = arith.constant 6 : i32
      %89 = arith.addi %46, %c6_i32_51 : i32
      %90 = arith.index_cast %89 : i32 to index
      %91 = memref.load %arg2[%90] : memref<256xi32, #tpu.memory_space<smem>>
      %92 = arith.index_cast %91 : i32 to index
      %c0_52 = arith.constant 0 : index
      %c0_53 = arith.constant 0 : index
      %93 = vector.load %arg4[%92, %c0_52, %c0_53] : memref<64x1x256xf32, #tpu.memory_space<vmem>>, vector<1x1x256xf32>
      %94 = vector.shape_cast %93 : vector<1x1x256xf32> to vector<1x256xf32>
      %c6 = arith.constant 6 : index
      %c0_54 = arith.constant 0 : index
      %95 = vector.load %arg8[%c6, %c0_54] : memref<8x256xf32, #tpu.memory_space<vmem>>, vector<1x256xf32>
      tpu.vector_store %arg8[%c6, %c0_54], %94 {strides = array<i32>} : memref<8x256xf32, #tpu.memory_space<vmem>>, vector<1x256xf32>,
      %c7_i32_55 = arith.constant 7 : i32
      %96 = arith.addi %46, %c7_i32_55 : i32
      %97 = arith.index_cast %96 : i32 to index
      %98 = memref.load %arg2[%97] : memref<256xi32, #tpu.memory_space<smem>>
      %99 = arith.index_cast %98 : i32 to index
      %c0_56 = arith.constant 0 : index
      %c0_57 = arith.constant 0 : index
      %100 = vector.load %arg4[%99, %c0_56, %c0_57] : memref<64x1x256xf32, #tpu.memory_space<vmem>>, vector<1x1x256xf32>
      %101 = vector.shape_cast %100 : vector<1x1x256xf32> to vector<1x256xf32>
      %c7 = arith.constant 7 : index
      %c0_58 = arith.constant 0 : index
      %102 = vector.load %arg8[%c7, %c0_58] : memref<8x256xf32, #tpu.memory_space<vmem>>, vector<1x256xf32>
      tpu.vector_store %arg8[%c7, %c0_58], %101 {strides = array<i32>} : memref<8x256xf32, #tpu.memory_space<vmem>>, vector<1x256xf32>,
      %c0_59 = arith.constant 0 : index
      %c0_60 = arith.constant 0 : index
      %103 = vector.load %arg7[%c0_59, %c0_60] : memref<8x128xf32, #tpu.memory_space<vmem>>, vector<8x128xf32>
      %104 = arith.truncf %103 : vector<8x128xf32> to vector<8x128xbf16>
      %cst = arith.constant dense<0.000000e+00> : vector<8x256xf32>
      %105 = tpu.matmul %104, %3, %cst {dimension_numbers = #tpu.dot_dimension_numbers<[1], [0], [0], [1], [0, 0, 1, 1], [], []>} : vector<8x128xbf16>, vector<128x256xbf16>, vector<8x256xf32> -> vector<8x256xf32>
      %c0_61 = arith.constant 0 : index
      %c0_62 = arith.constant 0 : index
      %106 = vector.load %arg8[%c0_61, %c0_62] : memref<8x256xf32, #tpu.memory_space<vmem>>, vector<8x256xf32>
      %107 = arith.addf %105, %106 : vector<8x256xf32>
      %108 = vector.extract_strided_slice %107 {offsets = [0, 0], sizes = [8, 128], strides = [1, 1]} : vector<8x256xf32> to vector<8x128xf32>
      %109 = vector.extract_strided_slice %107 {offsets = [0, 128], sizes = [8, 128], strides = [1, 1]} : vector<8x256xf32> to vector<8x128xf32>
      %cst_63 = arith.constant dense<0xFF800000> : vector<8xf32>
      %110 = vector.multi_reduction <maximumf>, %109, %cst_63 [1] : vector<8x128xf32> to vector<8xf32>
      %111 = vector.shape_cast %110 : vector<8xf32> to vector<8x1xf32>
      %112 = vector.broadcast %111 : vector<8x1xf32> to vector<8x128xf32>
      %113 = arith.subf %109, %112 : vector<8x128xf32>
      %114 = math.exp %113 : vector<8x128xf32>
      %cst_64 = arith.constant dense<0.000000e+00> : vector<8xf32>
      %115 = vector.multi_reduction <add>, %114, %cst_64 [1] : vector<8x128xf32> to vector<8xf32>
      %116 = vector.shape_cast %115 : vector<8xf32> to vector<8x1xf32>
      %117 = math.log %116 : vector<8x1xf32>
      %118 = vector.broadcast %117 : vector<8x1xf32> to vector<8x128xf32>
      %119 = arith.subf %113, %118 : vector<8x128xf32>
      %c6_65 = arith.constant 6 : index
      %c0_66 = arith.constant 0 : index
      %c0_67 = arith.constant 0 : index
      %120 = vector.load %arg6[%c6_65, %c0_66, %c0_67] : memref<8x8x128xf32, #tpu.memory_space<vmem>>, vector<1x8x128xf32>
      %121 = vector.shape_cast %120 : vector<1x8x128xf32> to vector<8x128xf32>
      %122 = vector.shape_cast %119 : vector<8x128xf32> to vector<1x8x128xf32>
      tpu.vector_store %arg6[%c6_65, %c0_66, %c0_67], %122 {strides = array<i32>} : memref<8x8x128xf32, #tpu.memory_space<vmem>>, vector<1x8x128xf32>,
      %c0_68 = arith.constant 0 : index
      %c0_69 = arith.constant 0 : index
      %123 = vector.load %arg7[%c0_68, %c0_69] : memref<8x128xf32, #tpu.memory_space<vmem>>, vector<8x128xf32>
      tpu.vector_store %arg7[%c0_68, %c0_69], %108 {strides = array<i32>} : memref<8x128xf32, #tpu.memory_space<vmem>>, vector<8x128xf32>,
    } else {
    }
    %c8_i32_23 = arith.constant 8 : i32
    %40 = arith.muli %arg1, %c8_i32_23 : i32
    %c7_i32 = arith.constant 7 : i32
    %41 = arith.addi %40, %c7_i32 : i32
    %c10_i32_24 = arith.constant 10 : i32
    %42 = arith.cmpi slt, %41, %c10_i32_24 : i32
    %43 = arith.extui %42 : i1 to i32
    %c0_i32_25 = arith.constant 0 : i32
    %44 = arith.cmpi ne, %43, %c0_i32_25 : i32
    scf.if %44 {
      %c16_i32 = arith.constant 16 : i32
      %45 = arith.muli %41, %c16_i32 : i32
      %46 = arith.addi %45, %4 : i32
      %c0_i32_26 = arith.constant 0 : i32
      %47 = arith.addi %46, %c0_i32_26 : i32
      %48 = arith.index_cast %47 : i32 to index
      %49 = memref.load %arg2[%48] : memref<256xi32, #tpu.memory_space<smem>>
      %50 = arith.index_cast %49 : i32 to index
      %c0_27 = arith.constant 0 : index
      %c0_28 = arith.constant 0 : index
      %51 = vector.load %arg4[%50, %c0_27, %c0_28] : memref<64x1x256xf32, #tpu.memory_space<vmem>>, vector<1x1x256xf32>
      %52 = vector.shape_cast %51 : vector<1x1x256xf32> to vector<1x256xf32>
      %c0_29 = arith.constant 0 : index
      %c0_30 = arith.constant 0 : index
      %53 = vector.load %arg8[%c0_29, %c0_30] : memref<8x256xf32, #tpu.memory_space<vmem>>, vector<1x256xf32>
      tpu.vector_store %arg8[%c0_29, %c0_30], %52 {strides = array<i32>} : memref<8x256xf32, #tpu.memory_space<vmem>>, vector<1x256xf32>,
      %c1_i32_31 = arith.constant 1 : i32
      %54 = arith.addi %46, %c1_i32_31 : i32
      %55 = arith.index_cast %54 : i32 to index
      %56 = memref.load %arg2[%55] : memref<256xi32, #tpu.memory_space<smem>>
      %57 = arith.index_cast %56 : i32 to index
      %c0_32 = arith.constant 0 : index
      %c0_33 = arith.constant 0 : index
      %58 = vector.load %arg4[%57, %c0_32, %c0_33] : memref<64x1x256xf32, #tpu.memory_space<vmem>>, vector<1x1x256xf32>
      %59 = vector.shape_cast %58 : vector<1x1x256xf32> to vector<1x256xf32>
      %c1 = arith.constant 1 : index
      %c0_34 = arith.constant 0 : index
      %60 = vector.load %arg8[%c1, %c0_34] : memref<8x256xf32, #tpu.memory_space<vmem>>, vector<1x256xf32>
      tpu.vector_store %arg8[%c1, %c0_34], %59 {strides = array<i32>} : memref<8x256xf32, #tpu.memory_space<vmem>>, vector<1x256xf32>,
      %c2_i32_35 = arith.constant 2 : i32
      %61 = arith.addi %46, %c2_i32_35 : i32
      %62 = arith.index_cast %61 : i32 to index
      %63 = memref.load %arg2[%62] : memref<256xi32, #tpu.memory_space<smem>>
      %64 = arith.index_cast %63 : i32 to index
      %c0_36 = arith.constant 0 : index
      %c0_37 = arith.constant 0 : index
      %65 = vector.load %arg4[%64, %c0_36, %c0_37] : memref<64x1x256xf32, #tpu.memory_space<vmem>>, vector<1x1x256xf32>
      %66 = vector.shape_cast %65 : vector<1x1x256xf32> to vector<1x256xf32>
      %c2 = arith.constant 2 : index
      %c0_38 = arith.constant 0 : index
      %67 = vector.load %arg8[%c2, %c0_38] : memref<8x256xf32, #tpu.memory_space<vmem>>, vector<1x256xf32>
      tpu.vector_store %arg8[%c2, %c0_38], %66 {strides = array<i32>} : memref<8x256xf32, #tpu.memory_space<vmem>>, vector<1x256xf32>,
      %c3_i32_39 = arith.constant 3 : i32
      %68 = arith.addi %46, %c3_i32_39 : i32
      %69 = arith.index_cast %68 : i32 to index
      %70 = memref.load %arg2[%69] : memref<256xi32, #tpu.memory_space<smem>>
      %71 = arith.index_cast %70 : i32 to index
      %c0_40 = arith.constant 0 : index
      %c0_41 = arith.constant 0 : index
      %72 = vector.load %arg4[%71, %c0_40, %c0_41] : memref<64x1x256xf32, #tpu.memory_space<vmem>>, vector<1x1x256xf32>
      %73 = vector.shape_cast %72 : vector<1x1x256xf32> to vector<1x256xf32>
      %c3 = arith.constant 3 : index
      %c0_42 = arith.constant 0 : index
      %74 = vector.load %arg8[%c3, %c0_42] : memref<8x256xf32, #tpu.memory_space<vmem>>, vector<1x256xf32>
      tpu.vector_store %arg8[%c3, %c0_42], %73 {strides = array<i32>} : memref<8x256xf32, #tpu.memory_space<vmem>>, vector<1x256xf32>,
      %c4_i32_43 = arith.constant 4 : i32
      %75 = arith.addi %46, %c4_i32_43 : i32
      %76 = arith.index_cast %75 : i32 to index
      %77 = memref.load %arg2[%76] : memref<256xi32, #tpu.memory_space<smem>>
      %78 = arith.index_cast %77 : i32 to index
      %c0_44 = arith.constant 0 : index
      %c0_45 = arith.constant 0 : index
      %79 = vector.load %arg4[%78, %c0_44, %c0_45] : memref<64x1x256xf32, #tpu.memory_space<vmem>>, vector<1x1x256xf32>
      %80 = vector.shape_cast %79 : vector<1x1x256xf32> to vector<1x256xf32>
      %c4 = arith.constant 4 : index
      %c0_46 = arith.constant 0 : index
      %81 = vector.load %arg8[%c4, %c0_46] : memref<8x256xf32, #tpu.memory_space<vmem>>, vector<1x256xf32>
      tpu.vector_store %arg8[%c4, %c0_46], %80 {strides = array<i32>} : memref<8x256xf32, #tpu.memory_space<vmem>>, vector<1x256xf32>,
      %c5_i32_47 = arith.constant 5 : i32
      %82 = arith.addi %46, %c5_i32_47 : i32
      %83 = arith.index_cast %82 : i32 to index
      %84 = memref.load %arg2[%83] : memref<256xi32, #tpu.memory_space<smem>>
      %85 = arith.index_cast %84 : i32 to index
      %c0_48 = arith.constant 0 : index
      %c0_49 = arith.constant 0 : index
      %86 = vector.load %arg4[%85, %c0_48, %c0_49] : memref<64x1x256xf32, #tpu.memory_space<vmem>>, vector<1x1x256xf32>
      %87 = vector.shape_cast %86 : vector<1x1x256xf32> to vector<1x256xf32>
      %c5 = arith.constant 5 : index
      %c0_50 = arith.constant 0 : index
      %88 = vector.load %arg8[%c5, %c0_50] : memref<8x256xf32, #tpu.memory_space<vmem>>, vector<1x256xf32>
      tpu.vector_store %arg8[%c5, %c0_50], %87 {strides = array<i32>} : memref<8x256xf32, #tpu.memory_space<vmem>>, vector<1x256xf32>,
      %c6_i32_51 = arith.constant 6 : i32
      %89 = arith.addi %46, %c6_i32_51 : i32
      %90 = arith.index_cast %89 : i32 to index
      %91 = memref.load %arg2[%90] : memref<256xi32, #tpu.memory_space<smem>>
      %92 = arith.index_cast %91 : i32 to index
      %c0_52 = arith.constant 0 : index
      %c0_53 = arith.constant 0 : index
      %93 = vector.load %arg4[%92, %c0_52, %c0_53] : memref<64x1x256xf32, #tpu.memory_space<vmem>>, vector<1x1x256xf32>
      %94 = vector.shape_cast %93 : vector<1x1x256xf32> to vector<1x256xf32>
      %c6 = arith.constant 6 : index
      %c0_54 = arith.constant 0 : index
      %95 = vector.load %arg8[%c6, %c0_54] : memref<8x256xf32, #tpu.memory_space<vmem>>, vector<1x256xf32>
      tpu.vector_store %arg8[%c6, %c0_54], %94 {strides = array<i32>} : memref<8x256xf32, #tpu.memory_space<vmem>>, vector<1x256xf32>,
      %c7_i32_55 = arith.constant 7 : i32
      %96 = arith.addi %46, %c7_i32_55 : i32
      %97 = arith.index_cast %96 : i32 to index
      %98 = memref.load %arg2[%97] : memref<256xi32, #tpu.memory_space<smem>>
      %99 = arith.index_cast %98 : i32 to index
      %c0_56 = arith.constant 0 : index
      %c0_57 = arith.constant 0 : index
      %100 = vector.load %arg4[%99, %c0_56, %c0_57] : memref<64x1x256xf32, #tpu.memory_space<vmem>>, vector<1x1x256xf32>
      %101 = vector.shape_cast %100 : vector<1x1x256xf32> to vector<1x256xf32>
      %c7 = arith.constant 7 : index
      %c0_58 = arith.constant 0 : index
      %102 = vector.load %arg8[%c7, %c0_58] : memref<8x256xf32, #tpu.memory_space<vmem>>, vector<1x256xf32>
      tpu.vector_store %arg8[%c7, %c0_58], %101 {strides = array<i32>} : memref<8x256xf32, #tpu.memory_space<vmem>>, vector<1x256xf32>,
      %c0_59 = arith.constant 0 : index
      %c0_60 = arith.constant 0 : index
      %103 = vector.load %arg7[%c0_59, %c0_60] : memref<8x128xf32, #tpu.memory_space<vmem>>, vector<8x128xf32>
      %104 = arith.truncf %103 : vector<8x128xf32> to vector<8x128xbf16>
      %cst = arith.constant dense<0.000000e+00> : vector<8x256xf32>
      %105 = tpu.matmul %104, %3, %cst {dimension_numbers = #tpu.dot_dimension_numbers<[1], [0], [0], [1], [0, 0, 1, 1], [], []>} : vector<8x128xbf16>, vector<128x256xbf16>, vector<8x256xf32> -> vector<8x256xf32>
      %c0_61 = arith.constant 0 : index
      %c0_62 = arith.constant 0 : index
      %106 = vector.load %arg8[%c0_61, %c0_62] : memref<8x256xf32, #tpu.memory_space<vmem>>, vector<8x256xf32>
      %107 = arith.addf %105, %106 : vector<8x256xf32>
      %108 = vector.extract_strided_slice %107 {offsets = [0, 0], sizes = [8, 128], strides = [1, 1]} : vector<8x256xf32> to vector<8x128xf32>
      %109 = vector.extract_strided_slice %107 {offsets = [0, 128], sizes = [8, 128], strides = [1, 1]} : vector<8x256xf32> to vector<8x128xf32>
      %cst_63 = arith.constant dense<0xFF800000> : vector<8xf32>
      %110 = vector.multi_reduction <maximumf>, %109, %cst_63 [1] : vector<8x128xf32> to vector<8xf32>
      %111 = vector.shape_cast %110 : vector<8xf32> to vector<8x1xf32>
      %112 = vector.broadcast %111 : vector<8x1xf32> to vector<8x128xf32>
      %113 = arith.subf %109, %112 : vector<8x128xf32>
      %114 = math.exp %113 : vector<8x128xf32>
      %cst_64 = arith.constant dense<0.000000e+00> : vector<8xf32>
      %115 = vector.multi_reduction <add>, %114, %cst_64 [1] : vector<8x128xf32> to vector<8xf32>
      %116 = vector.shape_cast %115 : vector<8xf32> to vector<8x1xf32>
      %117 = math.log %116 : vector<8x1xf32>
      %118 = vector.broadcast %117 : vector<8x1xf32> to vector<8x128xf32>
      %119 = arith.subf %113, %118 : vector<8x128xf32>
      %c7_65 = arith.constant 7 : index
      %c0_66 = arith.constant 0 : index
      %c0_67 = arith.constant 0 : index
      %120 = vector.load %arg6[%c7_65, %c0_66, %c0_67] : memref<8x8x128xf32, #tpu.memory_space<vmem>>, vector<1x8x128xf32>
      %121 = vector.shape_cast %120 : vector<1x8x128xf32> to vector<8x128xf32>
      %122 = vector.shape_cast %119 : vector<8x128xf32> to vector<1x8x128xf32>
      tpu.vector_store %arg6[%c7_65, %c0_66, %c0_67], %122 {strides = array<i32>} : memref<8x8x128xf32, #tpu.memory_space<vmem>>, vector<1x8x128xf32>,
      %c0_68 = arith.constant 0 : index
      %c0_69 = arith.constant 0 : index
      %123 = vector.load %arg7[%c0_68, %c0_69] : memref<8x128xf32, #tpu.memory_space<vmem>>, vector<8x128xf32>
      tpu.vector_store %arg7[%c0_68, %c0_69], %108 {strides = array<i32>} : memref<8x128xf32, #tpu.memory_space<vmem>>, vector<8x128xf32>,
    } else {
    }
    return
  }
  func.func @transform_0(%arg0: i32, %arg1: i32, %arg2: memref<256xi32, #tpu.memory_space<smem>>) -> (i32, i32) {
    %c0_i32 = arith.constant 0 : i32
    %c0_i32_0 = arith.constant 0 : i32
    return %arg0, %c0_i32 : i32, i32
  }
  func.func @transform_1(%arg0: i32, %arg1: i32, %arg2: memref<256xi32, #tpu.memory_space<smem>>) -> (i32, i32, i32) {
    %c0_i32 = arith.constant 0 : i32
    %c0_i32_0 = arith.constant 0 : i32
    %c0_i32_1 = arith.constant 0 : i32
    %c0_i32_2 = arith.constant 0 : i32
    return %c0_i32, %c0_i32_0, %c0_i32_1 : i32, i32, i32
  }
  func.func @transform_2(%arg0: i32, %arg1: i32, %arg2: memref<256xi32, #tpu.memory_space<smem>>) -> (i32, i32) {
    %c0_i32 = arith.constant 0 : i32
    %c0_i32_0 = arith.constant 0 : i32
    %c0_i32_1 = arith.constant 0 : i32
    return %c0_i32, %c0_i32_0 : i32, i32
  }
  func.func @transform_3(%arg0: i32, %arg1: i32, %arg2: memref<256xi32, #tpu.memory_space<smem>>) -> (i32, i32, i32) {
    %c0_i32 = arith.constant 0 : i32
    %c0_i32_0 = arith.constant 0 : i32
    return %arg1, %arg0, %c0_i32 : i32, i32, i32
  }
  func.func @transform_4(%arg0: i32, %arg1: i32, %arg2: memref<256xi32, #tpu.memory_space<smem>>) -> (i32, i32) {
    %c0_i32 = arith.constant 0 : i32
    %c0_i32_0 = arith.constant 0 : i32
    return %arg0, %c0_i32 : i32, i32
  }
}

</mosaic_0001>

<llo_original>
// kernel: rnn_forward_sequence.1
$region0: #{rnn_forward_sequence.1}
  #allocation0 [shape = 'u32[]', space=smem, size = 0x4, offset = 0x4, fixed_abs, tag = 'smem constant byte address 0x4 - core index']
  #allocation1 [shape = 'u32[144,128]{1,0:T(1,128)}', space=vmem, size = 0x12000, scoped, tag = 'internal scratch']
  #allocation2 [shape = 'f32[8,256]{1,0:T(8,128)}', space=vmem, size = 0x2000, scoped, tag = 'scratch operand']
  #allocation3 [shape = 's32[1]{0}', space=sflag, size = 0x4, scoped, tag = 'scoped memory for rnn_forward_sequence.1']
  #allocation4 [shape = 'u8[1024]{0}', space=smem, size = 0x400, scoped, tag = 'prefetched SMEM operand 0']
  %s0 = inlined_call_operand.vmem [shape: s32[256], index: 0, kind: input, shape index: {}]
  %s1 = inlined_call_operand.vmem [shape: f32[16,128], index: 1, kind: input, shape index: {}]
  %s2 = inlined_call_operand.hbm [shape: f32[64,1,256], index: 2, kind: input, shape index: {}]
  %s3 = inlined_call_operand.hbm [shape: bf16[128,256], index: 3, kind: input, shape index: {}]
  %s4 = inlined_call_operand.vmem [shape: f32[16,16,128], index: 4, kind: output, shape index: {0}]
  %s5 = inlined_call_operand.hbm [shape: f32[16,128], index: 5, kind: output, shape index: {1}]
  %6 = xla_tuple %s4, %s5
  %s7 = sld [smem:[#allocation0]]
  $region131: #{rnn_forward_sequence.1} parent=0
    _
  %s9 = ssub.s32 1, %s7
  %s10 = scalar_select 0, %s9, %s7
  %s11 = sshll.u32 %s0, 4
  %s12 = int_to_ptr.vmem [resolvable:$true] %s11
  %14 = dma.vmem_to_smem %s12, 32, [#allocation4], [#allocation3]
  %15 = dma.done [#allocation3], 32
  %16 = sfence
  $region1: #{rnn_forward_sequence.1} parent=0
    #allocation5 [shape = 'u8[65536]{0}', space=vmem, size = 0x10000, scoped, tag = 'input window, operand 2, single buffered']
    #allocation6 [shape = 's32[2]{0}', space=sflag, size = 0x8, scoped, tag = 'scoped memory for rnn_forward_sequence.1']
    #allocation7 [shape = 's32[2]{0}', space=sflag, size = 0x8, scoped, tag = 'scoped memory for rnn_forward_sequence.1']
    #allocation8 [shape = 'u8[65536]{0}', space=vmem, size = 0x10000, scoped, tag = 'input window, operand 3, single buffered']
    #allocation9 [shape = 's32[1]{0}', space=sflag, size = 0x4, scoped, tag = 'scoped memory for rnn_forward_sequence.1']
    #allocation10 [shape = 'u8[65536]{0}', space=vmem, size = 0x10000, scoped, tag = 'output window, operand 0']
    #allocation11 [shape = 'u8[8192]{0}', space=vmem, size = 0x2000, scoped, tag = 'output window, operand 1']
    %17 = vsyncpa [#allocation6], 0
    %18 = vsyncpa [#allocation9], 0
    %19 = vsyncpa [#allocation7], 0
    %s20 = scalar_lea.sflag [#allocation7], 1
    %21 = vsyncpa %s20, 0
    loop: start=0, step=1, limit=6
    $region2: #{rnn_forward_sequence.1} parent=1 // loop_pre_header
      _
    $region3: #{rnn_forward_sequence.1} parent=1 // loop_header
      %s23 = sphi 0, %s27
      %p24 = scmp.ge.s32.totalorder %s23, 6
      %s30 = sphi 0, %s42
      %s31 = sphi 0, %s38
      %s32 = sphi 0, %s30
      %s33 = sphi 0, %s31
      %s34 = sphi 0, %s32
      %s35 = sphi 0, %s33
      %s45 = sphi 0, %s47
      %s48 = sphi 0, %s45
      %s49 = sphi 0, %s48
      %s65 = sphi 0, %s49
      %s69 = sphi 0, %s69
      %s71 = sphi 0, %s69
      %s72 = sphi 0, %s71
      %s86 = sphi 0, %s72
      %s90 = sphi 0, %s90
      %s92 = sphi 0, %s90
      %s93 = sphi 0, %s92
      %s107 = sphi 0, %s93
      %s115 = sphi 0, %s117
      %s118 = sphi 0, %s115
      %s119 = sphi 0, %s118
      %s135 = sphi 0, %s119
      %s141 = sphi 0, %s143
      %s144 = sphi 0, %s141
      %s145 = sphi 0, %s144
      %s161 = sphi 0, %s145
    $region4: #{rnn_forward_sequence.1} parent=1 // loop_header_branch
      %26 = sbr.rel (%p24) target = $region8
    $region5: #{rnn_forward_sequence.1} parent=1 // loop_body
      %s28 = ssub.s32 %s23, 1
      %s29 = ssub.s32 %s23, 2
      %s36 = sadd.s32 1, %s31
      %p37 = scmp.ge.s32.totalorder %s36, 2
      %s38 = scalar_select %p37, 0, %s36
      %s39 = sadd.s32 1, %s30
      %s40 = scalar_select %p37, %s39, %s30
      %p41 = scmp.ge.s32.totalorder %s40, 2
      %s42 = scalar_select %p41, 0, %s40
      %s43 = ssub.s32 %s30, %s42
      %p44 = scmp.eq.s32.totalorder %s43, 0
      %s46 = sadd.s32 %s45, 1
      %s47 = scalar_select %p44, %s45, %s46
      %p50 = pneg %p44
      %p51 = scmp.eq.s32.totalorder %s23, 3
      %p52 = por %p50, %p51
      %p53 = scmp.ne.s32.totalorder %s45, %s48
      %p54 = scmp.eq.s32.totalorder %s23, 0
      %p55 = por %p53, %p54
      %p56 = scmp.ne.s32.totalorder %s45, %s48
      %p57 = scmp.eq.s32.totalorder %s28, 3
      %p58 = por %p56, %p57
      %p59 = scmp.ne.s32.totalorder %s48, %s49
      %p60 = scmp.eq.s32.totalorder %s28, 0
      %p61 = por %p59, %p60
      %p62 = scmp.ne.s32.totalorder %s48, %s49
      %p63 = scmp.eq.s32.totalorder %s29, 3
      %p64 = por %p62, %p63
      %p66 = scmp.ne.s32.totalorder %s49, %s65
      %p67 = scmp.eq.s32.totalorder %s29, 0
      %p68 = por %p66, %p67
      %s70 = sadd.s32 %s69, 1
      %p73 = scmp.eq.s32.totalorder %s23, 3
      %p74 = scmp.ne.s32.totalorder %s69, %s71
      %p75 = scmp.eq.s32.totalorder %s23, 0
      %p76 = por %p74, %p75
      %p77 = scmp.ne.s32.totalorder %s69, %s71
      %p78 = scmp.eq.s32.totalorder %s28, 3
      %p79 = por %p77, %p78
      %p80 = scmp.ne.s32.totalorder %s71, %s72
      %p81 = scmp.eq.s32.totalorder %s28, 0
      %p82 = por %p80, %p81
      %p83 = scmp.ne.s32.totalorder %s71, %s72
      %p84 = scmp.eq.s32.totalorder %s29, 3
      %p85 = por %p83, %p84
      %p87 = scmp.ne.s32.totalorder %s72, %s86
      %p88 = scmp.eq.s32.totalorder %s29, 0
      %p89 = por %p87, %p88
      %s91 = sadd.s32 %s90, 1
      %p94 = scmp.eq.s32.totalorder %s23, 3
      %p95 = scmp.ne.s32.totalorder %s90, %s92
      %p96 = scmp.eq.s32.totalorder %s23, 0
      %p97 = por %p95, %p96
      %p98 = scmp.ne.s32.totalorder %s90, %s92
      %p99 = scmp.eq.s32.totalorder %s28, 3
      %p100 = por %p98, %p99
      %p101 = scmp.ne.s32.totalorder %s92, %s93
      %p102 = scmp.eq.s32.totalorder %s28, 0
      %p103 = por %p101, %p102
      %p104 = scmp.ne.s32.totalorder %s92, %s93
      %p105 = scmp.eq.s32.totalorder %s29, 3
      %p106 = por %p104, %p105
      %p108 = scmp.ne.s32.totalorder %s93, %s107
      %p109 = scmp.eq.s32.totalorder %s29, 0
      %p110 = por %p108, %p109
      %s111 = ssub.s32 %s31, %s38
      %s112 = ssub.s32 %s30, %s42
      %s113 = sor.u32 %s111, %s112
      %p114 = scmp.eq.s32.totalorder %s113, 0
      %s116 = sadd.s32 %s115, 1
      %s117 = scalar_select %p114, %s115, %s116
      %p120 = pneg %p114
      %p121 = scmp.eq.s32.totalorder %s23, 3
      %p122 = por %p120, %p121
      %p123 = scmp.ne.s32.totalorder %s115, %s118
      %p124 = scmp.eq.s32.totalorder %s23, 0
      %p125 = por %p123, %p124
      %p126 = scmp.ne.s32.totalorder %s115, %s118
      %p127 = scmp.eq.s32.totalorder %s28, 3
      %p128 = por %p126, %p127
      %p129 = scmp.ne.s32.totalorder %s118, %s119
      %p130 = scmp.eq.s32.totalorder %s28, 0
      %p131 = por %p129, %p130
      %p132 = scmp.ne.s32.totalorder %s118, %s119
      %p133 = scmp.eq.s32.totalorder %s29, 3
      %p134 = por %p132, %p133
      %p136 = scmp.ne.s32.totalorder %s119, %s135
      %p137 = scmp.eq.s32.totalorder %s29, 0
      %p138 = por %p136, %p137
      %s139 = ssub.s32 %s30, %s42
      %p140 = scmp.eq.s32.totalorder %s139, 0
      %s142 = sadd.s32 %s141, 1
      %s143 = scalar_select %p140, %s141, %s142
      %p146 = pneg %p140
      %p147 = scmp.eq.s32.totalorder %s23, 3
      %p148 = por %p146, %p147
      %p149 = scmp.ne.s32.totalorder %s141, %s144
      %p150 = scmp.eq.s32.totalorder %s23, 0
      %p151 = por %p149, %p150
      %p152 = scmp.ne.s32.totalorder %s141, %s144
      %p153 = scmp.eq.s32.totalorder %s28, 3
      %p154 = por %p152, %p153
      %p155 = scmp.ne.s32.totalorder %s144, %s145
      %p156 = scmp.eq.s32.totalorder %s28, 0
      %p157 = por %p155, %p156
      %p158 = scmp.ne.s32.totalorder %s144, %s145
      %p159 = scmp.eq.s32.totalorder %s29, 3
      %p160 = por %p158, %p159
      %p162 = scmp.ne.s32.totalorder %s145, %s161
      %p163 = scmp.eq.s32.totalorder %s29, 0
      %p164 = por %p162, %p163
      %p165 = scmp.le.s32.totalorder 1, %s23
      %p166 = scmp.lt.s32.totalorder %s23, 5
      %p167 = pnand %p165, %p166
      %p168 = pneg %p167
      // Predicated region
      $region9: #{rnn_forward_sequence.1} parent=5 // pred_check
        _
      $region10: #{rnn_forward_sequence.1} parent=5 // pred_check_branch
        %170 = sbr.rel (%p167) target = $region12
      $region11: #{rnn_forward_sequence.1} parent=5 // pred_region
        %s171 = ssub.s32 %s23, 1
        // Predicated region
        $region13: #{rnn_forward_sequence.1} parent=11 // pred_check
          %p172 = pneg %p82
        $region14: #{rnn_forward_sequence.1} parent=11 // pred_check_branch
          %174 = sbr.rel (%p172) target = $region16
        $region15: #{rnn_forward_sequence.1} parent=11 // pred_region
          %s176 = ssub.s32 2048, 2048
          %177 = vsyncadd [#allocation6], %s176
          %s178 = sshll.u32 [#allocation5], 4
          %s179 = int_to_ptr.vmem [resolvable:$true] %s178
          %184 = dma.hbm_to_vmem [thread:$0]  %s2, 2048, %s179, [#allocation6], 32, 32, 2
        $region16: #{rnn_forward_sequence.1} parent=11 // pred_fallthru
          _
        // Predicated region
        $region17: #{rnn_forward_sequence.1} parent=11 // pred_check
          %p185 = pneg %p103
        $region18: #{rnn_forward_sequence.1} parent=11 // pred_check_branch
          %187 = sbr.rel (%p185) target = $region20
        $region19: #{rnn_forward_sequence.1} parent=11 // pred_region
          %s189 = ssub.s32 2048, 2048
          %190 = vsyncadd [#allocation9], %s189
          %s191 = sshll.u32 [#allocation8], 4
          %s192 = int_to_ptr.vmem [resolvable:$true] %s191
          %197 = dma.hbm_to_vmem [thread:$0]  %s3, 2048, %s192, [#allocation9], 128, 128, 8
        $region20: #{rnn_forward_sequence.1} parent=11 // pred_fallthru
          _
      $region12: #{rnn_forward_sequence.1} parent=5 // pred_fallthru
        _
      %p198 = scmp.lt.s32.totalorder %s23, 4
      // Predicated region
      $region21: #{rnn_forward_sequence.1} parent=5 // pred_check
        %p199 = pneg %p198
      $region22: #{rnn_forward_sequence.1} parent=5 // pred_check_branch
        %201 = sbr.rel (%p199) target = $region24
      $region23: #{rnn_forward_sequence.1} parent=5 // pred_region
        // Predicated region
        $region25: #{rnn_forward_sequence.1} parent=23 // pred_check
          %p202 = pneg %p55
        $region26: #{rnn_forward_sequence.1} parent=23 // pred_check_branch
          %204 = sbr.rel (%p202) target = $region28
        $region27: #{rnn_forward_sequence.1} parent=23 // pred_region
          %p205 = scmp.lt.s32.totalorder %s30, 1
          %s206 = scalar_select %p205, %s30, 1
          %s207 = smul.addr %s206, 8
          %s208 = scalar_lea.vmem %s1, %s207
        $region28: #{rnn_forward_sequence.1} parent=23 // pred_fallthru
          _
      $region24: #{rnn_forward_sequence.1} parent=5 // pred_fallthru
        _
      %p209 = scmp.le.s32.totalorder 1, %s23
      %p210 = scmp.lt.s32.totalorder %s23, 5
      %p211 = pnand %p209, %p210
      %p212 = pneg %p211
      // Predicated region
      $region29: #{rnn_forward_sequence.1} parent=5 // pred_check
        _
      $region30: #{rnn_forward_sequence.1} parent=5 // pred_check_branch
        %214 = sbr.rel (%p211) target = $region32
      $region31: #{rnn_forward_sequence.1} parent=5 // pred_region
        %s215 = ssub.s32 %s23, 1
        // Predicated region
        $region33: #{rnn_forward_sequence.1} parent=31 // pred_check
          %p216 = pneg %p82
        $region34: #{rnn_forward_sequence.1} parent=31 // pred_check_branch
          %218 = sbr.rel (%p216) target = $region36
        $region35: #{rnn_forward_sequence.1} parent=31 // pred_region
          %219 = dma.done [#allocation6], 2048
        $region36: #{rnn_forward_sequence.1} parent=31 // pred_fallthru
          _
        // Predicated region
        $region37: #{rnn_forward_sequence.1} parent=31 // pred_check
          %p220 = pneg %p103
        $region38: #{rnn_forward_sequence.1} parent=31 // pred_check_branch
          %222 = sbr.rel (%p220) target = $region40
        $region39: #{rnn_forward_sequence.1} parent=31 // pred_region
          %223 = dma.done [#allocation9], 2048
        $region40: #{rnn_forward_sequence.1} parent=31 // pred_fallthru
          _
        %p224 = scmp.lt.s32.totalorder %s32, 1
        %s225 = scalar_select %p224, %s32, 1
        %s226 = smul.addr %s225, 8
        %s227 = scalar_lea.vmem %s1, %s226
        %p228 = pneg %p61
        %p229 = pneg %p58
        %p230 = pneg %p82
        %p231 = pneg %p79
        %p232 = pneg %p103
        %p233 = pneg %p100
        %p234 = pneg %p131
        %p235 = pneg %p128
        %s236 = sand.u32 %s118, 1
        %s237 = sand.u32 %s118, 1
        %s238 = smul.addr %s237, 64
        %s239 = scalar_lea.vmem [#allocation10], %s238
        %p240 = pneg %p157
        %p241 = pneg %p154
        %s242 = sand.u32 %s144, 1
        %s243 = scalar_lea.sflag [#allocation7], %s242
        %s244 = sand.u32 %s144, 1
        %s245 = smul.addr %s244, 8
        %s246 = scalar_lea.vmem [#allocation11], %s245
        %p247 = scmp.lt.s32.totalorder %s32, 1
        %s248 = scalar_select %p247, %s32, 1
        %s249 = smul.addr %s248, 8
        %s250 = scalar_lea.vmem %s1, %s249
        %s251 = smul.u32 8, %s33
        %p253 = scmp.eq.s32.totalorder %s33, 0
        // Predicated region
        $region41: #{rnn_forward_sequence.1} parent=31 // pred_check
          %p254 = pneg %p253
        $region42: #{rnn_forward_sequence.1} parent=31 // pred_check_branch
          %256 = sbr.rel (%p254) target = $region44
        $region43: #{rnn_forward_sequence.1} parent=31 // pred_region
          %v257 = vld [vmem:[%s250] sm:$0xff]
          %258 = vst [vmem:[%s246] sm:$0xff] %v257
        $region44: #{rnn_forward_sequence.1} parent=31 // pred_fallthru
          _
        %v259 = vld [vmem:[#allocation8] sm:$0xff]
        %v260 = vld [vmem:[#allocation8 + $0x8] sm:$0xff]
        %v261 = vld [vmem:[#allocation8 + $0x10] sm:$0xff]
        %v262 = vld [vmem:[#allocation8 + $0x18] sm:$0xff]
        %v263 = vld [vmem:[#allocation8 + $0x20] sm:$0xff]
        %v264 = vld [vmem:[#allocation8 + $0x28] sm:$0xff]
        %v265 = vld [vmem:[#allocation8 + $0x30] sm:$0xff]
        %v266 = vld [vmem:[#allocation8 + $0x38] sm:$0xff]
        %v267 = vld [vmem:[#allocation8 + $0x40] sm:$0xff]
        %v268 = vld [vmem:[#allocation8 + $0x48] sm:$0xff]
        %v269 = vld [vmem:[#allocation8 + $0x50] sm:$0xff]
        %v270 = vld [vmem:[#allocation8 + $0x58] sm:$0xff]
        %v271 = vld [vmem:[#allocation8 + $0x60] sm:$0xff]
        %v272 = vld [vmem:[#allocation8 + $0x68] sm:$0xff]
        %v273 = vld [vmem:[#allocation8 + $0x70] sm:$0xff]
        %v274 = vld [vmem:[#allocation8 + $0x78] sm:$0xff]
        %s275 = smul.u32 %s32, 8
        %s276 = smul.u32 %s33, 8
        %p277 = scmp.lt.s32.totalorder %s276, 10
        // Predicated region
        $region45: #{rnn_forward_sequence.1} parent=31 // pred_check
          %p278 = pneg %p277
        $region46: #{rnn_forward_sequence.1} parent=31 // pred_check_branch
          %280 = sbr.rel (%p278) target = $region48
        $region47: #{rnn_forward_sequence.1} parent=31 // pred_region
          %s281 = smul.u32 %s33, 128
          %s282 = sadd.s32 %s281, %s275
          %s283 = sld [smem:[#allocation4 + %s282]]
          %s284 = smul.u32 %s283, 2
          %s285 = scalar_lea.vmem [#allocation5], %s284
          %v286 = vld [vmem:[%s285] sm:$0x3]
          %v287 = vlaneseq
          %vm288 = vcmp.ge.s32.totalorder %v287, 0
          %vm289 = vcmp.lt.s32.totalorder %v287, 256
          %vm290 = vmand %vm288, %vm289
          %291 = vst.msk [vmem:[#allocation2] ss:$8 sm:$0x3] %vm290, %v286
          %292 = vst.msk [vmem:[#allocation2] ss:$8 sm:$0x0] %vm290, %v286
          %s293 = sadd.s32 %s282, 1
          %s294 = sld [smem:[#allocation4 + %s293]]
          %s295 = smul.u32 %s294, 2
          %s296 = scalar_lea.vmem [#allocation5], %s295
          %v297 = vld [vmem:[%s296] sm:$0x3]
          %s298 = scalar_lea.vmem [#allocation2], 1
          %299 = vst.msk [vmem:[%s298] ss:$8 sm:$0x3] %vm290, %v297
          %300 = vst.msk [vmem:[%s298] ss:$8 sm:$0x0] %vm290, %v297
          %s301 = sadd.s32 %s282, 2
          %s302 = sld [smem:[#allocation4 + %s301]]
          %s303 = smul.u32 %s302, 2
          %s304 = scalar_lea.vmem [#allocation5], %s303
          %v305 = vld [vmem:[%s304] sm:$0x3]
          %s306 = scalar_lea.vmem [#allocation2], 2
          %307 = vst.msk [vmem:[%s306] ss:$8 sm:$0x3] %vm290, %v305
          %308 = vst.msk [vmem:[%s306] ss:$8 sm:$0x0] %vm290, %v305
          %s309 = sadd.s32 %s282, 3
          %s310 = sld [smem:[#allocation4 + %s309]]
          %s311 = smul.u32 %s310, 2
          %s312 = scalar_lea.vmem [#allocation5], %s311
          %v313 = vld [vmem:[%s312] sm:$0x3]
          %s314 = scalar_lea.vmem [#allocation2], 3
          %315 = vst.msk [vmem:[%s314] ss:$8 sm:$0x3] %vm290, %v313
          %316 = vst.msk [vmem:[%s314] ss:$8 sm:$0x0] %vm290, %v313
          %s317 = sadd.s32 %s282, 4
          %s318 = sld [smem:[#allocation4 + %s317]]
          %s319 = smul.u32 %s318, 2
          %s320 = scalar_lea.vmem [#allocation5], %s319
          %v321 = vld [vmem:[%s320] sm:$0x3]
          %s322 = scalar_lea.vmem [#allocation2], 4
          %323 = vst.msk [vmem:[%s322] ss:$8 sm:$0x3] %vm290, %v321
          %324 = vst.msk [vmem:[%s322] ss:$8 sm:$0x0] %vm290, %v321
          %s325 = sadd.s32 %s282, 5
          %s326 = sld [smem:[#allocation4 + %s325]]
          %s327 = smul.u32 %s326, 2
          %s328 = scalar_lea.vmem [#allocation5], %s327
          %v329 = vld [vmem:[%s328] sm:$0x3]
          %s330 = scalar_lea.vmem [#allocation2], 5
          %331 = vst.msk [vmem:[%s330] ss:$8 sm:$0x3] %vm290, %v329
          %332 = vst.msk [vmem:[%s330] ss:$8 sm:$0x0] %vm290, %v329
          %s333 = sadd.s32 %s282, 6
          %s334 = sld [smem:[#allocation4 + %s333]]
          %s335 = smul.u32 %s334, 2
          %s336 = scalar_lea.vmem [#allocation5], %s335
          %v337 = vld [vmem:[%s336] sm:$0x3]
          %s338 = scalar_lea.vmem [#allocation2], 6
          %339 = vst.msk [vmem:[%s338] ss:$8 sm:$0x3] %vm290, %v337
          %340 = vst.msk [vmem:[%s338] ss:$8 sm:$0x0] %vm290, %v337
          %s341 = sadd.s32 %s282, 7
          %s342 = sld [smem:[#allocation4 + %s341]]
          %s343 = smul.u32 %s342, 2
          %s344 = scalar_lea.vmem [#allocation5], %s343
          %v345 = vld [vmem:[%s344] sm:$0x3]
          %s346 = scalar_lea.vmem [#allocation2], 7
          %347 = vst.msk [vmem:[%s346] ss:$8 sm:$0x3] %vm290, %v345
          %348 = vst.msk [vmem:[%s346] ss:$8 sm:$0x0] %vm290, %v345
          %v349 = vld [vmem:[%s246] sm:$0xff]
          %v350 = vpack.c.bf16 %v349, %v349
          %v351 = vld [vmem:[#allocation2] sm:$0xff]
          %v352 = vld [vmem:[#allocation2 + $0x8] sm:$0xff]
          %v369 = vunpack.c.l.b16 %v259
          %v370 = vunpack.c.h.b16 %v259
          %v371 = vunpack.c.l.b16 %v260
          %v372 = vunpack.c.h.b16 %v260
          %v373 = vunpack.c.l.b16 %v261
          %v374 = vunpack.c.h.b16 %v261
          %v375 = vunpack.c.l.b16 %v262
          %v376 = vunpack.c.h.b16 %v262
          %v377 = vunpack.c.l.b16 %v263
          %v378 = vunpack.c.h.b16 %v263
          %v379 = vunpack.c.l.b16 %v264
          %v380 = vunpack.c.h.b16 %v264
          %v381 = vunpack.c.l.b16 %v265
          %v382 = vunpack.c.h.b16 %v265
          %v383 = vunpack.c.l.b16 %v266
          %v384 = vunpack.c.h.b16 %v266
          %v385 = vunpack.c.l.b16 %v267
          %v386 = vunpack.c.h.b16 %v267
          %v387 = vunpack.c.l.b16 %v268
          %v388 = vunpack.c.h.b16 %v268
          %v389 = vunpack.c.l.b16 %v269
          %v390 = vunpack.c.h.b16 %v269
          %v391 = vunpack.c.l.b16 %v270
          %v392 = vunpack.c.h.b16 %v270
          %v393 = vunpack.c.l.b16 %v271
          %v394 = vunpack.c.h.b16 %v271
          %v395 = vunpack.c.l.b16 %v272
          %v396 = vunpack.c.h.b16 %v272
          %v397 = vunpack.c.l.b16 %v273
          %v398 = vunpack.c.h.b16 %v273
          %v399 = vunpack.c.l.b16 %v274
          %v400 = vunpack.c.h.b16 %v274
          %v401 = vpack.c.b16 %v371, %v369
          %v402 = vpack.c.b16 %v372, %v370
          %v403 = vpack.c.b16 %v375, %v373
          %v404 = vpack.c.b16 %v376, %v374
          %v405 = vpack.c.b16 %v379, %v377
          %v406 = vpack.c.b16 %v380, %v378
          %v407 = vpack.c.b16 %v383, %v381
          %v408 = vpack.c.b16 %v384, %v382
          %v409 = vpack.c.b16 %v387, %v385
          %v410 = vpack.c.b16 %v388, %v386
          %v411 = vpack.c.b16 %v391, %v389
          %v412 = vpack.c.b16 %v392, %v390
          %v413 = vpack.c.b16 %v395, %v393
          %v414 = vpack.c.b16 %v396, %v394
          %v415 = vpack.c.b16 %v399, %v397
          %v416 = vpack.c.b16 %v400, %v398
          %433 = vmatprep.subr.bf16.mxu0 %v402
          %434 = vmatpush1.bf16.msra.mxu0 %v401
          %435 = vmatprep.subr.bf16.mxu0 %v404
          %436 = vmatpush1.bf16.msra.mxu0 %v403
          %437 = vmatprep.subr.bf16.mxu0 %v406
          %438 = vmatpush1.bf16.msra.mxu0 %v405
          %439 = vmatprep.subr.bf16.mxu0 %v408
          %440 = vmatpush1.bf16.msra.mxu0 %v407
          %441 = vmatprep.subr.bf16.mxu0 %v410
          %442 = vmatpush1.bf16.msra.mxu0 %v409
          %443 = vmatprep.subr.bf16.mxu0 %v412
          %444 = vmatpush1.bf16.msra.mxu0 %v411
          %445 = vmatprep.subr.bf16.mxu0 %v414
          %446 = vmatpush1.bf16.msra.mxu0 %v413
          %447 = vmatprep.subr.bf16.mxu0 %v416
          %448 = vmatpush1.bf16.msra.mxu0 %v415
          %449 = vmatprep.subr.bf16.mxu0 0
          %450 = vmatpush1.bf16.msra.mxu0 0
          %451 = vmatprep.subr.bf16.mxu0 0
          %452 = vmatpush1.bf16.msra.mxu0 0
          %453 = vmatprep.subr.bf16.mxu0 0
          %454 = vmatpush1.bf16.msra.mxu0 0
          %455 = vmatprep.subr.bf16.mxu0 0
          %456 = vmatpush1.bf16.msra.mxu0 0
          %457 = vmatprep.subr.bf16.mxu0 0
          %458 = vmatpush1.bf16.msra.mxu0 0
          %459 = vmatprep.subr.bf16.mxu0 0
          %460 = vmatpush1.bf16.msra.mxu0 0
          %461 = vmatprep.subr.bf16.mxu0 0
          %462 = vmatpush1.bf16.msra.mxu0 0
          %463 = vmatprep.subr.bf16.mxu0 0
          %464 = vmatpush1.bf16.msra.mxu0 0
          %465 = vmatprep.mubr.bf16.mxu0 0
          %466 = vmatmul.mubr.bf16.gmra.mrb[0].mxu0 %v350
          %v467 = vpop.f32.mrb[0].mxu0
          %v468 = vadd.f32 %v351, %v467
          %v469 = vpop.f32.mrb[0].mxu0
          %v470 = vadd.f32 %v352, %v469
          %v471 = vpop.f32.mrb[0].mxu0
          %v472 = vpop.f32.mrb[0].mxu0
          %473 = vdwg.mxu0
          %474 = vmax.xlane.f32.xlu0 %v470
          %v475 = vpop.xlane.xlu0 %474
          %v476 = vsub.f32 %v470, %v475
          %v477 = vmul.f32 %v476, 1.442695
          %v478 = vpow.pop %v477
          %479 = vadd.xlane.f32.xlu0 %v478
          %v480 = vpop.xlane.xlu0 %479
          %v481 = vlog2.pop %v480
          %v482 = vmul.f32 %v481, 0.6931472
          %v483 = vsub.f32 %v476, %v482
          %484 = vst [vmem:[%s239] sm:$0xff] %v483
          %485 = vst [vmem:[%s246] sm:$0xff] %v468
        $region48: #{rnn_forward_sequence.1} parent=31 // pred_fallthru
          _
        %s486 = sadd.s32 %s276, 1
        %p487 = scmp.lt.s32.totalorder %s486, 10
        // Predicated region
        $region49: #{rnn_forward_sequence.1} parent=31 // pred_check
          %p488 = pneg %p487
        $region50: #{rnn_forward_sequence.1} parent=31 // pred_check_branch
          %490 = sbr.rel (%p488) target = $region52
        $region51: #{rnn_forward_sequence.1} parent=31 // pred_region
          %s491 = smul.u32 %s486, 16
          %s492 = sadd.s32 %s491, %s275
          %s493 = sld [smem:[#allocation4 + %s492]]
          %s494 = smul.u32 %s493, 2
          %s495 = scalar_lea.vmem [#allocation5], %s494
          %v496 = vld [vmem:[%s495] sm:$0x3]
          %v497 = vlaneseq
          %vm498 = vcmp.ge.s32.totalorder %v497, 0
          %vm499 = vcmp.lt.s32.totalorder %v497, 256
          %vm500 = vmand %vm498, %vm499
          %501 = vst.msk [vmem:[#allocation2] ss:$8 sm:$0x3] %vm500, %v496
          %502 = vst.msk [vmem:[#allocation2] ss:$8 sm:$0x0] %vm500, %v496
          %s503 = sadd.s32 %s492, 1
          %s504 = sld [smem:[#allocation4 + %s503]]
          %s505 = smul.u32 %s504, 2
          %s506 = scalar_lea.vmem [#allocation5], %s505
          %v507 = vld [vmem:[%s506] sm:$0x3]
          %s508 = scalar_lea.vmem [#allocation2], 1
          %509 = vst.msk [vmem:[%s508] ss:$8 sm:$0x3] %vm500, %v507
          %510 = vst.msk [vmem:[%s508] ss:$8 sm:$0x0] %vm500, %v507
          %s511 = sadd.s32 %s492, 2
          %s512 = sld [smem:[#allocation4 + %s511]]
          %s513 = smul.u32 %s512, 2
          %s514 = scalar_lea.vmem [#allocation5], %s513
          %v515 = vld [vmem:[%s514] sm:$0x3]
          %s516 = scalar_lea.vmem [#allocation2], 2
          %517 = vst.msk [vmem:[%s516] ss:$8 sm:$0x3] %vm500, %v515
          %518 = vst.msk [vmem:[%s516] ss:$8 sm:$0x0] %vm500, %v515
          %s519 = sadd.s32 %s492, 3
          %s520 = sld [smem:[#allocation4 + %s519]]
          %s521 = smul.u32 %s520, 2
          %s522 = scalar_lea.vmem [#allocation5], %s521
          %v523 = vld [vmem:[%s522] sm:$0x3]
          %s524 = scalar_lea.vmem [#allocation2], 3
          %525 = vst.msk [vmem:[%s524] ss:$8 sm:$0x3] %vm500, %v523
          %526 = vst.msk [vmem:[%s524] ss:$8 sm:$0x0] %vm500, %v523
          %s527 = sadd.s32 %s492, 4
          %s528 = sld [smem:[#allocation4 + %s527]]
          %s529 = smul.u32 %s528, 2
          %s530 = scalar_lea.vmem [#allocation5], %s529
          %v531 = vld [vmem:[%s530] sm:$0x3]
          %s532 = scalar_lea.vmem [#allocation2], 4
          %533 = vst.msk [vmem:[%s532] ss:$8 sm:$0x3] %vm500, %v531
          %534 = vst.msk [vmem:[%s532] ss:$8 sm:$0x0] %vm500, %v531
          %s535 = sadd.s32 %s492, 5
          %s536 = sld [smem:[#allocation4 + %s535]]
          %s537 = smul.u32 %s536, 2
          %s538 = scalar_lea.vmem [#allocation5], %s537
          %v539 = vld [vmem:[%s538] sm:$0x3]
          %s540 = scalar_lea.vmem [#allocation2], 5
          %541 = vst.msk [vmem:[%s540] ss:$8 sm:$0x3] %vm500, %v539
          %542 = vst.msk [vmem:[%s540] ss:$8 sm:$0x0] %vm500, %v539
          %s543 = sadd.s32 %s492, 6
          %s544 = sld [smem:[#allocation4 + %s543]]
          %s545 = smul.u32 %s544, 2
          %s546 = scalar_lea.vmem [#allocation5], %s545
          %v547 = vld [vmem:[%s546] sm:$0x3]
          %s548 = scalar_lea.vmem [#allocation2], 6
          %549 = vst.msk [vmem:[%s548] ss:$8 sm:$0x3] %vm500, %v547
          %550 = vst.msk [vmem:[%s548] ss:$8 sm:$0x0] %vm500, %v547
          %s551 = sadd.s32 %s492, 7
          %s552 = sld [smem:[#allocation4 + %s551]]
          %s553 = smul.u32 %s552, 2
          %s554 = scalar_lea.vmem [#allocation5], %s553
          %v555 = vld [vmem:[%s554] sm:$0x3]
          %s556 = scalar_lea.vmem [#allocation2], 7
          %557 = vst.msk [vmem:[%s556] ss:$8 sm:$0x3] %vm500, %v555
          %558 = vst.msk [vmem:[%s556] ss:$8 sm:$0x0] %vm500, %v555
          %v559 = vld [vmem:[%s246] sm:$0xff]
          %v560 = vpack.c.bf16 %v559, %v559
          %v561 = vld [vmem:[#allocation2] sm:$0xff]
          %v562 = vld [vmem:[#allocation2 + $0x8] sm:$0xff]
          %v579 = vunpack.c.l.b16 %v259
          %v580 = vunpack.c.h.b16 %v259
          %v581 = vunpack.c.l.b16 %v260
          %v582 = vunpack.c.h.b16 %v260
          %v583 = vunpack.c.l.b16 %v261
          %v584 = vunpack.c.h.b16 %v261
          %v585 = vunpack.c.l.b16 %v262
          %v586 = vunpack.c.h.b16 %v262
          %v587 = vunpack.c.l.b16 %v263
          %v588 = vunpack.c.h.b16 %v263
          %v589 = vunpack.c.l.b16 %v264
          %v590 = vunpack.c.h.b16 %v264
          %v591 = vunpack.c.l.b16 %v265
          %v592 = vunpack.c.h.b16 %v265
          %v593 = vunpack.c.l.b16 %v266
          %v594 = vunpack.c.h.b16 %v266
          %v595 = vunpack.c.l.b16 %v267
          %v596 = vunpack.c.h.b16 %v267
          %v597 = vunpack.c.l.b16 %v268
          %v598 = vunpack.c.h.b16 %v268
          %v599 = vunpack.c.l.b16 %v269
          %v600 = vunpack.c.h.b16 %v269
          %v601 = vunpack.c.l.b16 %v270
          %v602 = vunpack.c.h.b16 %v270
          %v603 = vunpack.c.l.b16 %v271
          %v604 = vunpack.c.h.b16 %v271
          %v605 = vunpack.c.l.b16 %v272
          %v606 = vunpack.c.h.b16 %v272
          %v607 = vunpack.c.l.b16 %v273
          %v608 = vunpack.c.h.b16 %v273
          %v609 = vunpack.c.l.b16 %v274
          %v610 = vunpack.c.h.b16 %v274
          %v611 = vpack.c.b16 %v581, %v579
          %v612 = vpack.c.b16 %v582, %v580
          %v613 = vpack.c.b16 %v585, %v583
          %v614 = vpack.c.b16 %v586, %v584
          %v615 = vpack.c.b16 %v589, %v587
          %v616 = vpack.c.b16 %v590, %v588
          %v617 = vpack.c.b16 %v593, %v591
          %v618 = vpack.c.b16 %v594, %v592
          %v619 = vpack.c.b16 %v597, %v595
          %v620 = vpack.c.b16 %v598, %v596
          %v621 = vpack.c.b16 %v601, %v599
          %v622 = vpack.c.b16 %v602, %v600
          %v623 = vpack.c.b16 %v605, %v603
          %v624 = vpack.c.b16 %v606, %v604
          %v625 = vpack.c.b16 %v609, %v607
          %v626 = vpack.c.b16 %v610, %v608
          %643 = vmatprep.subr.bf16.mxu0 %v612
          %644 = vmatpush1.bf16.msra.mxu0 %v611
          %645 = vmatprep.subr.bf16.mxu0 %v614
          %646 = vmatpush1.bf16.msra.mxu0 %v613
          %647 = vmatprep.subr.bf16.mxu0 %v616
          %648 = vmatpush1.bf16.msra.mxu0 %v615
          %649 = vmatprep.subr.bf16.mxu0 %v618
          %650 = vmatpush1.bf16.msra.mxu0 %v617
          %651 = vmatprep.subr.bf16.mxu0 %v620
          %652 = vmatpush1.bf16.msra.mxu0 %v619
          %653 = vmatprep.subr.bf16.mxu0 %v622
          %654 = vmatpush1.bf16.msra.mxu0 %v621
          %655 = vmatprep.subr.bf16.mxu0 %v624
          %656 = vmatpush1.bf16.msra.mxu0 %v623
          %657 = vmatprep.subr.bf16.mxu0 %v626
          %658 = vmatpush1.bf16.msra.mxu0 %v625
          %659 = vmatprep.subr.bf16.mxu0 0
          %660 = vmatpush1.bf16.msra.mxu0 0
          %661 = vmatprep.subr.bf16.mxu0 0
          %662 = vmatpush1.bf16.msra.mxu0 0
          %663 = vmatprep.subr.bf16.mxu0 0
          %664 = vmatpush1.bf16.msra.mxu0 0
          %665 = vmatprep.subr.bf16.mxu0 0
          %666 = vmatpush1.bf16.msra.mxu0 0
          %667 = vmatprep.subr.bf16.mxu0 0
          %668 = vmatpush1.bf16.msra.mxu0 0
          %669 = vmatprep.subr.bf16.mxu0 0
          %670 = vmatpush1.bf16.msra.mxu0 0
          %671 = vmatprep.subr.bf16.mxu0 0
          %672 = vmatpush1.bf16.msra.mxu0 0
          %673 = vmatprep.subr.bf16.mxu0 0
          %674 = vmatpush1.bf16.msra.mxu0 0
          %675 = vmatprep.mubr.bf16.mxu0 0
          %676 = vmatmul.mubr.bf16.gmra.mrb[0].mxu0 %v560
          %v677 = vpop.f32.mrb[0].mxu0
          %v678 = vadd.f32 %v561, %v677
          %v679 = vpop.f32.mrb[0].mxu0
          %v680 = vadd.f32 %v562, %v679
          %v681 = vpop.f32.mrb[0].mxu0
          %v682 = vpop.f32.mrb[0].mxu0
          %683 = vdwg.mxu0
          %684 = vmax.xlane.f32.xlu0 %v680
          %v685 = vpop.xlane.xlu0 %684
          %v686 = vsub.f32 %v680, %v685
          %v687 = vmul.f32 %v686, 1.442695
          %v688 = vpow.pop %v687
          %689 = vadd.xlane.f32.xlu0 %v688
          %v690 = vpop.xlane.xlu0 %689
          %v691 = vlog2.pop %v690
          %v692 = vmul.f32 %v691, 0.6931472
          %v693 = vsub.f32 %v686, %v692
          %s694 = scalar_lea.vmem %s239, 8 [#allocation10]
          %695 = vst [vmem:[%s694] sm:$0xff] %v693
          %696 = vst [vmem:[%s246] sm:$0xff] %v678
        $region52: #{rnn_forward_sequence.1} parent=31 // pred_fallthru
          _
        %s697 = sadd.s32 %s276, 2
        %p698 = scmp.lt.s32.totalorder %s697, 10
        // Predicated region
        $region53: #{rnn_forward_sequence.1} parent=31 // pred_check
          %p699 = pneg %p698
        $region54: #{rnn_forward_sequence.1} parent=31 // pred_check_branch
          %701 = sbr.rel (%p699) target = $region56
        $region55: #{rnn_forward_sequence.1} parent=31 // pred_region
          %s702 = smul.u32 %s697, 16
          %s703 = sadd.s32 %s702, %s275
          %s704 = sld [smem:[#allocation4 + %s703]]
          %s705 = smul.u32 %s704, 2
          %s706 = scalar_lea.vmem [#allocation5], %s705
          %v707 = vld [vmem:[%s706] sm:$0x3]
          %v708 = vlaneseq
          %vm709 = vcmp.ge.s32.totalorder %v708, 0
          %vm710 = vcmp.lt.s32.totalorder %v708, 256
          %vm711 = vmand %vm709, %vm710
          %712 = vst.msk [vmem:[#allocation2] ss:$8 sm:$0x3] %vm711, %v707
          %713 = vst.msk [vmem:[#allocation2] ss:$8 sm:$0x0] %vm711, %v707
          %s714 = sadd.s32 %s703, 1
          %s715 = sld [smem:[#allocation4 + %s714]]
          %s716 = smul.u32 %s715, 2
          %s717 = scalar_lea.vmem [#allocation5], %s716
          %v718 = vld [vmem:[%s717] sm:$0x3]
          %s719 = scalar_lea.vmem [#allocation2], 1
          %720 = vst.msk [vmem:[%s719] ss:$8 sm:$0x3] %vm711, %v718
          %721 = vst.msk [vmem:[%s719] ss:$8 sm:$0x0] %vm711, %v718
          %s722 = sadd.s32 %s703, 2
          %s723 = sld [smem:[#allocation4 + %s722]]
          %s724 = smul.u32 %s723, 2
          %s725 = scalar_lea.vmem [#allocation5], %s724
          %v726 = vld [vmem:[%s725] sm:$0x3]
          %s727 = scalar_lea.vmem [#allocation2], 2
          %728 = vst.msk [vmem:[%s727] ss:$8 sm:$0x3] %vm711, %v726
          %729 = vst.msk [vmem:[%s727] ss:$8 sm:$0x0] %vm711, %v726
          %s730 = sadd.s32 %s703, 3
          %s731 = sld [smem:[#allocation4 + %s730]]
          %s732 = smul.u32 %s731, 2
          %s733 = scalar_lea.vmem [#allocation5], %s732
          %v734 = vld [vmem:[%s733] sm:$0x3]
          %s735 = scalar_lea.vmem [#allocation2], 3
          %736 = vst.msk [vmem:[%s735] ss:$8 sm:$0x3] %vm711, %v734
          %737 = vst.msk [vmem:[%s735] ss:$8 sm:$0x0] %vm711, %v734
          %s738 = sadd.s32 %s703, 4
          %s739 = sld [smem:[#allocation4 + %s738]]
          %s740 = smul.u32 %s739, 2
          %s741 = scalar_lea.vmem [#allocation5], %s740
          %v742 = vld [vmem:[%s741] sm:$0x3]
          %s743 = scalar_lea.vmem [#allocation2], 4
          %744 = vst.msk [vmem:[%s743] ss:$8 sm:$0x3] %vm711, %v742
          %745 = vst.msk [vmem:[%s743] ss:$8 sm:$0x0] %vm711, %v742
          %s746 = sadd.s32 %s703, 5
          %s747 = sld [smem:[#allocation4 + %s746]]
          %s748 = smul.u32 %s747, 2
          %s749 = scalar_lea.vmem [#allocation5], %s748
          %v750 = vld [vmem:[%s749] sm:$0x3]
          %s751 = scalar_lea.vmem [#allocation2], 5
          %752 = vst.msk [vmem:[%s751] ss:$8 sm:$0x3] %vm711, %v750
          %753 = vst.msk [vmem:[%s751] ss:$8 sm:$0x0] %vm711, %v750
          %s754 = sadd.s32 %s703, 6
          %s755 = sld [smem:[#allocation4 + %s754]]
          %s756 = smul.u32 %s755, 2
          %s757 = scalar_lea.vmem [#allocation5], %s756
          %v758 = vld [vmem:[%s757] sm:$0x3]
          %s759 = scalar_lea.vmem [#allocation2], 6
          %760 = vst.msk [vmem:[%s759] ss:$8 sm:$0x3] %vm711, %v758
          %761 = vst.msk [vmem:[%s759] ss:$8 sm:$0x0] %vm711, %v758
          %s762 = sadd.s32 %s703, 7
          %s763 = sld [smem:[#allocation4 + %s762]]
          %s764 = smul.u32 %s763, 2
          %s765 = scalar_lea.vmem [#allocation5], %s764
          %v766 = vld [vmem:[%s765] sm:$0x3]
          %s767 = scalar_lea.vmem [#allocation2], 7
          %768 = vst.msk [vmem:[%s767] ss:$8 sm:$0x3] %vm711, %v766
          %769 = vst.msk [vmem:[%s767] ss:$8 sm:$0x0] %vm711, %v766
          %v770 = vld [vmem:[%s246] sm:$0xff]
          %v771 = vpack.c.bf16 %v770, %v770
          %v772 = vld [vmem:[#allocation2] sm:$0xff]
          %v773 = vld [vmem:[#allocation2 + $0x8] sm:$0xff]
          %v790 = vunpack.c.l.b16 %v259
          %v791 = vunpack.c.h.b16 %v259
          %v792 = vunpack.c.l.b16 %v260
          %v793 = vunpack.c.h.b16 %v260
          %v794 = vunpack.c.l.b16 %v261
          %v795 = vunpack.c.h.b16 %v261
          %v796 = vunpack.c.l.b16 %v262
          %v797 = vunpack.c.h.b16 %v262
          %v798 = vunpack.c.l.b16 %v263
          %v799 = vunpack.c.h.b16 %v263
          %v800 = vunpack.c.l.b16 %v264
          %v801 = vunpack.c.h.b16 %v264
          %v802 = vunpack.c.l.b16 %v265
          %v803 = vunpack.c.h.b16 %v265
          %v804 = vunpack.c.l.b16 %v266
          %v805 = vunpack.c.h.b16 %v266
          %v806 = vunpack.c.l.b16 %v267
          %v807 = vunpack.c.h.b16 %v267
          %v808 = vunpack.c.l.b16 %v268
          %v809 = vunpack.c.h.b16 %v268
          %v810 = vunpack.c.l.b16 %v269
          %v811 = vunpack.c.h.b16 %v269
          %v812 = vunpack.c.l.b16 %v270
          %v813 = vunpack.c.h.b16 %v270
          %v814 = vunpack.c.l.b16 %v271
          %v815 = vunpack.c.h.b16 %v271
          %v816 = vunpack.c.l.b16 %v272
          %v817 = vunpack.c.h.b16 %v272
          %v818 = vunpack.c.l.b16 %v273
          %v819 = vunpack.c.h.b16 %v273
          %v820 = vunpack.c.l.b16 %v274
          %v821 = vunpack.c.h.b16 %v274
          %v822 = vpack.c.b16 %v792, %v790
          %v823 = vpack.c.b16 %v793, %v791
          %v824 = vpack.c.b16 %v796, %v794
          %v825 = vpack.c.b16 %v797, %v795
          %v826 = vpack.c.b16 %v800, %v798
          %v827 = vpack.c.b16 %v801, %v799
          %v828 = vpack.c.b16 %v804, %v802
          %v829 = vpack.c.b16 %v805, %v803
          %v830 = vpack.c.b16 %v808, %v806
          %v831 = vpack.c.b16 %v809, %v807
          %v832 = vpack.c.b16 %v812, %v810
          %v833 = vpack.c.b16 %v813, %v811
          %v834 = vpack.c.b16 %v816, %v814
          %v835 = vpack.c.b16 %v817, %v815
          %v836 = vpack.c.b16 %v820, %v818
          %v837 = vpack.c.b16 %v821, %v819
          %854 = vmatprep.subr.bf16.mxu0 %v823
          %855 = vmatpush1.bf16.msra.mxu0 %v822
          %856 = vmatprep.subr.bf16.mxu0 %v825
          %857 = vmatpush1.bf16.msra.mxu0 %v824
          %858 = vmatprep.subr.bf16.mxu0 %v827
          %859 = vmatpush1.bf16.msra.mxu0 %v826
          %860 = vmatprep.subr.bf16.mxu0 %v829
          %861 = vmatpush1.bf16.msra.mxu0 %v828
          %862 = vmatprep.subr.bf16.mxu0 %v831
          %863 = vmatpush1.bf16.msra.mxu0 %v830
          %864 = vmatprep.subr.bf16.mxu0 %v833
          %865 = vmatpush1.bf16.msra.mxu0 %v832
          %866 = vmatprep.subr.bf16.mxu0 %v835
          %867 = vmatpush1.bf16.msra.mxu0 %v834
          %868 = vmatprep.subr.bf16.mxu0 %v837
          %869 = vmatpush1.bf16.msra.mxu0 %v836
          %870 = vmatprep.subr.bf16.mxu0 0
          %871 = vmatpush1.bf16.msra.mxu0 0
          %872 = vmatprep.subr.bf16.mxu0 0
          %873 = vmatpush1.bf16.msra.mxu0 0
          %874 = vmatprep.subr.bf16.mxu0 0
          %875 = vmatpush1.bf16.msra.mxu0 0
          %876 = vmatprep.subr.bf16.mxu0 0
          %877 = vmatpush1.bf16.msra.mxu0 0
          %878 = vmatprep.subr.bf16.mxu0 0
          %879 = vmatpush1.bf16.msra.mxu0 0
          %880 = vmatprep.subr.bf16.mxu0 0
          %881 = vmatpush1.bf16.msra.mxu0 0
          %882 = vmatprep.subr.bf16.mxu0 0
          %883 = vmatpush1.bf16.msra.mxu0 0
          %884 = vmatprep.subr.bf16.mxu0 0
          %885 = vmatpush1.bf16.msra.mxu0 0
          %886 = vmatprep.mubr.bf16.mxu0 0
          %887 = vmatmul.mubr.bf16.gmra.mrb[0].mxu0 %v771
          %v888 = vpop.f32.mrb[0].mxu0
          %v889 = vadd.f32 %v772, %v888
          %v890 = vpop.f32.mrb[0].mxu0
          %v891 = vadd.f32 %v773, %v890
          %v892 = vpop.f32.mrb[0].mxu0
          %v893 = vpop.f32.mrb[0].mxu0
          %894 = vdwg.mxu0
          %895 = vmax.xlane.f32.xlu0 %v891
          %v896 = vpop.xlane.xlu0 %895
          %v897 = vsub.f32 %v891, %v896
          %v898 = vmul.f32 %v897, 1.442695
          %v899 = vpow.pop %v898
          %900 = vadd.xlane.f32.xlu0 %v899
          %v901 = vpop.xlane.xlu0 %900
          %v902 = vlog2.pop %v901
          %v903 = vmul.f32 %v902, 0.6931472
          %v904 = vsub.f32 %v897, %v903
          %s905 = scalar_lea.vmem %s239, 16 [#allocation10]
          %906 = vst [vmem:[%s905] sm:$0xff] %v904
          %907 = vst [vmem:[%s246] sm:$0xff] %v889
        $region56: #{rnn_forward_sequence.1} parent=31 // pred_fallthru
          _
        %s908 = sadd.s32 %s276, 3
        %p909 = scmp.lt.s32.totalorder %s908, 10
        // Predicated region
        $region57: #{rnn_forward_sequence.1} parent=31 // pred_check
          %p910 = pneg %p909
        $region58: #{rnn_forward_sequence.1} parent=31 // pred_check_branch
          %912 = sbr.rel (%p910) target = $region60
        $region59: #{rnn_forward_sequence.1} parent=31 // pred_region
          %s913 = smul.u32 %s908, 16
          %s914 = sadd.s32 %s913, %s275
          %s915 = sld [smem:[#allocation4 + %s914]]
          %s916 = smul.u32 %s915, 2
          %s917 = scalar_lea.vmem [#allocation5], %s916
          %v918 = vld [vmem:[%s917] sm:$0x3]
          %v919 = vlaneseq
          %vm920 = vcmp.ge.s32.totalorder %v919, 0
          %vm921 = vcmp.lt.s32.totalorder %v919, 256
          %vm922 = vmand %vm920, %vm921
          %923 = vst.msk [vmem:[#allocation2] ss:$8 sm:$0x3] %vm922, %v918
          %924 = vst.msk [vmem:[#allocation2] ss:$8 sm:$0x0] %vm922, %v918
          %s925 = sadd.s32 %s914, 1
          %s926 = sld [smem:[#allocation4 + %s925]]
          %s927 = smul.u32 %s926, 2
          %s928 = scalar_lea.vmem [#allocation5], %s927
          %v929 = vld [vmem:[%s928] sm:$0x3]
          %s930 = scalar_lea.vmem [#allocation2], 1
          %931 = vst.msk [vmem:[%s930] ss:$8 sm:$0x3] %vm922, %v929
          %932 = vst.msk [vmem:[%s930] ss:$8 sm:$0x0] %vm922, %v929
          %s933 = sadd.s32 %s914, 2
          %s934 = sld [smem:[#allocation4 + %s933]]
          %s935 = smul.u32 %s934, 2
          %s936 = scalar_lea.vmem [#allocation5], %s935
          %v937 = vld [vmem:[%s936] sm:$0x3]
          %s938 = scalar_lea.vmem [#allocation2], 2
          %939 = vst.msk [vmem:[%s938] ss:$8 sm:$0x3] %vm922, %v937
          %940 = vst.msk [vmem:[%s938] ss:$8 sm:$0x0] %vm922, %v937
          %s941 = sadd.s32 %s914, 3
          %s942 = sld [smem:[#allocation4 + %s941]]
          %s943 = smul.u32 %s942, 2
          %s944 = scalar_lea.vmem [#allocation5], %s943
          %v945 = vld [vmem:[%s944] sm:$0x3]
          %s946 = scalar_lea.vmem [#allocation2], 3
          %947 = vst.msk [vmem:[%s946] ss:$8 sm:$0x3] %vm922, %v945
          %948 = vst.msk [vmem:[%s946] ss:$8 sm:$0x0] %vm922, %v945
          %s949 = sadd.s32 %s914, 4
          %s950 = sld [smem:[#allocation4 + %s949]]
          %s951 = smul.u32 %s950, 2
          %s952 = scalar_lea.vmem [#allocation5], %s951
          %v953 = vld [vmem:[%s952] sm:$0x3]
          %s954 = scalar_lea.vmem [#allocation2], 4
          %955 = vst.msk [vmem:[%s954] ss:$8 sm:$0x3] %vm922, %v953
          %956 = vst.msk [vmem:[%s954] ss:$8 sm:$0x0] %vm922, %v953
          %s957 = sadd.s32 %s914, 5
          %s958 = sld [smem:[#allocation4 + %s957]]
          %s959 = smul.u32 %s958, 2
          %s960 = scalar_lea.vmem [#allocation5], %s959
          %v961 = vld [vmem:[%s960] sm:$0x3]
          %s962 = scalar_lea.vmem [#allocation2], 5
          %963 = vst.msk [vmem:[%s962] ss:$8 sm:$0x3] %vm922, %v961
          %964 = vst.msk [vmem:[%s962] ss:$8 sm:$0x0] %vm922, %v961
          %s965 = sadd.s32 %s914, 6
          %s966 = sld [smem:[#allocation4 + %s965]]
          %s967 = smul.u32 %s966, 2
          %s968 = scalar_lea.vmem [#allocation5], %s967
          %v969 = vld [vmem:[%s968] sm:$0x3]
          %s970 = scalar_lea.vmem [#allocation2], 6
          %971 = vst.msk [vmem:[%s970] ss:$8 sm:$0x3] %vm922, %v969
          %972 = vst.msk [vmem:[%s970] ss:$8 sm:$0x0] %vm922, %v969
          %s973 = sadd.s32 %s914, 7
          %s974 = sld [smem:[#allocation4 + %s973]]
          %s975 = smul.u32 %s974, 2
          %s976 = scalar_lea.vmem [#allocation5], %s975
          %v977 = vld [vmem:[%s976] sm:$0x3]
          %s978 = scalar_lea.vmem [#allocation2], 7
          %979 = vst.msk [vmem:[%s978] ss:$8 sm:$0x3] %vm922, %v977
          %980 = vst.msk [vmem:[%s978] ss:$8 sm:$0x0] %vm922, %v977
          %v981 = vld [vmem:[%s246] sm:$0xff]
          %v982 = vpack.c.bf16 %v981, %v981
          %v983 = vld [vmem:[#allocation2] sm:$0xff]
          %v984 = vld [vmem:[#allocation2 + $0x8] sm:$0xff]
          %v1001 = vunpack.c.l.b16 %v259
          %v1002 = vunpack.c.h.b16 %v259
          %v1003 = vunpack.c.l.b16 %v260
          %v1004 = vunpack.c.h.b16 %v260
          %v1005 = vunpack.c.l.b16 %v261
          %v1006 = vunpack.c.h.b16 %v261
          %v1007 = vunpack.c.l.b16 %v262
          %v1008 = vunpack.c.h.b16 %v262
          %v1009 = vunpack.c.l.b16 %v263
          %v1010 = vunpack.c.h.b16 %v263
          %v1011 = vunpack.c.l.b16 %v264
          %v1012 = vunpack.c.h.b16 %v264
          %v1013 = vunpack.c.l.b16 %v265
          %v1014 = vunpack.c.h.b16 %v265
          %v1015 = vunpack.c.l.b16 %v266
          %v1016 = vunpack.c.h.b16 %v266
          %v1017 = vunpack.c.l.b16 %v267
          %v1018 = vunpack.c.h.b16 %v267
          %v1019 = vunpack.c.l.b16 %v268
          %v1020 = vunpack.c.h.b16 %v268
          %v1021 = vunpack.c.l.b16 %v269
          %v1022 = vunpack.c.h.b16 %v269
          %v1023 = vunpack.c.l.b16 %v270
          %v1024 = vunpack.c.h.b16 %v270
          %v1025 = vunpack.c.l.b16 %v271
          %v1026 = vunpack.c.h.b16 %v271
          %v1027 = vunpack.c.l.b16 %v272
          %v1028 = vunpack.c.h.b16 %v272
          %v1029 = vunpack.c.l.b16 %v273
          %v1030 = vunpack.c.h.b16 %v273
          %v1031 = vunpack.c.l.b16 %v274
          %v1032 = vunpack.c.h.b16 %v274
          %v1033 = vpack.c.b16 %v1003, %v1001
          %v1034 = vpack.c.b16 %v1004, %v1002
          %v1035 = vpack.c.b16 %v1007, %v1005
          %v1036 = vpack.c.b16 %v1008, %v1006
          %v1037 = vpack.c.b16 %v1011, %v1009
          %v1038 = vpack.c.b16 %v1012, %v1010
          %v1039 = vpack.c.b16 %v1015, %v1013
          %v1040 = vpack.c.b16 %v1016, %v1014
          %v1041 = vpack.c.b16 %v1019, %v1017
          %v1042 = vpack.c.b16 %v1020, %v1018
          %v1043 = vpack.c.b16 %v1023, %v1021
          %v1044 = vpack.c.b16 %v1024, %v1022
          %v1045 = vpack.c.b16 %v1027, %v1025
          %v1046 = vpack.c.b16 %v1028, %v1026
          %v1047 = vpack.c.b16 %v1031, %v1029
          %v1048 = vpack.c.b16 %v1032, %v1030
          %1065 = vmatprep.subr.bf16.mxu0 %v1034
          %1066 = vmatpush1.bf16.msra.mxu0 %v1033
          %1067 = vmatprep.subr.bf16.mxu0 %v1036
          %1068 = vmatpush1.bf16.msra.mxu0 %v1035
          %1069 = vmatprep.subr.bf16.mxu0 %v1038
          %1070 = vmatpush1.bf16.msra.mxu0 %v1037
          %1071 = vmatprep.subr.bf16.mxu0 %v1040
          %1072 = vmatpush1.bf16.msra.mxu0 %v1039
          %1073 = vmatprep.subr.bf16.mxu0 %v1042
          %1074 = vmatpush1.bf16.msra.mxu0 %v1041
          %1075 = vmatprep.subr.bf16.mxu0 %v1044
          %1076 = vmatpush1.bf16.msra.mxu0 %v1043
          %1077 = vmatprep.subr.bf16.mxu0 %v1046
          %1078 = vmatpush1.bf16.msra.mxu0 %v1045
          %1079 = vmatprep.subr.bf16.mxu0 %v1048
          %1080 = vmatpush1.bf16.msra.mxu0 %v1047
          %1081 = vmatprep.subr.bf16.mxu0 0
          %1082 = vmatpush1.bf16.msra.mxu0 0
          %1083 = vmatprep.subr.bf16.mxu0 0
          %1084 = vmatpush1.bf16.msra.mxu0 0
          %1085 = vmatprep.subr.bf16.mxu0 0
          %1086 = vmatpush1.bf16.msra.mxu0 0
          %1087 = vmatprep.subr.bf16.mxu0 0
          %1088 = vmatpush1.bf16.msra.mxu0 0
          %1089 = vmatprep.subr.bf16.mxu0 0
          %1090 = vmatpush1.bf16.msra.mxu0 0
          %1091 = vmatprep.subr.bf16.mxu0 0
          %1092 = vmatpush1.bf16.msra.mxu0 0
          %1093 = vmatprep.subr.bf16.mxu0 0
          %1094 = vmatpush1.bf16.msra.mxu0 0
          %1095 = vmatprep.subr.bf16.mxu0 0
          %1096 = vmatpush1.bf16.msra.mxu0 0
          %1097 = vmatprep.mubr.bf16.mxu0 0
          %1098 = vmatmul.mubr.bf16.gmra.mrb[0].mxu0 %v982
          %v1099 = vpop.f32.mrb[0].mxu0
          %v1100 = vadd.f32 %v983, %v1099
          %v1101 = vpop.f32.mrb[0].mxu0
          %v1102 = vadd.f32 %v984, %v1101
          %v1103 = vpop.f32.mrb[0].mxu0
          %v1104 = vpop.f32.mrb[0].mxu0
          %1105 = vdwg.mxu0
          %1106 = vmax.xlane.f32.xlu0 %v1102
          %v1107 = vpop.xlane.xlu0 %1106
          %v1108 = vsub.f32 %v1102, %v1107
          %v1109 = vmul.f32 %v1108, 1.442695
          %v1110 = vpow.pop %v1109
          %1111 = vadd.xlane.f32.xlu0 %v1110
          %v1112 = vpop.xlane.xlu0 %1111
          %v1113 = vlog2.pop %v1112
          %v1114 = vmul.f32 %v1113, 0.6931472
          %v1115 = vsub.f32 %v1108, %v1114
          %s1116 = scalar_lea.vmem %s239, 24 [#allocation10]
          %1117 = vst [vmem:[%s1116] sm:$0xff] %v1115
          %1118 = vst [vmem:[%s246] sm:$0xff] %v1100
        $region60: #{rnn_forward_sequence.1} parent=31 // pred_fallthru
          _
        %s1119 = sadd.s32 %s276, 4
        %p1120 = scmp.lt.s32.totalorder %s1119, 10
        // Predicated region
        $region61: #{rnn_forward_sequence.1} parent=31 // pred_check
          %p1121 = pneg %p1120
        $region62: #{rnn_forward_sequence.1} parent=31 // pred_check_branch
          %1123 = sbr.rel (%p1121) target = $region64
        $region63: #{rnn_forward_sequence.1} parent=31 // pred_region
          %s1124 = smul.u32 %s1119, 16
          %s1125 = sadd.s32 %s1124, %s275
          %s1126 = sld [smem:[#allocation4 + %s1125]]
          %s1127 = smul.u32 %s1126, 2
          %s1128 = scalar_lea.vmem [#allocation5], %s1127
          %v1129 = vld [vmem:[%s1128] sm:$0x3]
          %v1130 = vlaneseq
          %vm1131 = vcmp.ge.s32.totalorder %v1130, 0
          %vm1132 = vcmp.lt.s32.totalorder %v1130, 256
          %vm1133 = vmand %vm1131, %vm1132
          %1134 = vst.msk [vmem:[#allocation2] ss:$8 sm:$0x3] %vm1133, %v1129
          %1135 = vst.msk [vmem:[#allocation2] ss:$8 sm:$0x0] %vm1133, %v1129
          %s1136 = sadd.s32 %s1125, 1
          %s1137 = sld [smem:[#allocation4 + %s1136]]
          %s1138 = smul.u32 %s1137, 2
          %s1139 = scalar_lea.vmem [#allocation5], %s1138
          %v1140 = vld [vmem:[%s1139] sm:$0x3]
          %s1141 = scalar_lea.vmem [#allocation2], 1
          %1142 = vst.msk [vmem:[%s1141] ss:$8 sm:$0x3] %vm1133, %v1140
          %1143 = vst.msk [vmem:[%s1141] ss:$8 sm:$0x0] %vm1133, %v1140
          %s1144 = sadd.s32 %s1125, 2
          %s1145 = sld [smem:[#allocation4 + %s1144]]
          %s1146 = smul.u32 %s1145, 2
          %s1147 = scalar_lea.vmem [#allocation5], %s1146
          %v1148 = vld [vmem:[%s1147] sm:$0x3]
          %s1149 = scalar_lea.vmem [#allocation2], 2
          %1150 = vst.msk [vmem:[%s1149] ss:$8 sm:$0x3] %vm1133, %v1148
          %1151 = vst.msk [vmem:[%s1149] ss:$8 sm:$0x0] %vm1133, %v1148
          %s1152 = sadd.s32 %s1125, 3
          %s1153 = sld [smem:[#allocation4 + %s1152]]
          %s1154 = smul.u32 %s1153, 2
          %s1155 = scalar_lea.vmem [#allocation5], %s1154
          %v1156 = vld [vmem:[%s1155] sm:$0x3]
          %s1157 = scalar_lea.vmem [#allocation2], 3
          %1158 = vst.msk [vmem:[%s1157] ss:$8 sm:$0x3] %vm1133, %v1156
          %1159 = vst.msk [vmem:[%s1157] ss:$8 sm:$0x0] %vm1133, %v1156
          %s1160 = sadd.s32 %s1125, 4
          %s1161 = sld [smem:[#allocation4 + %s1160]]
          %s1162 = smul.u32 %s1161, 2
          %s1163 = scalar_lea.vmem [#allocation5], %s1162
          %v1164 = vld [vmem:[%s1163] sm:$0x3]
          %s1165 = scalar_lea.vmem [#allocation2], 4
          %1166 = vst.msk [vmem:[%s1165] ss:$8 sm:$0x3] %vm1133, %v1164
          %1167 = vst.msk [vmem:[%s1165] ss:$8 sm:$0x0] %vm1133, %v1164
          %s1168 = sadd.s32 %s1125, 5
          %s1169 = sld [smem:[#allocation4 + %s1168]]
          %s1170 = smul.u32 %s1169, 2
          %s1171 = scalar_lea.vmem [#allocation5], %s1170
          %v1172 = vld [vmem:[%s1171] sm:$0x3]
          %s1173 = scalar_lea.vmem [#allocation2], 5
          %1174 = vst.msk [vmem:[%s1173] ss:$8 sm:$0x3] %vm1133, %v1172
          %1175 = vst.msk [vmem:[%s1173] ss:$8 sm:$0x0] %vm1133, %v1172
          %s1176 = sadd.s32 %s1125, 6
          %s1177 = sld [smem:[#allocation4 + %s1176]]
          %s1178 = smul.u32 %s1177, 2
          %s1179 = scalar_lea.vmem [#allocation5], %s1178
          %v1180 = vld [vmem:[%s1179] sm:$0x3]
          %s1181 = scalar_lea.vmem [#allocation2], 6
          %1182 = vst.msk [vmem:[%s1181] ss:$8 sm:$0x3] %vm1133, %v1180
          %1183 = vst.msk [vmem:[%s1181] ss:$8 sm:$0x0] %vm1133, %v1180
          %s1184 = sadd.s32 %s1125, 7
          %s1185 = sld [smem:[#allocation4 + %s1184]]
          %s1186 = smul.u32 %s1185, 2
          %s1187 = scalar_lea.vmem [#allocation5], %s1186
          %v1188 = vld [vmem:[%s1187] sm:$0x3]
          %s1189 = scalar_lea.vmem [#allocation2], 7
          %1190 = vst.msk [vmem:[%s1189] ss:$8 sm:$0x3] %vm1133, %v1188
          %1191 = vst.msk [vmem:[%s1189] ss:$8 sm:$0x0] %vm1133, %v1188
          %v1192 = vld [vmem:[%s246] sm:$0xff]
          %v1193 = vpack.c.bf16 %v1192, %v1192
          %v1194 = vld [vmem:[#allocation2] sm:$0xff]
          %v1195 = vld [vmem:[#allocation2 + $0x8] sm:$0xff]
          %v1212 = vunpack.c.l.b16 %v259
          %v1213 = vunpack.c.h.b16 %v259
          %v1214 = vunpack.c.l.b16 %v260
          %v1215 = vunpack.c.h.b16 %v260
          %v1216 = vunpack.c.l.b16 %v261
          %v1217 = vunpack.c.h.b16 %v261
          %v1218 = vunpack.c.l.b16 %v262
          %v1219 = vunpack.c.h.b16 %v262
          %v1220 = vunpack.c.l.b16 %v263
          %v1221 = vunpack.c.h.b16 %v263
          %v1222 = vunpack.c.l.b16 %v264
          %v1223 = vunpack.c.h.b16 %v264
          %v1224 = vunpack.c.l.b16 %v265
          %v1225 = vunpack.c.h.b16 %v265
          %v1226 = vunpack.c.l.b16 %v266
          %v1227 = vunpack.c.h.b16 %v266
          %v1228 = vunpack.c.l.b16 %v267
          %v1229 = vunpack.c.h.b16 %v267
          %v1230 = vunpack.c.l.b16 %v268
          %v1231 = vunpack.c.h.b16 %v268
          %v1232 = vunpack.c.l.b16 %v269
          %v1233 = vunpack.c.h.b16 %v269
          %v1234 = vunpack.c.l.b16 %v270
          %v1235 = vunpack.c.h.b16 %v270
          %v1236 = vunpack.c.l.b16 %v271
          %v1237 = vunpack.c.h.b16 %v271
          %v1238 = vunpack.c.l.b16 %v272
          %v1239 = vunpack.c.h.b16 %v272
          %v1240 = vunpack.c.l.b16 %v273
          %v1241 = vunpack.c.h.b16 %v273
          %v1242 = vunpack.c.l.b16 %v274
          %v1243 = vunpack.c.h.b16 %v274
          %v1244 = vpack.c.b16 %v1214, %v1212
          %v1245 = vpack.c.b16 %v1215, %v1213
          %v1246 = vpack.c.b16 %v1218, %v1216
          %v1247 = vpack.c.b16 %v1219, %v1217
          %v1248 = vpack.c.b16 %v1222, %v1220
          %v1249 = vpack.c.b16 %v1223, %v1221
          %v1250 = vpack.c.b16 %v1226, %v1224
          %v1251 = vpack.c.b16 %v1227, %v1225
          %v1252 = vpack.c.b16 %v1230, %v1228
          %v1253 = vpack.c.b16 %v1231, %v1229
          %v1254 = vpack.c.b16 %v1234, %v1232
          %v1255 = vpack.c.b16 %v1235, %v1233
          %v1256 = vpack.c.b16 %v1238, %v1236
          %v1257 = vpack.c.b16 %v1239, %v1237
          %v1258 = vpack.c.b16 %v1242, %v1240
          %v1259 = vpack.c.b16 %v1243, %v1241
          %1276 = vmatprep.subr.bf16.mxu0 %v1245
          %1277 = vmatpush1.bf16.msra.mxu0 %v1244
          %1278 = vmatprep.subr.bf16.mxu0 %v1247
          %1279 = vmatpush1.bf16.msra.mxu0 %v1246
          %1280 = vmatprep.subr.bf16.mxu0 %v1249
          %1281 = vmatpush1.bf16.msra.mxu0 %v1248
          %1282 = vmatprep.subr.bf16.mxu0 %v1251
          %1283 = vmatpush1.bf16.msra.mxu0 %v1250
          %1284 = vmatprep.subr.bf16.mxu0 %v1253
          %1285 = vmatpush1.bf16.msra.mxu0 %v1252
          %1286 = vmatprep.subr.bf16.mxu0 %v1255
          %1287 = vmatpush1.bf16.msra.mxu0 %v1254
          %1288 = vmatprep.subr.bf16.mxu0 %v1257
          %1289 = vmatpush1.bf16.msra.mxu0 %v1256
          %1290 = vmatprep.subr.bf16.mxu0 %v1259
          %1291 = vmatpush1.bf16.msra.mxu0 %v1258
          %1292 = vmatprep.subr.bf16.mxu0 0
          %1293 = vmatpush1.bf16.msra.mxu0 0
          %1294 = vmatprep.subr.bf16.mxu0 0
          %1295 = vmatpush1.bf16.msra.mxu0 0
          %1296 = vmatprep.subr.bf16.mxu0 0
          %1297 = vmatpush1.bf16.msra.mxu0 0
          %1298 = vmatprep.subr.bf16.mxu0 0
          %1299 = vmatpush1.bf16.msra.mxu0 0
          %1300 = vmatprep.subr.bf16.mxu0 0
          %1301 = vmatpush1.bf16.msra.mxu0 0
          %1302 = vmatprep.subr.bf16.mxu0 0
          %1303 = vmatpush1.bf16.msra.mxu0 0
          %1304 = vmatprep.subr.bf16.mxu0 0
          %1305 = vmatpush1.bf16.msra.mxu0 0
          %1306 = vmatprep.subr.bf16.mxu0 0
          %1307 = vmatpush1.bf16.msra.mxu0 0
          %1308 = vmatprep.mubr.bf16.mxu0 0
          %1309 = vmatmul.mubr.bf16.gmra.mrb[0].mxu0 %v1193
          %v1310 = vpop.f32.mrb[0].mxu0
          %v1311 = vadd.f32 %v1194, %v1310
          %v1312 = vpop.f32.mrb[0].mxu0
          %v1313 = vadd.f32 %v1195, %v1312
          %v1314 = vpop.f32.mrb[0].mxu0
          %v1315 = vpop.f32.mrb[0].mxu0
          %1316 = vdwg.mxu0
          %1317 = vmax.xlane.f32.xlu0 %v1313
          %v1318 = vpop.xlane.xlu0 %1317
          %v1319 = vsub.f32 %v1313, %v1318
          %v1320 = vmul.f32 %v1319, 1.442695
          %v1321 = vpow.pop %v1320
          %1322 = vadd.xlane.f32.xlu0 %v1321
          %v1323 = vpop.xlane.xlu0 %1322
          %v1324 = vlog2.pop %v1323
          %v1325 = vmul.f32 %v1324, 0.6931472
          %v1326 = vsub.f32 %v1319, %v1325
          %s1327 = scalar_lea.vmem %s239, 32 [#allocation10]
          %1328 = vst [vmem:[%s1327] sm:$0xff] %v1326
          %1329 = vst [vmem:[%s246] sm:$0xff] %v1311
        $region64: #{rnn_forward_sequence.1} parent=31 // pred_fallthru
          _
        %s1330 = sadd.s32 %s276, 5
        %p1331 = scmp.lt.s32.totalorder %s1330, 10
        // Predicated region
        $region65: #{rnn_forward_sequence.1} parent=31 // pred_check
          %p1332 = pneg %p1331
        $region66: #{rnn_forward_sequence.1} parent=31 // pred_check_branch
          %1334 = sbr.rel (%p1332) target = $region68
        $region67: #{rnn_forward_sequence.1} parent=31 // pred_region
          %s1335 = smul.u32 %s1330, 16
          %s1336 = sadd.s32 %s1335, %s275
          %s1337 = sld [smem:[#allocation4 + %s1336]]
          %s1338 = smul.u32 %s1337, 2
          %s1339 = scalar_lea.vmem [#allocation5], %s1338
          %v1340 = vld [vmem:[%s1339] sm:$0x3]
          %v1341 = vlaneseq
          %vm1342 = vcmp.ge.s32.totalorder %v1341, 0
          %vm1343 = vcmp.lt.s32.totalorder %v1341, 256
          %vm1344 = vmand %vm1342, %vm1343
          %1345 = vst.msk [vmem:[#allocation2] ss:$8 sm:$0x3] %vm1344, %v1340
          %1346 = vst.msk [vmem:[#allocation2] ss:$8 sm:$0x0] %vm1344, %v1340
          %s1347 = sadd.s32 %s1336, 1
          %s1348 = sld [smem:[#allocation4 + %s1347]]
          %s1349 = smul.u32 %s1348, 2
          %s1350 = scalar_lea.vmem [#allocation5], %s1349
          %v1351 = vld [vmem:[%s1350] sm:$0x3]
          %s1352 = scalar_lea.vmem [#allocation2], 1
          %1353 = vst.msk [vmem:[%s1352] ss:$8 sm:$0x3] %vm1344, %v1351
          %1354 = vst.msk [vmem:[%s1352] ss:$8 sm:$0x0] %vm1344, %v1351
          %s1355 = sadd.s32 %s1336, 2
          %s1356 = sld [smem:[#allocation4 + %s1355]]
          %s1357 = smul.u32 %s1356, 2
          %s1358 = scalar_lea.vmem [#allocation5], %s1357
          %v1359 = vld [vmem:[%s1358] sm:$0x3]
          %s1360 = scalar_lea.vmem [#allocation2], 2
          %1361 = vst.msk [vmem:[%s1360] ss:$8 sm:$0x3] %vm1344, %v1359
          %1362 = vst.msk [vmem:[%s1360] ss:$8 sm:$0x0] %vm1344, %v1359
          %s1363 = sadd.s32 %s1336, 3
          %s1364 = sld [smem:[#allocation4 + %s1363]]
          %s1365 = smul.u32 %s1364, 2
          %s1366 = scalar_lea.vmem [#allocation5], %s1365
          %v1367 = vld [vmem:[%s1366] sm:$0x3]
          %s1368 = scalar_lea.vmem [#allocation2], 3
          %1369 = vst.msk [vmem:[%s1368] ss:$8 sm:$0x3] %vm1344, %v1367
          %1370 = vst.msk [vmem:[%s1368] ss:$8 sm:$0x0] %vm1344, %v1367
          %s1371 = sadd.s32 %s1336, 4
          %s1372 = sld [smem:[#allocation4 + %s1371]]
          %s1373 = smul.u32 %s1372, 2
          %s1374 = scalar_lea.vmem [#allocation5], %s1373
          %v1375 = vld [vmem:[%s1374] sm:$0x3]
          %s1376 = scalar_lea.vmem [#allocation2], 4
          %1377 = vst.msk [vmem:[%s1376] ss:$8 sm:$0x3] %vm1344, %v1375
          %1378 = vst.msk [vmem:[%s1376] ss:$8 sm:$0x0] %vm1344, %v1375
          %s1379 = sadd.s32 %s1336, 5
          %s1380 = sld [smem:[#allocation4 + %s1379]]
          %s1381 = smul.u32 %s1380, 2
          %s1382 = scalar_lea.vmem [#allocation5], %s1381
          %v1383 = vld [vmem:[%s1382] sm:$0x3]
          %s1384 = scalar_lea.vmem [#allocation2], 5
          %1385 = vst.msk [vmem:[%s1384] ss:$8 sm:$0x3] %vm1344, %v1383
          %1386 = vst.msk [vmem:[%s1384] ss:$8 sm:$0x0] %vm1344, %v1383
          %s1387 = sadd.s32 %s1336, 6
          %s1388 = sld [smem:[#allocation4 + %s1387]]
          %s1389 = smul.u32 %s1388, 2
          %s1390 = scalar_lea.vmem [#allocation5], %s1389
          %v1391 = vld [vmem:[%s1390] sm:$0x3]
          %s1392 = scalar_lea.vmem [#allocation2], 6
          %1393 = vst.msk [vmem:[%s1392] ss:$8 sm:$0x3] %vm1344, %v1391
          %1394 = vst.msk [vmem:[%s1392] ss:$8 sm:$0x0] %vm1344, %v1391
          %s1395 = sadd.s32 %s1336, 7
          %s1396 = sld [smem:[#allocation4 + %s1395]]
          %s1397 = smul.u32 %s1396, 2
          %s1398 = scalar_lea.vmem [#allocation5], %s1397
          %v1399 = vld [vmem:[%s1398] sm:$0x3]
          %s1400 = scalar_lea.vmem [#allocation2], 7
          %1401 = vst.msk [vmem:[%s1400] ss:$8 sm:$0x3] %vm1344, %v1399
          %1402 = vst.msk [vmem:[%s1400] ss:$8 sm:$0x0] %vm1344, %v1399
          %v1403 = vld [vmem:[%s246] sm:$0xff]
          %v1404 = vpack.c.bf16 %v1403, %v1403
          %v1405 = vld [vmem:[#allocation2] sm:$0xff]
          %v1406 = vld [vmem:[#allocation2 + $0x8] sm:$0xff]
          %v1423 = vunpack.c.l.b16 %v259
          %v1424 = vunpack.c.h.b16 %v259
          %v1425 = vunpack.c.l.b16 %v260
          %v1426 = vunpack.c.h.b16 %v260
          %v1427 = vunpack.c.l.b16 %v261
          %v1428 = vunpack.c.h.b16 %v261
          %v1429 = vunpack.c.l.b16 %v262
          %v1430 = vunpack.c.h.b16 %v262
          %v1431 = vunpack.c.l.b16 %v263
          %v1432 = vunpack.c.h.b16 %v263
          %v1433 = vunpack.c.l.b16 %v264
          %v1434 = vunpack.c.h.b16 %v264
          %v1435 = vunpack.c.l.b16 %v265
          %v1436 = vunpack.c.h.b16 %v265
          %v1437 = vunpack.c.l.b16 %v266
          %v1438 = vunpack.c.h.b16 %v266
          %v1439 = vunpack.c.l.b16 %v267
          %v1440 = vunpack.c.h.b16 %v267
          %v1441 = vunpack.c.l.b16 %v268
          %v1442 = vunpack.c.h.b16 %v268
          %v1443 = vunpack.c.l.b16 %v269
          %v1444 = vunpack.c.h.b16 %v269
          %v1445 = vunpack.c.l.b16 %v270
          %v1446 = vunpack.c.h.b16 %v270
          %v1447 = vunpack.c.l.b16 %v271
          %v1448 = vunpack.c.h.b16 %v271
          %v1449 = vunpack.c.l.b16 %v272
          %v1450 = vunpack.c.h.b16 %v272
          %v1451 = vunpack.c.l.b16 %v273
          %v1452 = vunpack.c.h.b16 %v273
          %v1453 = vunpack.c.l.b16 %v274
          %v1454 = vunpack.c.h.b16 %v274
          %v1455 = vpack.c.b16 %v1425, %v1423
          %v1456 = vpack.c.b16 %v1426, %v1424
          %v1457 = vpack.c.b16 %v1429, %v1427
          %v1458 = vpack.c.b16 %v1430, %v1428
          %v1459 = vpack.c.b16 %v1433, %v1431
          %v1460 = vpack.c.b16 %v1434, %v1432
          %v1461 = vpack.c.b16 %v1437, %v1435
          %v1462 = vpack.c.b16 %v1438, %v1436
          %v1463 = vpack.c.b16 %v1441, %v1439
          %v1464 = vpack.c.b16 %v1442, %v1440
          %v1465 = vpack.c.b16 %v1445, %v1443
          %v1466 = vpack.c.b16 %v1446, %v1444
          %v1467 = vpack.c.b16 %v1449, %v1447
          %v1468 = vpack.c.b16 %v1450, %v1448
          %v1469 = vpack.c.b16 %v1453, %v1451
          %v1470 = vpack.c.b16 %v1454, %v1452
          %1487 = vmatprep.subr.bf16.mxu0 %v1456
          %1488 = vmatpush1.bf16.msra.mxu0 %v1455
          %1489 = vmatprep.subr.bf16.mxu0 %v1458
          %1490 = vmatpush1.bf16.msra.mxu0 %v1457
          %1491 = vmatprep.subr.bf16.mxu0 %v1460
          %1492 = vmatpush1.bf16.msra.mxu0 %v1459
          %1493 = vmatprep.subr.bf16.mxu0 %v1462
          %1494 = vmatpush1.bf16.msra.mxu0 %v1461
          %1495 = vmatprep.subr.bf16.mxu0 %v1464
          %1496 = vmatpush1.bf16.msra.mxu0 %v1463
          %1497 = vmatprep.subr.bf16.mxu0 %v1466
          %1498 = vmatpush1.bf16.msra.mxu0 %v1465
          %1499 = vmatprep.subr.bf16.mxu0 %v1468
          %1500 = vmatpush1.bf16.msra.mxu0 %v1467
          %1501 = vmatprep.subr.bf16.mxu0 %v1470
          %1502 = vmatpush1.bf16.msra.mxu0 %v1469
          %1503 = vmatprep.subr.bf16.mxu0 0
          %1504 = vmatpush1.bf16.msra.mxu0 0
          %1505 = vmatprep.subr.bf16.mxu0 0
          %1506 = vmatpush1.bf16.msra.mxu0 0
          %1507 = vmatprep.subr.bf16.mxu0 0
          %1508 = vmatpush1.bf16.msra.mxu0 0
          %1509 = vmatprep.subr.bf16.mxu0 0
          %1510 = vmatpush1.bf16.msra.mxu0 0
          %1511 = vmatprep.subr.bf16.mxu0 0
          %1512 = vmatpush1.bf16.msra.mxu0 0
          %1513 = vmatprep.subr.bf16.mxu0 0
          %1514 = vmatpush1.bf16.msra.mxu0 0
          %1515 = vmatprep.subr.bf16.mxu0 0
          %1516 = vmatpush1.bf16.msra.mxu0 0
          %1517 = vmatprep.subr.bf16.mxu0 0
          %1518 = vmatpush1.bf16.msra.mxu0 0
          %1519 = vmatprep.mubr.bf16.mxu0 0
          %1520 = vmatmul.mubr.bf16.gmra.mrb[0].mxu0 %v1404
          %v1521 = vpop.f32.mrb[0].mxu0
          %v1522 = vadd.f32 %v1405, %v1521
          %v1523 = vpop.f32.mrb[0].mxu0
          %v1524 = vadd.f32 %v1406, %v1523
          %v1525 = vpop.f32.mrb[0].mxu0
          %v1526 = vpop.f32.mrb[0].mxu0
          %1527 = vdwg.mxu0
          %1528 = vmax.xlane.f32.xlu0 %v1524
          %v1529 = vpop.xlane.xlu0 %1528
          %v1530 = vsub.f32 %v1524, %v1529
          %v1531 = vmul.f32 %v1530, 1.442695
          %v1532 = vpow.pop %v1531
          %1533 = vadd.xlane.f32.xlu0 %v1532
          %v1534 = vpop.xlane.xlu0 %1533
          %v1535 = vlog2.pop %v1534
          %v1536 = vmul.f32 %v1535, 0.6931472
          %v1537 = vsub.f32 %v1530, %v1536
          %s1538 = scalar_lea.vmem %s239, 40 [#allocation10]
          %1539 = vst [vmem:[%s1538] sm:$0xff] %v1537
          %1540 = vst [vmem:[%s246] sm:$0xff] %v1522
        $region68: #{rnn_forward_sequence.1} parent=31 // pred_fallthru
          _
        %s1541 = sadd.s32 %s276, 6
        %p1542 = scmp.lt.s32.totalorder %s1541, 10
        // Predicated region
        $region69: #{rnn_forward_sequence.1} parent=31 // pred_check
          %p1543 = pneg %p1542
        $region70: #{rnn_forward_sequence.1} parent=31 // pred_check_branch
          %1545 = sbr.rel (%p1543) target = $region72
        $region71: #{rnn_forward_sequence.1} parent=31 // pred_region
          %s1546 = smul.u32 %s1541, 16
          %s1547 = sadd.s32 %s1546, %s275
          %s1548 = sld [smem:[#allocation4 + %s1547]]
          %s1549 = smul.u32 %s1548, 2
          %s1550 = scalar_lea.vmem [#allocation5], %s1549
          %v1551 = vld [vmem:[%s1550] sm:$0x3]
          %v1552 = vlaneseq
          %vm1553 = vcmp.ge.s32.totalorder %v1552, 0
          %vm1554 = vcmp.lt.s32.totalorder %v1552, 256
          %vm1555 = vmand %vm1553, %vm1554
          %1556 = vst.msk [vmem:[#allocation2] ss:$8 sm:$0x3] %vm1555, %v1551
          %1557 = vst.msk [vmem:[#allocation2] ss:$8 sm:$0x0] %vm1555, %v1551
          %s1558 = sadd.s32 %s1547, 1
          %s1559 = sld [smem:[#allocation4 + %s1558]]
          %s1560 = smul.u32 %s1559, 2
          %s1561 = scalar_lea.vmem [#allocation5], %s1560
          %v1562 = vld [vmem:[%s1561] sm:$0x3]
          %s1563 = scalar_lea.vmem [#allocation2], 1
          %1564 = vst.msk [vmem:[%s1563] ss:$8 sm:$0x3] %vm1555, %v1562
          %1565 = vst.msk [vmem:[%s1563] ss:$8 sm:$0x0] %vm1555, %v1562
          %s1566 = sadd.s32 %s1547, 2
          %s1567 = sld [smem:[#allocation4 + %s1566]]
          %s1568 = smul.u32 %s1567, 2
          %s1569 = scalar_lea.vmem [#allocation5], %s1568
          %v1570 = vld [vmem:[%s1569] sm:$0x3]
          %s1571 = scalar_lea.vmem [#allocation2], 2
          %1572 = vst.msk [vmem:[%s1571] ss:$8 sm:$0x3] %vm1555, %v1570
          %1573 = vst.msk [vmem:[%s1571] ss:$8 sm:$0x0] %vm1555, %v1570
          %s1574 = sadd.s32 %s1547, 3
          %s1575 = sld [smem:[#allocation4 + %s1574]]
          %s1576 = smul.u32 %s1575, 2
          %s1577 = scalar_lea.vmem [#allocation5], %s1576
          %v1578 = vld [vmem:[%s1577] sm:$0x3]
          %s1579 = scalar_lea.vmem [#allocation2], 3
          %1580 = vst.msk [vmem:[%s1579] ss:$8 sm:$0x3] %vm1555, %v1578
          %1581 = vst.msk [vmem:[%s1579] ss:$8 sm:$0x0] %vm1555, %v1578
          %s1582 = sadd.s32 %s1547, 4
          %s1583 = sld [smem:[#allocation4 + %s1582]]
          %s1584 = smul.u32 %s1583, 2
          %s1585 = scalar_lea.vmem [#allocation5], %s1584
          %v1586 = vld [vmem:[%s1585] sm:$0x3]
          %s1587 = scalar_lea.vmem [#allocation2], 4
          %1588 = vst.msk [vmem:[%s1587] ss:$8 sm:$0x3] %vm1555, %v1586
          %1589 = vst.msk [vmem:[%s1587] ss:$8 sm:$0x0] %vm1555, %v1586
          %s1590 = sadd.s32 %s1547, 5
          %s1591 = sld [smem:[#allocation4 + %s1590]]
          %s1592 = smul.u32 %s1591, 2
          %s1593 = scalar_lea.vmem [#allocation5], %s1592
          %v1594 = vld [vmem:[%s1593] sm:$0x3]
          %s1595 = scalar_lea.vmem [#allocation2], 5
          %1596 = vst.msk [vmem:[%s1595] ss:$8 sm:$0x3] %vm1555, %v1594
          %1597 = vst.msk [vmem:[%s1595] ss:$8 sm:$0x0] %vm1555, %v1594
          %s1598 = sadd.s32 %s1547, 6
          %s1599 = sld [smem:[#allocation4 + %s1598]]
          %s1600 = smul.u32 %s1599, 2
          %s1601 = scalar_lea.vmem [#allocation5], %s1600
          %v1602 = vld [vmem:[%s1601] sm:$0x3]
          %s1603 = scalar_lea.vmem [#allocation2], 6
          %1604 = vst.msk [vmem:[%s1603] ss:$8 sm:$0x3] %vm1555, %v1602
          %1605 = vst.msk [vmem:[%s1603] ss:$8 sm:$0x0] %vm1555, %v1602
          %s1606 = sadd.s32 %s1547, 7
          %s1607 = sld [smem:[#allocation4 + %s1606]]
          %s1608 = smul.u32 %s1607, 2
          %s1609 = scalar_lea.vmem [#allocation5], %s1608
          %v1610 = vld [vmem:[%s1609] sm:$0x3]
          %s1611 = scalar_lea.vmem [#allocation2], 7
          %1612 = vst.msk [vmem:[%s1611] ss:$8 sm:$0x3] %vm1555, %v1610
          %1613 = vst.msk [vmem:[%s1611] ss:$8 sm:$0x0] %vm1555, %v1610
          %v1614 = vld [vmem:[%s246] sm:$0xff]
          %v1615 = vpack.c.bf16 %v1614, %v1614
          %v1616 = vld [vmem:[#allocation2] sm:$0xff]
          %v1617 = vld [vmem:[#allocation2 + $0x8] sm:$0xff]
          %v1634 = vunpack.c.l.b16 %v259
          %v1635 = vunpack.c.h.b16 %v259
          %v1636 = vunpack.c.l.b16 %v260
          %v1637 = vunpack.c.h.b16 %v260
          %v1638 = vunpack.c.l.b16 %v261
          %v1639 = vunpack.c.h.b16 %v261
          %v1640 = vunpack.c.l.b16 %v262
          %v1641 = vunpack.c.h.b16 %v262
          %v1642 = vunpack.c.l.b16 %v263
          %v1643 = vunpack.c.h.b16 %v263
          %v1644 = vunpack.c.l.b16 %v264
          %v1645 = vunpack.c.h.b16 %v264
          %v1646 = vunpack.c.l.b16 %v265
          %v1647 = vunpack.c.h.b16 %v265
          %v1648 = vunpack.c.l.b16 %v266
          %v1649 = vunpack.c.h.b16 %v266
          %v1650 = vunpack.c.l.b16 %v267
          %v1651 = vunpack.c.h.b16 %v267
          %v1652 = vunpack.c.l.b16 %v268
          %v1653 = vunpack.c.h.b16 %v268
          %v1654 = vunpack.c.l.b16 %v269
          %v1655 = vunpack.c.h.b16 %v269
          %v1656 = vunpack.c.l.b16 %v270
          %v1657 = vunpack.c.h.b16 %v270
          %v1658 = vunpack.c.l.b16 %v271
          %v1659 = vunpack.c.h.b16 %v271
          %v1660 = vunpack.c.l.b16 %v272
          %v1661 = vunpack.c.h.b16 %v272
          %v1662 = vunpack.c.l.b16 %v273
          %v1663 = vunpack.c.h.b16 %v273
          %v1664 = vunpack.c.l.b16 %v274
          %v1665 = vunpack.c.h.b16 %v274
          %v1666 = vpack.c.b16 %v1636, %v1634
          %v1667 = vpack.c.b16 %v1637, %v1635
          %v1668 = vpack.c.b16 %v1640, %v1638
          %v1669 = vpack.c.b16 %v1641, %v1639
          %v1670 = vpack.c.b16 %v1644, %v1642
          %v1671 = vpack.c.b16 %v1645, %v1643
          %v1672 = vpack.c.b16 %v1648, %v1646
          %v1673 = vpack.c.b16 %v1649, %v1647
          %v1674 = vpack.c.b16 %v1652, %v1650
          %v1675 = vpack.c.b16 %v1653, %v1651
          %v1676 = vpack.c.b16 %v1656, %v1654
          %v1677 = vpack.c.b16 %v1657, %v1655
          %v1678 = vpack.c.b16 %v1660, %v1658
          %v1679 = vpack.c.b16 %v1661, %v1659
          %v1680 = vpack.c.b16 %v1664, %v1662
          %v1681 = vpack.c.b16 %v1665, %v1663
          %1698 = vmatprep.subr.bf16.mxu0 %v1667
          %1699 = vmatpush1.bf16.msra.mxu0 %v1666
          %1700 = vmatprep.subr.bf16.mxu0 %v1669
          %1701 = vmatpush1.bf16.msra.mxu0 %v1668
          %1702 = vmatprep.subr.bf16.mxu0 %v1671
          %1703 = vmatpush1.bf16.msra.mxu0 %v1670
          %1704 = vmatprep.subr.bf16.mxu0 %v1673
          %1705 = vmatpush1.bf16.msra.mxu0 %v1672
          %1706 = vmatprep.subr.bf16.mxu0 %v1675
          %1707 = vmatpush1.bf16.msra.mxu0 %v1674
          %1708 = vmatprep.subr.bf16.mxu0 %v1677
          %1709 = vmatpush1.bf16.msra.mxu0 %v1676
          %1710 = vmatprep.subr.bf16.mxu0 %v1679
          %1711 = vmatpush1.bf16.msra.mxu0 %v1678
          %1712 = vmatprep.subr.bf16.mxu0 %v1681
          %1713 = vmatpush1.bf16.msra.mxu0 %v1680
          %1714 = vmatprep.subr.bf16.mxu0 0
          %1715 = vmatpush1.bf16.msra.mxu0 0
          %1716 = vmatprep.subr.bf16.mxu0 0
          %1717 = vmatpush1.bf16.msra.mxu0 0
          %1718 = vmatprep.subr.bf16.mxu0 0
          %1719 = vmatpush1.bf16.msra.mxu0 0
          %1720 = vmatprep.subr.bf16.mxu0 0
          %1721 = vmatpush1.bf16.msra.mxu0 0
          %1722 = vmatprep.subr.bf16.mxu0 0
          %1723 = vmatpush1.bf16.msra.mxu0 0
          %1724 = vmatprep.subr.bf16.mxu0 0
          %1725 = vmatpush1.bf16.msra.mxu0 0
          %1726 = vmatprep.subr.bf16.mxu0 0
          %1727 = vmatpush1.bf16.msra.mxu0 0
          %1728 = vmatprep.subr.bf16.mxu0 0
          %1729 = vmatpush1.bf16.msra.mxu0 0
          %1730 = vmatprep.mubr.bf16.mxu0 0
          %1731 = vmatmul.mubr.bf16.gmra.mrb[0].mxu0 %v1615
          %v1732 = vpop.f32.mrb[0].mxu0
          %v1733 = vadd.f32 %v1616, %v1732
          %v1734 = vpop.f32.mrb[0].mxu0
          %v1735 = vadd.f32 %v1617, %v1734
          %v1736 = vpop.f32.mrb[0].mxu0
          %v1737 = vpop.f32.mrb[0].mxu0
          %1738 = vdwg.mxu0
          %1739 = vmax.xlane.f32.xlu0 %v1735
          %v1740 = vpop.xlane.xlu0 %1739
          %v1741 = vsub.f32 %v1735, %v1740
          %v1742 = vmul.f32 %v1741, 1.442695
          %v1743 = vpow.pop %v1742
          %1744 = vadd.xlane.f32.xlu0 %v1743
          %v1745 = vpop.xlane.xlu0 %1744
          %v1746 = vlog2.pop %v1745
          %v1747 = vmul.f32 %v1746, 0.6931472
          %v1748 = vsub.f32 %v1741, %v1747
          %s1749 = scalar_lea.vmem %s239, 48 [#allocation10]
          %1750 = vst [vmem:[%s1749] sm:$0xff] %v1748
          %1751 = vst [vmem:[%s246] sm:$0xff] %v1733
        $region72: #{rnn_forward_sequence.1} parent=31 // pred_fallthru
          _
        %s1752 = sadd.s32 %s276, 7
        %p1753 = scmp.lt.s32.totalorder %s1752, 10
        // Predicated region
        $region73: #{rnn_forward_sequence.1} parent=31 // pred_check
          %p1754 = pneg %p1753
        $region74: #{rnn_forward_sequence.1} parent=31 // pred_check_branch
          %1756 = sbr.rel (%p1754) target = $region76
        $region75: #{rnn_forward_sequence.1} parent=31 // pred_region
          %s1757 = smul.u32 %s1752, 16
          %s1758 = sadd.s32 %s1757, %s275
          %s1759 = sld [smem:[#allocation4 + %s1758]]
          %s1760 = smul.u32 %s1759, 2
          %s1761 = scalar_lea.vmem [#allocation5], %s1760
          %v1762 = vld [vmem:[%s1761] sm:$0x3]
          %v1763 = vlaneseq
          %vm1764 = vcmp.ge.s32.totalorder %v1763, 0
          %vm1765 = vcmp.lt.s32.totalorder %v1763, 256
          %vm1766 = vmand %vm1764, %vm1765
          %1767 = vst.msk [vmem:[#allocation2] ss:$8 sm:$0x3] %vm1766, %v1762
          %1768 = vst.msk [vmem:[#allocation2] ss:$8 sm:$0x0] %vm1766, %v1762
          %s1769 = sadd.s32 %s1758, 1
          %s1770 = sld [smem:[#allocation4 + %s1769]]
          %s1771 = smul.u32 %s1770, 2
          %s1772 = scalar_lea.vmem [#allocation5], %s1771
          %v1773 = vld [vmem:[%s1772] sm:$0x3]
          %s1774 = scalar_lea.vmem [#allocation2], 1
          %1775 = vst.msk [vmem:[%s1774] ss:$8 sm:$0x3] %vm1766, %v1773
          %1776 = vst.msk [vmem:[%s1774] ss:$8 sm:$0x0] %vm1766, %v1773
          %s1777 = sadd.s32 %s1758, 2
          %s1778 = sld [smem:[#allocation4 + %s1777]]
          %s1779 = smul.u32 %s1778, 2
          %s1780 = scalar_lea.vmem [#allocation5], %s1779
          %v1781 = vld [vmem:[%s1780] sm:$0x3]
          %s1782 = scalar_lea.vmem [#allocation2], 2
          %1783 = vst.msk [vmem:[%s1782] ss:$8 sm:$0x3] %vm1766, %v1781
          %1784 = vst.msk [vmem:[%s1782] ss:$8 sm:$0x0] %vm1766, %v1781
          %s1785 = sadd.s32 %s1758, 3
          %s1786 = sld [smem:[#allocation4 + %s1785]]
          %s1787 = smul.u32 %s1786, 2
          %s1788 = scalar_lea.vmem [#allocation5], %s1787
          %v1789 = vld [vmem:[%s1788] sm:$0x3]
          %s1790 = scalar_lea.vmem [#allocation2], 3
          %1791 = vst.msk [vmem:[%s1790] ss:$8 sm:$0x3] %vm1766, %v1789
          %1792 = vst.msk [vmem:[%s1790] ss:$8 sm:$0x0] %vm1766, %v1789
          %s1793 = sadd.s32 %s1758, 4
          %s1794 = sld [smem:[#allocation4 + %s1793]]
          %s1795 = smul.u32 %s1794, 2
          %s1796 = scalar_lea.vmem [#allocation5], %s1795
          %v1797 = vld [vmem:[%s1796] sm:$0x3]
          %s1798 = scalar_lea.vmem [#allocation2], 4
          %1799 = vst.msk [vmem:[%s1798] ss:$8 sm:$0x3] %vm1766, %v1797
          %1800 = vst.msk [vmem:[%s1798] ss:$8 sm:$0x0] %vm1766, %v1797
          %s1801 = sadd.s32 %s1758, 5
          %s1802 = sld [smem:[#allocation4 + %s1801]]
          %s1803 = smul.u32 %s1802, 2
          %s1804 = scalar_lea.vmem [#allocation5], %s1803
          %v1805 = vld [vmem:[%s1804] sm:$0x3]
          %s1806 = scalar_lea.vmem [#allocation2], 5
          %1807 = vst.msk [vmem:[%s1806] ss:$8 sm:$0x3] %vm1766, %v1805
          %1808 = vst.msk [vmem:[%s1806] ss:$8 sm:$0x0] %vm1766, %v1805
          %s1809 = sadd.s32 %s1758, 6
          %s1810 = sld [smem:[#allocation4 + %s1809]]
          %s1811 = smul.u32 %s1810, 2
          %s1812 = scalar_lea.vmem [#allocation5], %s1811
          %v1813 = vld [vmem:[%s1812] sm:$0x3]
          %s1814 = scalar_lea.vmem [#allocation2], 6
          %1815 = vst.msk [vmem:[%s1814] ss:$8 sm:$0x3] %vm1766, %v1813
          %1816 = vst.msk [vmem:[%s1814] ss:$8 sm:$0x0] %vm1766, %v1813
          %s1817 = sadd.s32 %s1758, 7
          %s1818 = sld [smem:[#allocation4 + %s1817]]
          %s1819 = smul.u32 %s1818, 2
          %s1820 = scalar_lea.vmem [#allocation5], %s1819
          %v1821 = vld [vmem:[%s1820] sm:$0x3]
          %s1822 = scalar_lea.vmem [#allocation2], 7
          %1823 = vst.msk [vmem:[%s1822] ss:$8 sm:$0x3] %vm1766, %v1821
          %1824 = vst.msk [vmem:[%s1822] ss:$8 sm:$0x0] %vm1766, %v1821
          %v1825 = vld [vmem:[%s246] sm:$0xff]
          %v1826 = vpack.c.bf16 %v1825, %v1825
          %v1827 = vld [vmem:[#allocation2] sm:$0xff]
          %v1828 = vld [vmem:[#allocation2 + $0x8] sm:$0xff]
          %v1845 = vunpack.c.l.b16 %v259
          %v1846 = vunpack.c.h.b16 %v259
          %v1847 = vunpack.c.l.b16 %v260
          %v1848 = vunpack.c.h.b16 %v260
          %v1849 = vunpack.c.l.b16 %v261
          %v1850 = vunpack.c.h.b16 %v261
          %v1851 = vunpack.c.l.b16 %v262
          %v1852 = vunpack.c.h.b16 %v262
          %v1853 = vunpack.c.l.b16 %v263
          %v1854 = vunpack.c.h.b16 %v263
          %v1855 = vunpack.c.l.b16 %v264
          %v1856 = vunpack.c.h.b16 %v264
          %v1857 = vunpack.c.l.b16 %v265
          %v1858 = vunpack.c.h.b16 %v265
          %v1859 = vunpack.c.l.b16 %v266
          %v1860 = vunpack.c.h.b16 %v266
          %v1861 = vunpack.c.l.b16 %v267
          %v1862 = vunpack.c.h.b16 %v267
          %v1863 = vunpack.c.l.b16 %v268
          %v1864 = vunpack.c.h.b16 %v268
          %v1865 = vunpack.c.l.b16 %v269
          %v1866 = vunpack.c.h.b16 %v269
          %v1867 = vunpack.c.l.b16 %v270
          %v1868 = vunpack.c.h.b16 %v270
          %v1869 = vunpack.c.l.b16 %v271
          %v1870 = vunpack.c.h.b16 %v271
          %v1871 = vunpack.c.l.b16 %v272
          %v1872 = vunpack.c.h.b16 %v272
          %v1873 = vunpack.c.l.b16 %v273
          %v1874 = vunpack.c.h.b16 %v273
          %v1875 = vunpack.c.l.b16 %v274
          %v1876 = vunpack.c.h.b16 %v274
          %v1877 = vpack.c.b16 %v1847, %v1845
          %v1878 = vpack.c.b16 %v1848, %v1846
          %v1879 = vpack.c.b16 %v1851, %v1849
          %v1880 = vpack.c.b16 %v1852, %v1850
          %v1881 = vpack.c.b16 %v1855, %v1853
          %v1882 = vpack.c.b16 %v1856, %v1854
          %v1883 = vpack.c.b16 %v1859, %v1857
          %v1884 = vpack.c.b16 %v1860, %v1858
          %v1885 = vpack.c.b16 %v1863, %v1861
          %v1886 = vpack.c.b16 %v1864, %v1862
          %v1887 = vpack.c.b16 %v1867, %v1865
          %v1888 = vpack.c.b16 %v1868, %v1866
          %v1889 = vpack.c.b16 %v1871, %v1869
          %v1890 = vpack.c.b16 %v1872, %v1870
          %v1891 = vpack.c.b16 %v1875, %v1873
          %v1892 = vpack.c.b16 %v1876, %v1874
          %1909 = vmatprep.subr.bf16.mxu0 %v1878
          %1910 = vmatpush1.bf16.msra.mxu0 %v1877
          %1911 = vmatprep.subr.bf16.mxu0 %v1880
          %1912 = vmatpush1.bf16.msra.mxu0 %v1879
          %1913 = vmatprep.subr.bf16.mxu0 %v1882
          %1914 = vmatpush1.bf16.msra.mxu0 %v1881
          %1915 = vmatprep.subr.bf16.mxu0 %v1884
          %1916 = vmatpush1.bf16.msra.mxu0 %v1883
          %1917 = vmatprep.subr.bf16.mxu0 %v1886
          %1918 = vmatpush1.bf16.msra.mxu0 %v1885
          %1919 = vmatprep.subr.bf16.mxu0 %v1888
          %1920 = vmatpush1.bf16.msra.mxu0 %v1887
          %1921 = vmatprep.subr.bf16.mxu0 %v1890
          %1922 = vmatpush1.bf16.msra.mxu0 %v1889
          %1923 = vmatprep.subr.bf16.mxu0 %v1892
          %1924 = vmatpush1.bf16.msra.mxu0 %v1891
          %1925 = vmatprep.subr.bf16.mxu0 0
          %1926 = vmatpush1.bf16.msra.mxu0 0
          %1927 = vmatprep.subr.bf16.mxu0 0
          %1928 = vmatpush1.bf16.msra.mxu0 0
          %1929 = vmatprep.subr.bf16.mxu0 0
          %1930 = vmatpush1.bf16.msra.mxu0 0
          %1931 = vmatprep.subr.bf16.mxu0 0
          %1932 = vmatpush1.bf16.msra.mxu0 0
          %1933 = vmatprep.subr.bf16.mxu0 0
          %1934 = vmatpush1.bf16.msra.mxu0 0
          %1935 = vmatprep.subr.bf16.mxu0 0
          %1936 = vmatpush1.bf16.msra.mxu0 0
          %1937 = vmatprep.subr.bf16.mxu0 0
          %1938 = vmatpush1.bf16.msra.mxu0 0
          %1939 = vmatprep.subr.bf16.mxu0 0
          %1940 = vmatpush1.bf16.msra.mxu0 0
          %1941 = vmatprep.mubr.bf16.mxu0 0
          %1942 = vmatmul.mubr.bf16.gmra.mrb[0].mxu0 %v1826
          %v1943 = vpop.f32.mrb[0].mxu0
          %v1944 = vadd.f32 %v1827, %v1943
          %v1945 = vpop.f32.mrb[0].mxu0
          %v1946 = vadd.f32 %v1828, %v1945
          %v1947 = vpop.f32.mrb[0].mxu0
          %v1948 = vpop.f32.mrb[0].mxu0
          %1949 = vdwg.mxu0
          %1950 = vmax.xlane.f32.xlu0 %v1946
          %v1951 = vpop.xlane.xlu0 %1950
          %v1952 = vsub.f32 %v1946, %v1951
          %v1953 = vmul.f32 %v1952, 1.442695
          %v1954 = vpow.pop %v1953
          %1955 = vadd.xlane.f32.xlu0 %v1954
          %v1956 = vpop.xlane.xlu0 %1955
          %v1957 = vlog2.pop %v1956
          %v1958 = vmul.f32 %v1957, 0.6931472
          %v1959 = vsub.f32 %v1952, %v1958
          %s1960 = scalar_lea.vmem %s239, 56 [#allocation10]
          %1961 = vst [vmem:[%s1960] sm:$0xff] %v1959
          %1962 = vst [vmem:[%s246] sm:$0xff] %v1944
        $region76: #{rnn_forward_sequence.1} parent=31 // pred_fallthru
          _
        %s1963 = sand.u32 %s118, 1
        %s1964 = sand.u32 %s118, 1
        %s1965 = smul.addr %s1964, 64
        %s1966 = scalar_lea.vmem [#allocation10], %s1965
        %s1967 = sand.u32 %s144, 1
        %s1968 = scalar_lea.sflag [#allocation7], %s1967
        %s1969 = sand.u32 %s144, 1
        %s1970 = smul.addr %s1969, 8
        %s1971 = scalar_lea.vmem [#allocation11], %s1970
        // Predicated region
        $region77: #{rnn_forward_sequence.1} parent=31 // pred_check
          %p1972 = pneg %p128
        $region78: #{rnn_forward_sequence.1} parent=31 // pred_check_branch
          %1974 = sbr.rel (%p1972) target = $region80
        $region79: #{rnn_forward_sequence.1} parent=31 // pred_region
          %s1975 = smul.u32 8, %s33
          %s1976 = smul.addr %s1975, 2
          %s1977 = sadd.s32 %s32, %s1976
          %s1978 = smul.addr %s1977, 8
          %s1979 = scalar_lea.vmem %s4, %s1978
          // Predicated region
          $region81: #{rnn_forward_sequence.1} parent=79 // pred_check
            _
          $region82: #{rnn_forward_sequence.1} parent=79 // pred_check_branch
            %1981 = sbr.rel (0) target = $region84
          $region83: #{rnn_forward_sequence.1} parent=79 // pred_region
            // Predicated region
            $region85: #{rnn_forward_sequence.1} parent=83 // pred_check
              _
            $region86: #{rnn_forward_sequence.1} parent=83 // pred_check_branch
              %1983 = sbr.rel (0) target = $region88
            $region87: #{rnn_forward_sequence.1} parent=83 // pred_region
              // Predicated region
              $region100: #{rnn_forward_sequence.1} parent=87 // pred_check
                _
              $region101: #{rnn_forward_sequence.1} parent=87 // pred_check_branch
                %2012 = sbr.rel (0) target = $region103
              $region102: #{rnn_forward_sequence.1} parent=87 // pred_region
                loop: start=0, step=1, limit=1
                $region104: #{rnn_forward_sequence.1} parent=102 // loop_pre_header
                  _
                $region105: #{rnn_forward_sequence.1} parent=102 // loop_header
                  %s2014 = sphi 0, %s2018
                  %p2015 = scmp.ge.s32.totalorder %s2014, 1
                  %s2019 = sphi %s1966, %s1966
                  %s2020 = sphi %s1979, %s1979
                $region106: #{rnn_forward_sequence.1} parent=102 // loop_header_branch
                  %2017 = sbr.rel (%p2015) target = $region110
                $region107: #{rnn_forward_sequence.1} parent=102 // loop_body
                  %v2021 = vld [vmem:[%s2019] sm:$0xff]
                  %2022 = vst [vmem:[%s2020] sm:$0xff] %v2021
                  %v2023 = vld [vmem:[%s2019 + $0x8] sm:$0xff]
                  %2024 = vst [vmem:[%s2020 + $0x10] sm:$0xff] %v2023
                  %v2025 = vld [vmem:[%s2019 + $0x10] sm:$0xff]
                  %2026 = vst [vmem:[%s2020 + $0x20] sm:$0xff] %v2025
                  %v2027 = vld [vmem:[%s2019 + $0x18] sm:$0xff]
                  %2028 = vst [vmem:[%s2020 + $0x30] sm:$0xff] %v2027
                  %v2029 = vld [vmem:[%s2019 + $0x20] sm:$0xff]
                  %2030 = vst [vmem:[%s2020 + $0x40] sm:$0xff] %v2029
                  %v2031 = vld [vmem:[%s2019 + $0x28] sm:$0xff]
                  %2032 = vst [vmem:[%s2020 + $0x50] sm:$0xff] %v2031
                  %v2033 = vld [vmem:[%s2019 + $0x30] sm:$0xff]
                  %2034 = vst [vmem:[%s2020 + $0x60] sm:$0xff] %v2033
                  %v2035 = vld [vmem:[%s2019 + $0x38] sm:$0xff]
                  %2036 = vst [vmem:[%s2020 + $0x70] sm:$0xff] %v2035
                $region108: #{rnn_forward_sequence.1} parent=102 // loop_footer
                  %s2018 = sadd.s32 1, %s2014
                $region109: #{rnn_forward_sequence.1} parent=102 // loop_footer_branch
                  %2013 = sbr.rel target = $region105
                $region110: #{rnn_forward_sequence.1} parent=102 // loop_exit
                  _
              $region103: #{rnn_forward_sequence.1} parent=87 // pred_fallthru
                _
              // Predicated region
              $region111: #{rnn_forward_sequence.1} parent=87 // pred_check
                _
              $region112: #{rnn_forward_sequence.1} parent=87 // pred_check_branch
                %2038 = sbr.rel target = $region114
              $region113: #{rnn_forward_sequence.1} parent=87 // pred_region
                _
              $region114: #{rnn_forward_sequence.1} parent=87 // pred_fallthru
                _
            $region88: #{rnn_forward_sequence.1} parent=83 // pred_fallthru
              _
            // Predicated region
            $region89: #{rnn_forward_sequence.1} parent=83 // pred_check
              _
            $region90: #{rnn_forward_sequence.1} parent=83 // pred_check_branch
              %1985 = sbr.rel target = $region92
            $region91: #{rnn_forward_sequence.1} parent=83 // pred_region
              loop: start=0, step=1, limit=1
              $region93: #{rnn_forward_sequence.1} parent=91 // loop_pre_header
                _
              $region94: #{rnn_forward_sequence.1} parent=91 // loop_header
                %s1988 = sphi 0, %s1992
                %p1989 = scmp.ge.s32.totalorder %s1988, 1
                %s1993 = sphi %s1966, %s1966
                %s1994 = sphi %s1979, %s1979
              $region95: #{rnn_forward_sequence.1} parent=91 // loop_header_branch
                %1991 = sbr.rel (%p1989) target = $region99
              $region96: #{rnn_forward_sequence.1} parent=91 // loop_body
                %v1995 = vld [vmem:[%s1993] sm:$0xff]
                %1996 = vst [vmem:[%s1994] sm:$0xff] %v1995
                %v1997 = vld [vmem:[%s1993 + $0x8] sm:$0xff]
                %1998 = vst [vmem:[%s1994 + $0x10] sm:$0xff] %v1997
                %v1999 = vld [vmem:[%s1993 + $0x10] sm:$0xff]
                %2000 = vst [vmem:[%s1994 + $0x20] sm:$0xff] %v1999
                %v2001 = vld [vmem:[%s1993 + $0x18] sm:$0xff]
                %2002 = vst [vmem:[%s1994 + $0x30] sm:$0xff] %v2001
                %v2003 = vld [vmem:[%s1993 + $0x20] sm:$0xff]
                %2004 = vst [vmem:[%s1994 + $0x40] sm:$0xff] %v2003
                %v2005 = vld [vmem:[%s1993 + $0x28] sm:$0xff]
                %2006 = vst [vmem:[%s1994 + $0x50] sm:$0xff] %v2005
                %v2007 = vld [vmem:[%s1993 + $0x30] sm:$0xff]
                %2008 = vst [vmem:[%s1994 + $0x60] sm:$0xff] %v2007
                %v2009 = vld [vmem:[%s1993 + $0x38] sm:$0xff]
                %2010 = vst [vmem:[%s1994 + $0x70] sm:$0xff] %v2009
              $region97: #{rnn_forward_sequence.1} parent=91 // loop_footer
                %s1992 = sadd.s32 1, %s1988
              $region98: #{rnn_forward_sequence.1} parent=91 // loop_footer_branch
                %1987 = sbr.rel target = $region94
              $region99: #{rnn_forward_sequence.1} parent=91 // loop_exit
                _
            $region92: #{rnn_forward_sequence.1} parent=83 // pred_fallthru
              _
          $region84: #{rnn_forward_sequence.1} parent=79 // pred_fallthru
            _
          %2039 = vnop
        $region80: #{rnn_forward_sequence.1} parent=31 // pred_fallthru
          _
        // Predicated region
        $region115: #{rnn_forward_sequence.1} parent=31 // pred_check
          %p2040 = pneg %p154
        $region116: #{rnn_forward_sequence.1} parent=31 // pred_check_branch
          %2042 = sbr.rel (%p2040) target = $region118
        $region117: #{rnn_forward_sequence.1} parent=31 // pred_region
          %s2044 = ssub.s32 128, 128
          %2045 = vsyncadd %s1968, %s2044
          %s2046 = smul.addr %s32, 128
          %s2047 = scalar_lea.hbm %s5, %s2046
          %s2049 = sshll.u32 %s1971, 4
          %s2050 = int_to_ptr.vmem [resolvable:$true] %s2049
          %2052 = dma.vmem_to_hbm [thread:$0]  %s2050, 128, %s2047, %s1968
        $region118: #{rnn_forward_sequence.1} parent=31 // pred_fallthru
          _
      $region32: #{rnn_forward_sequence.1} parent=5 // pred_fallthru
        _
      %p2053 = scmp.le.s32.totalorder 2, %s23
      // Predicated region
      $region119: #{rnn_forward_sequence.1} parent=5 // pred_check
        %p2054 = pneg %p2053
      $region120: #{rnn_forward_sequence.1} parent=5 // pred_check_branch
        %2056 = sbr.rel (%p2054) target = $region122
      $region121: #{rnn_forward_sequence.1} parent=5 // pred_region
        %s2057 = ssub.s32 %s23, 2
        // Predicated region
        $region123: #{rnn_forward_sequence.1} parent=121 // pred_check
          %p2058 = pneg %p134
        $region124: #{rnn_forward_sequence.1} parent=121 // pred_check_branch
          %2060 = sbr.rel (%p2058) target = $region126
        $region125: #{rnn_forward_sequence.1} parent=121 // pred_region
          %s2061 = sand.u32 %s119, 1
          %s2062 = sand.u32 %s119, 1
          %s2063 = smul.addr %s2062, 64
          %s2064 = scalar_lea.vmem [#allocation10], %s2063
        $region126: #{rnn_forward_sequence.1} parent=121 // pred_fallthru
          _
        // Predicated region
        $region127: #{rnn_forward_sequence.1} parent=121 // pred_check
          %p2065 = pneg %p160
        $region128: #{rnn_forward_sequence.1} parent=121 // pred_check_branch
          %2067 = sbr.rel (%p2065) target = $region130
        $region129: #{rnn_forward_sequence.1} parent=121 // pred_region
          %s2068 = sand.u32 %s145, 1
          %s2069 = scalar_lea.sflag [#allocation7], %s2068
          %s2070 = sand.u32 %s145, 1
          %s2071 = smul.addr %s2070, 8
          %s2072 = scalar_lea.vmem [#allocation11], %s2071
          %2073 = dma.done %s2069, 128
        $region130: #{rnn_forward_sequence.1} parent=121 // pred_fallthru
          _
      $region122: #{rnn_forward_sequence.1} parent=5 // pred_fallthru
        _
    $region6: #{rnn_forward_sequence.1} parent=1 // loop_footer
      %s27 = sadd.s32 1, %s23
    $region7: #{rnn_forward_sequence.1} parent=1 // loop_footer_branch
      %22 = sbr.rel target = $region3
    $region8: #{rnn_forward_sequence.1} parent=1 // loop_exit
      _
    %2074 = vsyncpa [#allocation6], 1
    %s2075 = scalar_lea.sflag [#allocation6], 1
    %2076 = vsyncpa %s2075, 1
    %2077 = vsyncpa [#allocation9], 1
    %2078 = vsyncpa [#allocation7], 1
    %s2079 = scalar_lea.sflag [#allocation7], 1
    %2080 = vsyncpa %s2079, 1

</llo_original>
